<compile_context>
chip_gen: v5e
topology: v5e:2x2
jax: 0.10.0
libtpu: 0.0.40
codegen_flags: <defaults>
</compile_context>

<pallas_src>
import jax
import jax.numpy as jnp
from jax import lax
from jax.experimental import pallas as pl
from jax.experimental.pallas import tpu as pltpu

CP = 128   # lane-dense padded channel width (node feats / hidden dims)
EP = 128   # lane-dense padded edge-attribute width
TD = 8     # destination-node row tile (grid axis, 'parallel')


# ------------------------------ fused kernel --------------------------------

def _make_layer_kernel(node_types, edge_types, slot_of, edge_counts, n_nodes,
                       apply_bn):
    """Builds the fused per-layer kernel (structure is static / trace-time)."""

    def kernel(*refs):
        idx = 0
        x_r, w_r, b_r = {}, {}, {}
        for nt in node_types:
            x_r[nt], w_r[nt], b_r[nt] = refs[idx], refs[idx + 1], refs[idx + 2]
            idx += 3
        ea_r, we_r, att_r, bias_r, sc_r, dc_r, dr_r = {}, {}, {}, {}, {}, {}, {}
        for et in edge_types:
            (ea_r[et], we_r[et], att_r[et], bias_r[et],
             sc_r[et], dc_r[et], dr_r[et]) = refs[idx:idx + 7]
            idx += 7
        scale_r, shift_r = {}, {}
        if apply_bn:
            for nt in node_types:
                scale_r[nt], shift_r[nt] = refs[idx], refs[idx + 1]
                idx += 2
        out_r = {nt: refs[idx + k] for k, nt in enumerate(node_types)}

        row_off = pl.program_id(0) * TD

        # Batched lin_l / lin_r: one GEMM per node type covering all slots.
        proj = {}
        for nt in node_types:
            proj[nt] = (jnp.dot(x_r[nt][...], w_r[nt][...],
                                preferred_element_type=jnp.float32)
                        + b_r[nt][...])

        contrib = {nt: [] for nt in node_types}
        for et in edge_types:
            src_t, _, dst_t = et
            sl, sr = slot_of[et]
            E = edge_counts[et]
            S = n_nodes                       # nodes per type (uniform here)

            xl = proj[src_t][:, sl * CP:(sl + 1) * CP]        # [S, CP]
            xr = proj[dst_t][:, sr * CP:(sr + 1) * CP]        # [D, CP]

            e_emb = jnp.dot(ea_r[et][...], we_r[et][...],
                            preferred_element_type=jnp.float32)  # [E, CP]

            src_col = sc_r[et][...]           # [E, 1] int32
            dst_col = dc_r[et][...]           # [E, 1] int32
            dst_row = dr_r[et][...]           # [1, E] int32

            # One-hot gather / scatter matrices built in-kernel (no XLA scatter,
            # no dense [D, S, C] edge tensor — only [TD, S] logits are dense).
            p_src = (lax.broadcasted_iota(jnp.int32, (E, S), 1)
                     == src_col).astype(jnp.float32)             # [E, S]
            p_dst = (lax.broadcasted_iota(jnp.int32, (E, S), 1)
                     == dst_col).astype(jnp.float32)             # [E, D]
            m_dst = (lax.broadcasted_iota(jnp.int32, (TD, E), 0) + row_off
                     == dst_row).astype(jnp.float32)             # [TD, E]

            # Per-edge GATv2 score (edge-list work, O(E*C)).
            xl_g = jnp.dot(p_src, xl, preferred_element_type=jnp.float32)
            xr_g = jnp.dot(p_dst, xr, preferred_element_type=jnp.float32)
            z = xl_g + xr_g + e_emb
            z = jnp.where(z > 0, z, 0.2 * z)                     # leaky_relu(0.2)
            s = jnp.sum(z * att_r[et][...], axis=-1, keepdims=True)   # [E, 1]

            # Scatter the per-edge scores into this tile's dense logit map.
            logits = jnp.dot(m_dst, s * p_src,
                             preferred_element_type=jnp.float32)  # [TD, S]
            mask = jnp.dot(m_dst, p_src,
                           preferred_element_type=jnp.float32)    # [TD, S]
            # TODO(synk): assumes no duplicate (src,dst) pairs per edge type;
            # PyG's multiset edge softmax differs if duplicates exist.

            logits = jnp.where(mask > 0.5, logits, jnp.float32(-1e30))
            mx = jnp.max(logits, axis=-1, keepdims=True)
            p = jnp.exp(logits - mx) * mask
            den = jnp.sum(p, axis=-1, keepdims=True)
            alpha = p * pl.reciprocal(jnp.where(den > 0.0, den, 1.0),
                                      approx=True)

            out = (jnp.dot(alpha, xl, preferred_element_type=jnp.float32)
                   + bias_r[et][...])                              # [TD, CP]
            contrib[dst_t].append(out)

        for nt in node_types:
            cs = contrib[nt]
            agg = cs[0]
            for c in cs[1:]:
                agg = agg + c
            agg = agg * jnp.float32(1.0 / len(cs))        # HeteroConv 'mean'
            if apply_bn:
                agg = (jnp.maximum(agg, 0.0) * scale_r[nt][...]
                       + shift_r[nt][...])                # bn(relu(x)), eval mode
            out_r[nt][...] = agg

    return kernel


def _hgat_layer(layer_p, x_dict, edge_data, node_types, edge_types, slot_of,
                apply_bn):
    """One fused HGAT layer = one pallas_call."""
    N = x_dict[node_types[0]].shape[0]
    assert all(x_dict[nt].shape == (N, CP) for nt in node_types)
    assert N % TD == 0
    assert all(any(et[2] == nt for et in edge_types) for nt in node_types)
    n_tiles = N // TD

    inputs, in_specs = [], []
    for nt in node_types:
        W, B = layer_p["node"][nt]["W"], layer_p["node"][nt]["B"]
        inputs += [x_dict[nt], W, B]
        in_specs += [
            pl.BlockSpec((N, CP), lambda i: (0, 0)),
            pl.BlockSpec(W.shape, lambda i: (0, 0)),
            pl.BlockSpec(B.shape, lambda i: (0, 0)),
        ]
    edge_counts = {}
    for et in edge_types:
        eparams, ed = layer_p["edge"][et], edge_data[et]
        E = ed["src_col"].shape[0]
        edge_counts[et] = E
        inputs += [ed["attr"], eparams["w_e"], eparams["att"], eparams["bias"],
                   ed["src_col"], ed["dst_col"], ed["dst_row"]]
        in_specs += [
            pl.BlockSpec((E, EP), lambda i: (0, 0)),
            pl.BlockSpec((EP, CP), lambda i: (0, 0)),
            pl.BlockSpec((1, CP), lambda i: (0, 0)),
            pl.BlockSpec((1, CP), lambda i: (0, 0)),
            pl.BlockSpec((E, 1), lambda i: (0, 0)),
            pl.BlockSpec((E, 1), lambda i: (0, 0)),
            pl.BlockSpec((1, E), lambda i: (0, 0)),
        ]
    if apply_bn:
        for nt in node_types:
            inputs += [layer_p["bn"][nt]["scale"], layer_p["bn"][nt]["shift"]]
            in_specs += [pl.BlockSpec((1, CP), lambda i: (0, 0)),
                         pl.BlockSpec((1, CP), lambda i: (0, 0))]

    kernel = _make_layer_kernel(node_types, edge_types, slot_of, edge_counts,
                                n_nodes=N, apply_bn=apply_bn)

    outs = pl.pallas_call(
        kernel,
        out_shape=[jax.ShapeDtypeStruct((N, CP), jnp.float32)
                   for _ in node_types],
        grid=(n_tiles,),
        in_specs=in_specs,
        out_specs=[pl.BlockSpec((TD, CP), lambda i: (i, 0))
                   for _ in node_types],
        compiler_params=pltpu.CompilerParams(
            dimension_semantics=("parallel",),     # v7x: 2 TCs split dst tiles
            vmem_limit_bytes=32 * 1024 * 1024),
    )(*inputs)
    return {nt: outs[k] for k, nt in enumerate(node_types)}


def hgat_forward(prep, x_dict, edge_data, node_types, edge_types, slot_of):
    """HGATBlock.forward in eval mode (dropout identity, BN running stats)."""
    x = x_dict
    n_layers = len(prep)
    for li in range(n_layers):
        x = _hgat_layer(prep[li], x, edge_data, node_types, edge_types, slot_of,
                        apply_bn=(li < n_layers - 1))
    return x


# --------------------------- parameter preparation ---------------------------

def _pad2(a, rows, cols):
    a = jnp.asarray(a, jnp.float32)
    if a.ndim == 1:
        a = a.reshape(1, -1)
    return jnp.zeros((rows, cols), jnp.float32).at[:a.shape[0], :a.shape[1]].set(a)


def _glorot(key, shape):
    fan_in, fan_out = shape
    limit = (6.0 / (fan_in + fan_out)) ** 0.5
    return jax.random.uniform(key, shape, jnp.float32, -limit, limit)


def build_slots(node_types, edge_types):
    """Assign each edge type a column slot in its src/dst node-type GEMM."""
    slots = {nt: [] for nt in node_types}
    slot_of = {}
    for et in edge_types:
        src_t, _, dst_t = et
        sl = len(slots[src_t]); slots[src_t].append((et, "l"))
        sr = len(slots[dst_t]); slots[dst_t].append((et, "r"))
        slot_of[et] = (sl, sr)
    return slots, slot_of


def build_raw_params(key, edge_types, edge_sizes, in_dims, node_types, hidden):
    params = {"convs": [], "bns": []}
    layer_in = dict(in_dims)
    keys = iter(jax.random.split(key, 1024))
    for li, out_c in enumerate(hidden):
        conv_p = {}
        for et in edge_types:
            src_t, rel, dst_t = et
            conv_p[et] = {
                "w_l": _glorot(next(keys), (layer_in[src_t], out_c)),
                "b_l": 0.1 * jax.random.normal(next(keys), (out_c,), jnp.float32),
                "w_r": _glorot(next(keys), (layer_in[dst_t], out_c)),
                "b_r": 0.1 * jax.random.normal(next(keys), (out_c,), jnp.float32),
                "w_e": _glorot(next(keys), (edge_sizes[rel], out_c)),
                "att": _glorot(next(keys), (1, out_c))[0],
                "bias": 0.1 * jax.random.normal(next(keys), (out_c,), jnp.float32),
            }
        params["convs"].append(conv_p)
        if li < len(hidden) - 1:
            params["bns"].append({
                nt: {"gamma": 1.0 + 0.1 * jax.random.normal(next(keys), (out_c,), jnp.float32),
                     "beta": 0.1 * jax.random.normal(next(keys), (out_c,), jnp.float32),
                     "mean": 0.1 * jax.random.normal(next(keys), (out_c,), jnp.float32),
                     "var": 0.5 + jax.random.uniform(next(keys), (out_c,), jnp.float32)}
                for nt in node_types})
        layer_in = {nt: out_c for nt in node_types}
    return params


def prepare_params(raw, node_types, edge_types, slots):
    """One-time prep: pad to lane-dense widths, concat per-node-type weight
    slots into a single GEMM, fold BN (eval) into scale/shift constants."""
    prep = []
    n_layers = len(raw["convs"])
    for li in range(n_layers):
        conv_p = raw["convs"][li]
        node_p = {}
        for nt in node_types:
            nsl = max(1, len(slots[nt]))
            W = jnp.zeros((CP, nsl * CP), jnp.float32)
            B = jnp.zeros((1, nsl * CP), jnp.float32)
            for k, (et, role) in enumerate(slots[nt]):
                w = conv_p[et]["w_l"] if role == "l" else conv_p[et]["w_r"]
                b = conv_p[et]["b_l"] if role == "l" else conv_p[et]["b_r"]
                W = W.at[:w.shape[0], k * CP:k * CP + w.shape[1]].set(w)
                B = B.at[0, k * CP:k * CP + b.shape[0]].set(b)
            node_p[nt] = {"W": W, "B": B}
        edge_p = {}
        for et in edge_types:
            p = conv_p[et]
            edge_p[et] = {"w_e": _pad2(p["w_e"], EP, CP),
                          "att": _pad2(p["att"], 1, CP),
                          "bias": _pad2(p["bias"], 1, CP)}
        bn_p = None
        if li < n_layers - 1:
            bn_p = {}
            for nt in node_types:
                bn = raw["bns"][li][nt]
                scale = bn["gamma"] / jnp.sqrt(bn["var"] + 1e-5)
                shift = bn["beta"] - bn["mean"] * scale
                bn_p[nt] = {"scale": _pad2(scale, 1, CP),
                            "shift": _pad2(shift, 1, CP)}
        prep.append({"node": node_p, "edge": edge_p, "bn": bn_p})
    return prep


def prepare_graph(x_dict_raw, edge_index_dict, edge_attr_dict, node_types,
                  edge_types):
    """One-time prep: lane-pad node features / edge attrs, reshape indices."""
    x = {nt: _pad2(x_dict_raw[nt], x_dict_raw[nt].shape[0], CP)
         for nt in node_types}
    edge_data = {}
    for et in edge_types:
        ei = edge_index_dict[et].astype(jnp.int32)
        ea = edge_attr_dict[et]
        E = ei.shape[1]
        edge_data[et] = {
            "attr": _pad2(ea, E, EP),
            "src_col": ei[0].reshape(E, 1),
            "dst_col": ei[1].reshape(E, 1),
            "dst_row": ei[1].reshape(1, E),
        }
    return x, edge_data


# ----------------------------------- main ------------------------------------

if __name__ == "__main__":
    key = jax.random.PRNGKey(0)
    ks = jax.random.split(key, 8)

    node_types = ["user", "item"]
    edge_types = [("user", "buys", "item"),
                  ("user", "reviews", "item"),
                  ("item", "bought_by", "user")]
    edge_sizes = {"buys": 6, "reviews": 4, "bought_by": 5}
    in_dims = {"user": 12, "item": 10}
    hidden = [32, 16]          # default_hidden_channels_gcn
    n_nodes = 16               # per node type
    n_edges = 32               # per edge type

    x_dict = {
        "user": jax.random.normal(ks[0], (n_nodes, in_dims["user"]), jnp.float32),
        "item": jax.random.normal(ks[1], (n_nodes, in_dims["item"]), jnp.float32),
    }

    def make_edges(mult):
        idx = jnp.arange(n_edges)
        src = idx % n_nodes
        dst = (mult * idx + idx // n_nodes) % n_nodes   # no duplicate (src,dst)
        return jnp.stack([src, dst]).astype(jnp.int32)

    edge_index_dict = {edge_types[0]: make_edges(3),
                       edge_types[1]: make_edges(5),
                       edge_types[2]: make_edges(7)}
    edge_attr_dict = {
        et: jax.random.normal(ks[2 + i], (n_edges, edge_sizes[et[1]]), jnp.float32)
        for i, et in enumerate(edge_types)}

    slots, slot_of = build_slots(node_types, edge_types)
    raw = build_raw_params(ks[5], edge_types, edge_sizes, in_dims, node_types,
                           hidden)
    prep = prepare_params(raw, node_types, edge_types, slots)
    x_pad, edge_data = prepare_graph(x_dict, edge_index_dict, edge_attr_dict,
                                     node_types, edge_types)

    out_pad = hgat_forward(prep, x_pad, edge_data, node_types, edge_types,
                           slot_of)
    out = {nt: out_pad[nt][:, :hidden[-1]] for nt in node_types}

    for nt in node_types:
        jax.block_until_ready(out[nt])
        assert out[nt].shape == (n_nodes, hidden[-1]), out[nt].shape
        assert bool(jnp.all(jnp.isfinite(out[nt])))

    print("KERNEL_OK")
</pallas_src>

<mosaic_0001>
module attributes {stable_mosaic.version = 11 : i64} {
  func.func @kernel(%arg0: i32, %arg1: memref<16x128xf32, #tpu.memory_space<vmem>>, %arg2: memref<128x384xf32, #tpu.memory_space<vmem>>, %arg3: memref<1x384xf32, #tpu.memory_space<vmem>>, %arg4: memref<16x128xf32, #tpu.memory_space<vmem>>, %arg5: memref<128x384xf32, #tpu.memory_space<vmem>>, %arg6: memref<1x384xf32, #tpu.memory_space<vmem>>, %arg7: memref<32x128xf32, #tpu.memory_space<vmem>>, %arg8: memref<128x128xf32, #tpu.memory_space<vmem>>, %arg9: memref<1x128xf32, #tpu.memory_space<vmem>>, %arg10: memref<1x128xf32, #tpu.memory_space<vmem>>, %arg11: memref<32x1xi32, #tpu.memory_space<vmem>>, %arg12: memref<32x1xi32, #tpu.memory_space<vmem>>, %arg13: memref<1x32xi32, #tpu.memory_space<vmem>>, %arg14: memref<32x128xf32, #tpu.memory_space<vmem>>, %arg15: memref<128x128xf32, #tpu.memory_space<vmem>>, %arg16: memref<1x128xf32, #tpu.memory_space<vmem>>, %arg17: memref<1x128xf32, #tpu.memory_space<vmem>>, %arg18: memref<32x1xi32, #tpu.memory_space<vmem>>, %arg19: memref<32x1xi32, #tpu.memory_space<vmem>>, %arg20: memref<1x32xi32, #tpu.memory_space<vmem>>, %arg21: memref<32x128xf32, #tpu.memory_space<vmem>>, %arg22: memref<128x128xf32, #tpu.memory_space<vmem>>, %arg23: memref<1x128xf32, #tpu.memory_space<vmem>>, %arg24: memref<1x128xf32, #tpu.memory_space<vmem>>, %arg25: memref<32x1xi32, #tpu.memory_space<vmem>>, %arg26: memref<32x1xi32, #tpu.memory_space<vmem>>, %arg27: memref<1x32xi32, #tpu.memory_space<vmem>>, %arg28: memref<1x128xf32, #tpu.memory_space<vmem>>, %arg29: memref<1x128xf32, #tpu.memory_space<vmem>>, %arg30: memref<1x128xf32, #tpu.memory_space<vmem>>, %arg31: memref<1x128xf32, #tpu.memory_space<vmem>>, %arg32: memref<8x128xf32, #tpu.memory_space<vmem>>, %arg33: memref<8x128xf32, #tpu.memory_space<vmem>>) attributes {dimension_semantics = [#tpu.dimension_semantics<parallel>], iteration_bounds = array<i64: 2>, scalar_prefetch = 0 : i64, scratch_operands = 0 : i64, tpu.core_type = #tpu.core_type<tc>, window_params = [{pipeline_mode = #tpu.pipeline_mode<synchronous>, transform_indices = @transform_0, window_bounds = array<i64: 16, 128>}, {pipeline_mode = #tpu.pipeline_mode<synchronous>, transform_indices = @transform_1, window_bounds = array<i64: 128, 384>}, {pipeline_mode = #tpu.pipeline_mode<synchronous>, transform_indices = @transform_2, window_bounds = array<i64: 1, 384>}, {pipeline_mode = #tpu.pipeline_mode<synchronous>, transform_indices = @transform_3, window_bounds = array<i64: 16, 128>}, {pipeline_mode = #tpu.pipeline_mode<synchronous>, transform_indices = @transform_4, window_bounds = array<i64: 128, 384>}, {pipeline_mode = #tpu.pipeline_mode<synchronous>, transform_indices = @transform_5, window_bounds = array<i64: 1, 384>}, {pipeline_mode = #tpu.pipeline_mode<synchronous>, transform_indices = @transform_6, window_bounds = array<i64: 32, 128>}, {pipeline_mode = #tpu.pipeline_mode<synchronous>, transform_indices = @transform_7, window_bounds = array<i64: 128, 128>}, {pipeline_mode = #tpu.pipeline_mode<synchronous>, transform_indices = @transform_8, window_bounds = array<i64: 1, 128>}, {pipeline_mode = #tpu.pipeline_mode<synchronous>, transform_indices = @transform_9, window_bounds = array<i64: 1, 128>}, {pipeline_mode = #tpu.pipeline_mode<synchronous>, transform_indices = @transform_10, window_bounds = array<i64: 32, 1>}, {pipeline_mode = #tpu.pipeline_mode<synchronous>, transform_indices = @transform_11, window_bounds = array<i64: 32, 1>}, {pipeline_mode = #tpu.pipeline_mode<synchronous>, transform_indices = @transform_12, window_bounds = array<i64: 1, 32>}, {pipeline_mode = #tpu.pipeline_mode<synchronous>, transform_indices = @transform_13, window_bounds = array<i64: 32, 128>}, {pipeline_mode = #tpu.pipeline_mode<synchronous>, transform_indices = @transform_14, window_bounds = array<i64: 128, 128>}, {pipeline_mode = #tpu.pipeline_mode<synchronous>, transform_indices = @transform_15, window_bounds = array<i64: 1, 128>}, {pipeline_mode = #tpu.pipeline_mode<synchronous>, transform_indices = @transform_16, window_bounds = array<i64: 1, 128>}, {pipeline_mode = #tpu.pipeline_mode<synchronous>, transform_indices = @transform_17, window_bounds = array<i64: 32, 1>}, {pipeline_mode = #tpu.pipeline_mode<synchronous>, transform_indices = @transform_18, window_bounds = array<i64: 32, 1>}, {pipeline_mode = #tpu.pipeline_mode<synchronous>, transform_indices = @transform_19, window_bounds = array<i64: 1, 32>}, {pipeline_mode = #tpu.pipeline_mode<synchronous>, transform_indices = @transform_20, window_bounds = array<i64: 32, 128>}, {pipeline_mode = #tpu.pipeline_mode<synchronous>, transform_indices = @transform_21, window_bounds = array<i64: 128, 128>}, {pipeline_mode = #tpu.pipeline_mode<synchronous>, transform_indices = @transform_22, window_bounds = array<i64: 1, 128>}, {pipeline_mode = #tpu.pipeline_mode<synchronous>, transform_indices = @transform_23, window_bounds = array<i64: 1, 128>}, {pipeline_mode = #tpu.pipeline_mode<synchronous>, transform_indices = @transform_24, window_bounds = array<i64: 32, 1>}, {pipeline_mode = #tpu.pipeline_mode<synchronous>, transform_indices = @transform_25, window_bounds = array<i64: 32, 1>}, {pipeline_mode = #tpu.pipeline_mode<synchronous>, transform_indices = @transform_26, window_bounds = array<i64: 1, 32>}, {pipeline_mode = #tpu.pipeline_mode<synchronous>, transform_indices = @transform_27, window_bounds = array<i64: 1, 128>}, {pipeline_mode = #tpu.pipeline_mode<synchronous>, transform_indices = @transform_28, window_bounds = array<i64: 1, 128>}, {pipeline_mode = #tpu.pipeline_mode<synchronous>, transform_indices = @transform_29, window_bounds = array<i64: 1, 128>}, {pipeline_mode = #tpu.pipeline_mode<synchronous>, transform_indices = @transform_30, window_bounds = array<i64: 1, 128>}, {transform_indices = @transform_31, window_bounds = array<i64: 8, 128>}, {transform_indices = @transform_32, window_bounds = array<i64: 8, 128>}]} {
    %c8_i32 = arith.constant 8 : i32
    %0 = arith.muli %arg0, %c8_i32 : i32
    %c0 = arith.constant 0 : index
    %c0_0 = arith.constant 0 : index
    %1 = vector.load %arg1[%c0, %c0_0] : memref<16x128xf32, #tpu.memory_space<vmem>>, vector<16x128xf32>
    %c0_1 = arith.constant 0 : index
    %c0_2 = arith.constant 0 : index
    %2 = vector.load %arg2[%c0_1, %c0_2] : memref<128x384xf32, #tpu.memory_space<vmem>>, vector<128x384xf32>
    %cst = arith.constant dense<0.000000e+00> : vector<16x384xf32>
    %3 = tpu.matmul %1, %2, %cst {dimension_numbers = #tpu.dot_dimension_numbers<[1], [0], [0], [1], [0, 0, 1, 1], [], []>} : vector<16x128xf32>, vector<128x384xf32>, vector<16x384xf32> -> vector<16x384xf32>
    %c0_3 = arith.constant 0 : index
    %c0_4 = arith.constant 0 : index
    %4 = vector.load %arg3[%c0_3, %c0_4] : memref<1x384xf32, #tpu.memory_space<vmem>>, vector<1x384xf32>
    %5 = vector.broadcast %4 : vector<1x384xf32> to vector<16x384xf32>
    %6 = arith.addf %3, %5 : vector<16x384xf32>
    %c0_5 = arith.constant 0 : index
    %c0_6 = arith.constant 0 : index
    %7 = vector.load %arg4[%c0_5, %c0_6] : memref<16x128xf32, #tpu.memory_space<vmem>>, vector<16x128xf32>
    %c0_7 = arith.constant 0 : index
    %c0_8 = arith.constant 0 : index
    %8 = vector.load %arg5[%c0_7, %c0_8] : memref<128x384xf32, #tpu.memory_space<vmem>>, vector<128x384xf32>
    %cst_9 = arith.constant dense<0.000000e+00> : vector<16x384xf32>
    %9 = tpu.matmul %7, %8, %cst_9 {dimension_numbers = #tpu.dot_dimension_numbers<[1], [0], [0], [1], [0, 0, 1, 1], [], []>} : vector<16x128xf32>, vector<128x384xf32>, vector<16x384xf32> -> vector<16x384xf32>
    %c0_10 = arith.constant 0 : index
    %c0_11 = arith.constant 0 : index
    %10 = vector.load %arg6[%c0_10, %c0_11] : memref<1x384xf32, #tpu.memory_space<vmem>>, vector<1x384xf32>
    %11 = vector.broadcast %10 : vector<1x384xf32> to vector<16x384xf32>
    %12 = arith.addf %9, %11 : vector<16x384xf32>
    %13 = vector.extract_strided_slice %6 {offsets = [0, 0], sizes = [16, 128], strides = [1, 1]} : vector<16x384xf32> to vector<16x128xf32>
    %14 = vector.extract_strided_slice %12 {offsets = [0, 0], sizes = [16, 128], strides = [1, 1]} : vector<16x384xf32> to vector<16x128xf32>
    %c0_12 = arith.constant 0 : index
    %c0_13 = arith.constant 0 : index
    %15 = vector.load %arg7[%c0_12, %c0_13] : memref<32x128xf32, #tpu.memory_space<vmem>>, vector<32x128xf32>
    %c0_14 = arith.constant 0 : index
    %c0_15 = arith.constant 0 : index
    %16 = vector.load %arg8[%c0_14, %c0_15] : memref<128x128xf32, #tpu.memory_space<vmem>>, vector<128x128xf32>
    %cst_16 = arith.constant dense<0.000000e+00> : vector<32x128xf32>
    %17 = tpu.matmul %15, %16, %cst_16 {dimension_numbers = #tpu.dot_dimension_numbers<[1], [0], [0], [1], [0, 0, 1, 1], [], []>} : vector<32x128xf32>, vector<128x128xf32>, vector<32x128xf32> -> vector<32x128xf32>
    %c0_17 = arith.constant 0 : index
    %c0_18 = arith.constant 0 : index
    %18 = vector.load %arg11[%c0_17, %c0_18] : memref<32x1xi32, #tpu.memory_space<vmem>>, vector<32x1xi32>
    %c0_19 = arith.constant 0 : index
    %c0_20 = arith.constant 0 : index
    %19 = vector.load %arg12[%c0_19, %c0_20] : memref<32x1xi32, #tpu.memory_space<vmem>>, vector<32x1xi32>
    %c0_21 = arith.constant 0 : index
    %c0_22 = arith.constant 0 : index
    %20 = vector.load %arg13[%c0_21, %c0_22] : memref<1x32xi32, #tpu.memory_space<vmem>>, vector<1x32xi32>
    %21 = tpu.iota {dimensions = array<i32: 1>} : vector<32x16xi32>
    %22 = vector.broadcast %18 : vector<32x1xi32> to vector<32x16xi32>
    %23 = arith.cmpi eq, %21, %22 : vector<32x16xi32>
    %24 = arith.extui %23 : vector<32x16xi1> to vector<32x16xi32>
    %25 = arith.sitofp %24 : vector<32x16xi32> to vector<32x16xf32>
    %26 = tpu.iota {dimensions = array<i32: 1>} : vector<32x16xi32>
    %27 = vector.broadcast %19 : vector<32x1xi32> to vector<32x16xi32>
    %28 = arith.cmpi eq, %26, %27 : vector<32x16xi32>
    %29 = arith.extui %28 : vector<32x16xi1> to vector<32x16xi32>
    %30 = arith.sitofp %29 : vector<32x16xi32> to vector<32x16xf32>
    %31 = tpu.iota {dimensions = array<i32: 0>} : vector<8x32xi32>
    %32 = vector.broadcast %0 : i32 to vector<8x32xi32>
    %33 = arith.addi %31, %32 : vector<8x32xi32>
    %34 = vector.broadcast %20 : vector<1x32xi32> to vector<8x32xi32>
    %35 = arith.cmpi eq, %33, %34 : vector<8x32xi32>
    %36 = arith.extui %35 : vector<8x32xi1> to vector<8x32xi32>
    %37 = arith.sitofp %36 : vector<8x32xi32> to vector<8x32xf32>
    %cst_23 = arith.constant dense<0.000000e+00> : vector<32x128xf32>
    %38 = tpu.matmul %25, %13, %cst_23 {dimension_numbers = #tpu.dot_dimension_numbers<[1], [0], [0], [1], [0, 0, 1, 1], [], []>} : vector<32x16xf32>, vector<16x128xf32>, vector<32x128xf32> -> vector<32x128xf32>
    %cst_24 = arith.constant dense<0.000000e+00> : vector<32x128xf32>
    %39 = tpu.matmul %30, %14, %cst_24 {dimension_numbers = #tpu.dot_dimension_numbers<[1], [0], [0], [1], [0, 0, 1, 1], [], []>} : vector<32x16xf32>, vector<16x128xf32>, vector<32x128xf32> -> vector<32x128xf32>
    %40 = arith.addf %38, %39 : vector<32x128xf32>
    %41 = arith.addf %40, %17 : vector<32x128xf32>
    %cst_25 = arith.constant 0.000000e+00 : f32
    %42 = vector.broadcast %cst_25 : f32 to vector<32x128xf32>
    %43 = arith.cmpf ogt, %41, %42 : vector<32x128xf32>
    %cst_26 = arith.constant 2.000000e-01 : f32
    %44 = vector.broadcast %cst_26 : f32 to vector<32x128xf32>
    %45 = arith.mulf %44, %41 : vector<32x128xf32>
    %46 = arith.select %43, %41, %45 : vector<32x128xi1>, vector<32x128xf32>
    %c0_27 = arith.constant 0 : index
    %c0_28 = arith.constant 0 : index
    %47 = vector.load %arg9[%c0_27, %c0_28] : memref<1x128xf32, #tpu.memory_space<vmem>>, vector<1x128xf32>
    %48 = vector.broadcast %47 : vector<1x128xf32> to vector<32x128xf32>
    %49 = arith.mulf %46, %48 : vector<32x128xf32>
    %cst_29 = arith.constant dense<0.000000e+00> : vector<32xf32>
    %50 = vector.multi_reduction <add>, %49, %cst_29 [1] : vector<32x128xf32> to vector<32xf32>
    %51 = vector.shape_cast %50 : vector<32xf32> to vector<32x1xf32>
    %52 = vector.broadcast %51 : vector<32x1xf32> to vector<32x16xf32>
    %53 = arith.mulf %52, %25 : vector<32x16xf32>
    %cst_30 = arith.constant dense<0.000000e+00> : vector<8x16xf32>
    %54 = tpu.matmul %37, %53, %cst_30 {dimension_numbers = #tpu.dot_dimension_numbers<[1], [0], [0], [1], [0, 0, 1, 1], [], []>} : vector<8x32xf32>, vector<32x16xf32>, vector<8x16xf32> -> vector<8x16xf32>
    %cst_31 = arith.constant dense<0.000000e+00> : vector<8x16xf32>
    %55 = tpu.matmul %37, %25, %cst_31 {dimension_numbers = #tpu.dot_dimension_numbers<[1], [0], [0], [1], [0, 0, 1, 1], [], []>} : vector<8x32xf32>, vector<32x16xf32>, vector<8x16xf32> -> vector<8x16xf32>
    %cst_32 = arith.constant 5.000000e-01 : f32
    %56 = vector.broadcast %cst_32 : f32 to vector<8x16xf32>
    %57 = arith.cmpf ogt, %55, %56 : vector<8x16xf32>
    %cst_33 = arith.constant -1.000000e+30 : f32
    %58 = vector.broadcast %cst_33 : f32 to vector<8x16xf32>
    %59 = arith.select %57, %54, %58 : vector<8x16xi1>, vector<8x16xf32>
    %cst_34 = arith.constant dense<0xFF800000> : vector<8xf32>
    %60 = vector.multi_reduction <maximumf>, %59, %cst_34 [1] : vector<8x16xf32> to vector<8xf32>
    %61 = vector.shape_cast %60 : vector<8xf32> to vector<8x1xf32>
    %62 = vector.broadcast %61 : vector<8x1xf32> to vector<8x16xf32>
    %63 = arith.subf %59, %62 : vector<8x16xf32>
    %64 = math.exp %63 : vector<8x16xf32>
    %65 = arith.mulf %64, %55 : vector<8x16xf32>
    %cst_35 = arith.constant dense<0.000000e+00> : vector<8xf32>
    %66 = vector.multi_reduction <add>, %65, %cst_35 [1] : vector<8x16xf32> to vector<8xf32>
    %67 = vector.shape_cast %66 : vector<8xf32> to vector<8x1xf32>
    %cst_36 = arith.constant 0.000000e+00 : f32
    %68 = vector.broadcast %cst_36 : f32 to vector<8x1xf32>
    %69 = arith.cmpf ogt, %67, %68 : vector<8x1xf32>
    %cst_37 = arith.constant 1.000000e+00 : f32
    %70 = vector.broadcast %cst_37 : f32 to vector<8x1xf32>
    %71 = arith.select %69, %67, %70 : vector<8x1xi1>, vector<8x1xf32>
    %72 = tpu.reciprocal %71 {approx = true} : vector<8x1xf32> -> vector<8x1xf32>
    %73 = vector.broadcast %72 : vector<8x1xf32> to vector<8x16xf32>
    %74 = arith.mulf %65, %73 : vector<8x16xf32>
    %cst_38 = arith.constant dense<0.000000e+00> : vector<8x128xf32>
    %75 = tpu.matmul %74, %13, %cst_38 {dimension_numbers = #tpu.dot_dimension_numbers<[1], [0], [0], [1], [0, 0, 1, 1], [], []>} : vector<8x16xf32>, vector<16x128xf32>, vector<8x128xf32> -> vector<8x128xf32>
    %c0_39 = arith.constant 0 : index
    %c0_40 = arith.constant 0 : index
    %76 = vector.load %arg10[%c0_39, %c0_40] : memref<1x128xf32, #tpu.memory_space<vmem>>, vector<1x128xf32>
    %77 = vector.broadcast %76 : vector<1x128xf32> to vector<8x128xf32>
    %78 = arith.addf %75, %77 : vector<8x128xf32>
    %79 = vector.extract_strided_slice %6 {offsets = [0, 128], sizes = [16, 128], strides = [1, 1]} : vector<16x384xf32> to vector<16x128xf32>
    %80 = vector.extract_strided_slice %12 {offsets = [0, 128], sizes = [16, 128], strides = [1, 1]} : vector<16x384xf32> to vector<16x128xf32>
    %c0_41 = arith.constant 0 : index
    %c0_42 = arith.constant 0 : index
    %81 = vector.load %arg14[%c0_41, %c0_42] : memref<32x128xf32, #tpu.memory_space<vmem>>, vector<32x128xf32>
    %c0_43 = arith.constant 0 : index
    %c0_44 = arith.constant 0 : index
    %82 = vector.load %arg15[%c0_43, %c0_44] : memref<128x128xf32, #tpu.memory_space<vmem>>, vector<128x128xf32>
    %cst_45 = arith.constant dense<0.000000e+00> : vector<32x128xf32>
    %83 = tpu.matmul %81, %82, %cst_45 {dimension_numbers = #tpu.dot_dimension_numbers<[1], [0], [0], [1], [0, 0, 1, 1], [], []>} : vector<32x128xf32>, vector<128x128xf32>, vector<32x128xf32> -> vector<32x128xf32>
    %c0_46 = arith.constant 0 : index
    %c0_47 = arith.constant 0 : index
    %84 = vector.load %arg18[%c0_46, %c0_47] : memref<32x1xi32, #tpu.memory_space<vmem>>, vector<32x1xi32>
    %c0_48 = arith.constant 0 : index
    %c0_49 = arith.constant 0 : index
    %85 = vector.load %arg19[%c0_48, %c0_49] : memref<32x1xi32, #tpu.memory_space<vmem>>, vector<32x1xi32>
    %c0_50 = arith.constant 0 : index
    %c0_51 = arith.constant 0 : index
    %86 = vector.load %arg20[%c0_50, %c0_51] : memref<1x32xi32, #tpu.memory_space<vmem>>, vector<1x32xi32>
    %87 = tpu.iota {dimensions = array<i32: 1>} : vector<32x16xi32>
    %88 = vector.broadcast %84 : vector<32x1xi32> to vector<32x16xi32>
    %89 = arith.cmpi eq, %87, %88 : vector<32x16xi32>
    %90 = arith.extui %89 : vector<32x16xi1> to vector<32x16xi32>
    %91 = arith.sitofp %90 : vector<32x16xi32> to vector<32x16xf32>
    %92 = tpu.iota {dimensions = array<i32: 1>} : vector<32x16xi32>
    %93 = vector.broadcast %85 : vector<32x1xi32> to vector<32x16xi32>
    %94 = arith.cmpi eq, %92, %93 : vector<32x16xi32>
    %95 = arith.extui %94 : vector<32x16xi1> to vector<32x16xi32>
    %96 = arith.sitofp %95 : vector<32x16xi32> to vector<32x16xf32>
    %97 = tpu.iota {dimensions = array<i32: 0>} : vector<8x32xi32>
    %98 = vector.broadcast %0 : i32 to vector<8x32xi32>
    %99 = arith.addi %97, %98 : vector<8x32xi32>
    %100 = vector.broadcast %86 : vector<1x32xi32> to vector<8x32xi32>
    %101 = arith.cmpi eq, %99, %100 : vector<8x32xi32>
    %102 = arith.extui %101 : vector<8x32xi1> to vector<8x32xi32>
    %103 = arith.sitofp %102 : vector<8x32xi32> to vector<8x32xf32>
    %cst_52 = arith.constant dense<0.000000e+00> : vector<32x128xf32>
    %104 = tpu.matmul %91, %79, %cst_52 {dimension_numbers = #tpu.dot_dimension_numbers<[1], [0], [0], [1], [0, 0, 1, 1], [], []>} : vector<32x16xf32>, vector<16x128xf32>, vector<32x128xf32> -> vector<32x128xf32>
    %cst_53 = arith.constant dense<0.000000e+00> : vector<32x128xf32>
    %105 = tpu.matmul %96, %80, %cst_53 {dimension_numbers = #tpu.dot_dimension_numbers<[1], [0], [0], [1], [0, 0, 1, 1], [], []>} : vector<32x16xf32>, vector<16x128xf32>, vector<32x128xf32> -> vector<32x128xf32>
    %106 = arith.addf %104, %105 : vector<32x128xf32>
    %107 = arith.addf %106, %83 : vector<32x128xf32>
    %cst_54 = arith.constant 0.000000e+00 : f32
    %108 = vector.broadcast %cst_54 : f32 to vector<32x128xf32>
    %109 = arith.cmpf ogt, %107, %108 : vector<32x128xf32>
    %cst_55 = arith.constant 2.000000e-01 : f32
    %110 = vector.broadcast %cst_55 : f32 to vector<32x128xf32>
    %111 = arith.mulf %110, %107 : vector<32x128xf32>
    %112 = arith.select %109, %107, %111 : vector<32x128xi1>, vector<32x128xf32>
    %c0_56 = arith.constant 0 : index
    %c0_57 = arith.constant 0 : index
    %113 = vector.load %arg16[%c0_56, %c0_57] : memref<1x128xf32, #tpu.memory_space<vmem>>, vector<1x128xf32>
    %114 = vector.broadcast %113 : vector<1x128xf32> to vector<32x128xf32>
    %115 = arith.mulf %112, %114 : vector<32x128xf32>
    %cst_58 = arith.constant dense<0.000000e+00> : vector<32xf32>
    %116 = vector.multi_reduction <add>, %115, %cst_58 [1] : vector<32x128xf32> to vector<32xf32>
    %117 = vector.shape_cast %116 : vector<32xf32> to vector<32x1xf32>
    %118 = vector.broadcast %117 : vector<32x1xf32> to vector<32x16xf32>
    %119 = arith.mulf %118, %91 : vector<32x16xf32>
    %cst_59 = arith.constant dense<0.000000e+00> : vector<8x16xf32>
    %120 = tpu.matmul %103, %119, %cst_59 {dimension_numbers = #tpu.dot_dimension_numbers<[1], [0], [0], [1], [0, 0, 1, 1], [], []>} : vector<8x32xf32>, vector<32x16xf32>, vector<8x16xf32> -> vector<8x16xf32>
    %cst_60 = arith.constant dense<0.000000e+00> : vector<8x16xf32>
    %121 = tpu.matmul %103, %91, %cst_60 {dimension_numbers = #tpu.dot_dimension_numbers<[1], [0], [0], [1], [0, 0, 1, 1], [], []>} : vector<8x32xf32>, vector<32x16xf32>, vector<8x16xf32> -> vector<8x16xf32>
    %cst_61 = arith.constant 5.000000e-01 : f32
    %122 = vector.broadcast %cst_61 : f32 to vector<8x16xf32>
    %123 = arith.cmpf ogt, %121, %122 : vector<8x16xf32>
    %cst_62 = arith.constant -1.000000e+30 : f32
    %124 = vector.broadcast %cst_62 : f32 to vector<8x16xf32>
    %125 = arith.select %123, %120, %124 : vector<8x16xi1>, vector<8x16xf32>
    %cst_63 = arith.constant dense<0xFF800000> : vector<8xf32>
    %126 = vector.multi_reduction <maximumf>, %125, %cst_63 [1] : vector<8x16xf32> to vector<8xf32>
    %127 = vector.shape_cast %126 : vector<8xf32> to vector<8x1xf32>
    %128 = vector.broadcast %127 : vector<8x1xf32> to vector<8x16xf32>
    %129 = arith.subf %125, %128 : vector<8x16xf32>
    %130 = math.exp %129 : vector<8x16xf32>
    %131 = arith.mulf %130, %121 : vector<8x16xf32>
    %cst_64 = arith.constant dense<0.000000e+00> : vector<8xf32>
    %132 = vector.multi_reduction <add>, %131, %cst_64 [1] : vector<8x16xf32> to vector<8xf32>
    %133 = vector.shape_cast %132 : vector<8xf32> to vector<8x1xf32>
    %cst_65 = arith.constant 0.000000e+00 : f32
    %134 = vector.broadcast %cst_65 : f32 to vector<8x1xf32>
    %135 = arith.cmpf ogt, %133, %134 : vector<8x1xf32>
    %cst_66 = arith.constant 1.000000e+00 : f32
    %136 = vector.broadcast %cst_66 : f32 to vector<8x1xf32>
    %137 = arith.select %135, %133, %136 : vector<8x1xi1>, vector<8x1xf32>
    %138 = tpu.reciprocal %137 {approx = true} : vector<8x1xf32> -> vector<8x1xf32>
    %139 = vector.broadcast %138 : vector<8x1xf32> to vector<8x16xf32>
    %140 = arith.mulf %131, %139 : vector<8x16xf32>
    %cst_67 = arith.constant dense<0.000000e+00> : vector<8x128xf32>
    %141 = tpu.matmul %140, %79, %cst_67 {dimension_numbers = #tpu.dot_dimension_numbers<[1], [0], [0], [1], [0, 0, 1, 1], [], []>} : vector<8x16xf32>, vector<16x128xf32>, vector<8x128xf32> -> vector<8x128xf32>
    %c0_68 = arith.constant 0 : index
    %c0_69 = arith.constant 0 : index
    %142 = vector.load %arg17[%c0_68, %c0_69] : memref<1x128xf32, #tpu.memory_space<vmem>>, vector<1x128xf32>
    %143 = vector.broadcast %142 : vector<1x128xf32> to vector<8x128xf32>
    %144 = arith.addf %141, %143 : vector<8x128xf32>
    %145 = vector.extract_strided_slice %12 {offsets = [0, 256], sizes = [16, 128], strides = [1, 1]} : vector<16x384xf32> to vector<16x128xf32>
    %146 = vector.extract_strided_slice %6 {offsets = [0, 256], sizes = [16, 128], strides = [1, 1]} : vector<16x384xf32> to vector<16x128xf32>
    %c0_70 = arith.constant 0 : index
    %c0_71 = arith.constant 0 : index
    %147 = vector.load %arg21[%c0_70, %c0_71] : memref<32x128xf32, #tpu.memory_space<vmem>>, vector<32x128xf32>
    %c0_72 = arith.constant 0 : index
    %c0_73 = arith.constant 0 : index
    %148 = vector.load %arg22[%c0_72, %c0_73] : memref<128x128xf32, #tpu.memory_space<vmem>>, vector<128x128xf32>
    %cst_74 = arith.constant dense<0.000000e+00> : vector<32x128xf32>
    %149 = tpu.matmul %147, %148, %cst_74 {dimension_numbers = #tpu.dot_dimension_numbers<[1], [0], [0], [1], [0, 0, 1, 1], [], []>} : vector<32x128xf32>, vector<128x128xf32>, vector<32x128xf32> -> vector<32x128xf32>
    %c0_75 = arith.constant 0 : index
    %c0_76 = arith.constant 0 : index
    %150 = vector.load %arg25[%c0_75, %c0_76] : memref<32x1xi32, #tpu.memory_space<vmem>>, vector<32x1xi32>
    %c0_77 = arith.constant 0 : index
    %c0_78 = arith.constant 0 : index
    %151 = vector.load %arg26[%c0_77, %c0_78] : memref<32x1xi32, #tpu.memory_space<vmem>>, vector<32x1xi32>
    %c0_79 = arith.constant 0 : index
    %c0_80 = arith.constant 0 : index
    %152 = vector.load %arg27[%c0_79, %c0_80] : memref<1x32xi32, #tpu.memory_space<vmem>>, vector<1x32xi32>
    %153 = tpu.iota {dimensions = array<i32: 1>} : vector<32x16xi32>
    %154 = vector.broadcast %150 : vector<32x1xi32> to vector<32x16xi32>
    %155 = arith.cmpi eq, %153, %154 : vector<32x16xi32>
    %156 = arith.extui %155 : vector<32x16xi1> to vector<32x16xi32>
    %157 = arith.sitofp %156 : vector<32x16xi32> to vector<32x16xf32>
    %158 = tpu.iota {dimensions = array<i32: 1>} : vector<32x16xi32>
    %159 = vector.broadcast %151 : vector<32x1xi32> to vector<32x16xi32>
    %160 = arith.cmpi eq, %158, %159 : vector<32x16xi32>
    %161 = arith.extui %160 : vector<32x16xi1> to vector<32x16xi32>
    %162 = arith.sitofp %161 : vector<32x16xi32> to vector<32x16xf32>
    %163 = tpu.iota {dimensions = array<i32: 0>} : vector<8x32xi32>
    %164 = vector.broadcast %0 : i32 to vector<8x32xi32>
    %165 = arith.addi %163, %164 : vector<8x32xi32>
    %166 = vector.broadcast %152 : vector<1x32xi32> to vector<8x32xi32>
    %167 = arith.cmpi eq, %165, %166 : vector<8x32xi32>
    %168 = arith.extui %167 : vector<8x32xi1> to vector<8x32xi32>
    %169 = arith.sitofp %168 : vector<8x32xi32> to vector<8x32xf32>
    %cst_81 = arith.constant dense<0.000000e+00> : vector<32x128xf32>
    %170 = tpu.matmul %157, %145, %cst_81 {dimension_numbers = #tpu.dot_dimension_numbers<[1], [0], [0], [1], [0, 0, 1, 1], [], []>} : vector<32x16xf32>, vector<16x128xf32>, vector<32x128xf32> -> vector<32x128xf32>
    %cst_82 = arith.constant dense<0.000000e+00> : vector<32x128xf32>
    %171 = tpu.matmul %162, %146, %cst_82 {dimension_numbers = #tpu.dot_dimension_numbers<[1], [0], [0], [1], [0, 0, 1, 1], [], []>} : vector<32x16xf32>, vector<16x128xf32>, vector<32x128xf32> -> vector<32x128xf32>
    %172 = arith.addf %170, %171 : vector<32x128xf32>
    %173 = arith.addf %172, %149 : vector<32x128xf32>
    %cst_83 = arith.constant 0.000000e+00 : f32
    %174 = vector.broadcast %cst_83 : f32 to vector<32x128xf32>
    %175 = arith.cmpf ogt, %173, %174 : vector<32x128xf32>
    %cst_84 = arith.constant 2.000000e-01 : f32
    %176 = vector.broadcast %cst_84 : f32 to vector<32x128xf32>
    %177 = arith.mulf %176, %173 : vector<32x128xf32>
    %178 = arith.select %175, %173, %177 : vector<32x128xi1>, vector<32x128xf32>
    %c0_85 = arith.constant 0 : index
    %c0_86 = arith.constant 0 : index
    %179 = vector.load %arg23[%c0_85, %c0_86] : memref<1x128xf32, #tpu.memory_space<vmem>>, vector<1x128xf32>
    %180 = vector.broadcast %179 : vector<1x128xf32> to vector<32x128xf32>
    %181 = arith.mulf %178, %180 : vector<32x128xf32>
    %cst_87 = arith.constant dense<0.000000e+00> : vector<32xf32>
    %182 = vector.multi_reduction <add>, %181, %cst_87 [1] : vector<32x128xf32> to vector<32xf32>
    %183 = vector.shape_cast %182 : vector<32xf32> to vector<32x1xf32>
    %184 = vector.broadcast %183 : vector<32x1xf32> to vector<32x16xf32>
    %185 = arith.mulf %184, %157 : vector<32x16xf32>
    %cst_88 = arith.constant dense<0.000000e+00> : vector<8x16xf32>
    %186 = tpu.matmul %169, %185, %cst_88 {dimension_numbers = #tpu.dot_dimension_numbers<[1], [0], [0], [1], [0, 0, 1, 1], [], []>} : vector<8x32xf32>, vector<32x16xf32>, vector<8x16xf32> -> vector<8x16xf32>
    %cst_89 = arith.constant dense<0.000000e+00> : vector<8x16xf32>
    %187 = tpu.matmul %169, %157, %cst_89 {dimension_numbers = #tpu.dot_dimension_numbers<[1], [0], [0], [1], [0, 0, 1, 1], [], []>} : vector<8x32xf32>, vector<32x16xf32>, vector<8x16xf32> -> vector<8x16xf32>
    %cst_90 = arith.constant 5.000000e-01 : f32
    %188 = vector.broadcast %cst_90 : f32 to vector<8x16xf32>
    %189 = arith.cmpf ogt, %187, %188 : vector<8x16xf32>
    %cst_91 = arith.constant -1.000000e+30 : f32
    %190 = vector.broadcast %cst_91 : f32 to vector<8x16xf32>
    %191 = arith.select %189, %186, %190 : vector<8x16xi1>, vector<8x16xf32>
    %cst_92 = arith.constant dense<0xFF800000> : vector<8xf32>
    %192 = vector.multi_reduction <maximumf>, %191, %cst_92 [1] : vector<8x16xf32> to vector<8xf32>
    %193 = vector.shape_cast %192 : vector<8xf32> to vector<8x1xf32>
    %194 = vector.broadcast %193 : vector<8x1xf32> to vector<8x16xf32>
    %195 = arith.subf %191, %194 : vector<8x16xf32>
    %196 = math.exp %195 : vector<8x16xf32>
    %197 = arith.mulf %196, %187 : vector<8x16xf32>
    %cst_93 = arith.constant dense<0.000000e+00> : vector<8xf32>
    %198 = vector.multi_reduction <add>, %197, %cst_93 [1] : vector<8x16xf32> to vector<8xf32>
    %199 = vector.shape_cast %198 : vector<8xf32> to vector<8x1xf32>
    %cst_94 = arith.constant 0.000000e+00 : f32
    %200 = vector.broadcast %cst_94 : f32 to vector<8x1xf32>
    %201 = arith.cmpf ogt, %199, %200 : vector<8x1xf32>
    %cst_95 = arith.constant 1.000000e+00 : f32
    %202 = vector.broadcast %cst_95 : f32 to vector<8x1xf32>
    %203 = arith.select %201, %199, %202 : vector<8x1xi1>, vector<8x1xf32>
    %204 = tpu.reciprocal %203 {approx = true} : vector<8x1xf32> -> vector<8x1xf32>
    %205 = vector.broadcast %204 : vector<8x1xf32> to vector<8x16xf32>
    %206 = arith.mulf %197, %205 : vector<8x16xf32>
    %cst_96 = arith.constant dense<0.000000e+00> : vector<8x128xf32>
    %207 = tpu.matmul %206, %145, %cst_96 {dimension_numbers = #tpu.dot_dimension_numbers<[1], [0], [0], [1], [0, 0, 1, 1], [], []>} : vector<8x16xf32>, vector<16x128xf32>, vector<8x128xf32> -> vector<8x128xf32>
    %c0_97 = arith.constant 0 : index
    %c0_98 = arith.constant 0 : index
    %208 = vector.load %arg24[%c0_97, %c0_98] : memref<1x128xf32, #tpu.memory_space<vmem>>, vector<1x128xf32>
    %209 = vector.broadcast %208 : vector<1x128xf32> to vector<8x128xf32>
    %210 = arith.addf %207, %209 : vector<8x128xf32>
    %cst_99 = arith.constant 1.000000e+00 : f32
    %211 = vector.broadcast %cst_99 : f32 to vector<8x128xf32>
    %212 = arith.mulf %210, %211 : vector<8x128xf32>
    %cst_100 = arith.constant 0.000000e+00 : f32
    %213 = vector.broadcast %cst_100 : f32 to vector<8x128xf32>
    %214 = arith.maximumf %212, %213 : vector<8x128xf32>
    %c0_101 = arith.constant 0 : index
    %c0_102 = arith.constant 0 : index
    %215 = vector.load %arg28[%c0_101, %c0_102] : memref<1x128xf32, #tpu.memory_space<vmem>>, vector<1x128xf32>
    %216 = vector.broadcast %215 : vector<1x128xf32> to vector<8x128xf32>
    %217 = arith.mulf %214, %216 : vector<8x128xf32>
    %c0_103 = arith.constant 0 : index
    %c0_104 = arith.constant 0 : index
    %218 = vector.load %arg29[%c0_103, %c0_104] : memref<1x128xf32, #tpu.memory_space<vmem>>, vector<1x128xf32>
    %219 = vector.broadcast %218 : vector<1x128xf32> to vector<8x128xf32>
    %220 = arith.addf %217, %219 : vector<8x128xf32>
    %c0_105 = arith.constant 0 : index
    %c0_106 = arith.constant 0 : index
    %221 = vector.load %arg32[%c0_105, %c0_106] : memref<8x128xf32, #tpu.memory_space<vmem>>, vector<8x128xf32>
    tpu.vector_store %arg32[%c0_105, %c0_106], %220 {strides = array<i32>} : memref<8x128xf32, #tpu.memory_space<vmem>>, vector<8x128xf32>,
    %222 = arith.addf %78, %144 : vector<8x128xf32>
    %cst_107 = arith.constant 5.000000e-01 : f32
    %223 = vector.broadcast %cst_107 : f32 to vector<8x128xf32>
    %224 = arith.mulf %222, %223 : vector<8x128xf32>
    %cst_108 = arith.constant 0.000000e+00 : f32
    %225 = vector.broadcast %cst_108 : f32 to vector<8x128xf32>
    %226 = arith.maximumf %224, %225 : vector<8x128xf32>
    %c0_109 = arith.constant 0 : index
    %c0_110 = arith.constant 0 : index
    %227 = vector.load %arg30[%c0_109, %c0_110] : memref<1x128xf32, #tpu.memory_space<vmem>>, vector<1x128xf32>
    %228 = vector.broadcast %227 : vector<1x128xf32> to vector<8x128xf32>
    %229 = arith.mulf %226, %228 : vector<8x128xf32>
    %c0_111 = arith.constant 0 : index
    %c0_112 = arith.constant 0 : index
    %230 = vector.load %arg31[%c0_111, %c0_112] : memref<1x128xf32, #tpu.memory_space<vmem>>, vector<1x128xf32>
    %231 = vector.broadcast %230 : vector<1x128xf32> to vector<8x128xf32>
    %232 = arith.addf %229, %231 : vector<8x128xf32>
    %c0_113 = arith.constant 0 : index
    %c0_114 = arith.constant 0 : index
    %233 = vector.load %arg33[%c0_113, %c0_114] : memref<8x128xf32, #tpu.memory_space<vmem>>, vector<8x128xf32>
    tpu.vector_store %arg33[%c0_113, %c0_114], %232 {strides = array<i32>} : memref<8x128xf32, #tpu.memory_space<vmem>>, vector<8x128xf32>,
    return
  }
  func.func @transform_0(%arg0: i32) -> (i32, i32) {
    %c0_i32 = arith.constant 0 : i32
    %c0_i32_0 = arith.constant 0 : i32
    %c0_i32_1 = arith.constant 0 : i32
    return %c0_i32, %c0_i32_0 : i32, i32
  }
  func.func @transform_1(%arg0: i32) -> (i32, i32) {
    %c0_i32 = arith.constant 0 : i32
    %c0_i32_0 = arith.constant 0 : i32
    %c0_i32_1 = arith.constant 0 : i32
    return %c0_i32, %c0_i32_0 : i32, i32
  }
  func.func @transform_2(%arg0: i32) -> (i32, i32) {
    %c0_i32 = arith.constant 0 : i32
    %c0_i32_0 = arith.constant 0 : i32
    %c0_i32_1 = arith.constant 0 : i32
    return %c0_i32, %c0_i32_0 : i32, i32
  }
  func.func @transform_3(%arg0: i32) -> (i32, i32) {
    %c0_i32 = arith.constant 0 : i32
    %c0_i32_0 = arith.constant 0 : i32
    %c0_i32_1 = arith.constant 0 : i32
    return %c0_i32, %c0_i32_0 : i32, i32
  }
  func.func @transform_4(%arg0: i32) -> (i32, i32) {
    %c0_i32 = arith.constant 0 : i32
    %c0_i32_0 = arith.constant 0 : i32
    %c0_i32_1 = arith.constant 0 : i32
    return %c0_i32, %c0_i32_0 : i32, i32
  }
  func.func @transform_5(%arg0: i32) -> (i32, i32) {
    %c0_i32 = arith.constant 0 : i32
    %c0_i32_0 = arith.constant 0 : i32
    %c0_i32_1 = arith.constant 0 : i32
    return %c0_i32, %c0_i32_0 : i32, i32
  }
  func.func @transform_6(%arg0: i32) -> (i32, i32) {
    %c0_i32 = arith.constant 0 : i32
    %c0_i32_0 = arith.constant 0 : i32
    %c0_i32_1 = arith.constant 0 : i32
    return %c0_i32, %c0_i32_0 : i32, i32
  }
  func.func @transform_7(%arg0: i32) -> (i32, i32) {
    %c0_i32 = arith.constant 0 : i32
    %c0_i32_0 = arith.constant 0 : i32
    %c0_i32_1 = arith.constant 0 : i32
    return %c0_i32, %c0_i32_0 : i32, i32
  }
  func.func @transform_8(%arg0: i32) -> (i32, i32) {
    %c0_i32 = arith.constant 0 : i32
    %c0_i32_0 = arith.constant 0 : i32
    %c0_i32_1 = arith.constant 0 : i32
    return %c0_i32, %c0_i32_0 : i32, i32
  }
  func.func @transform_9(%arg0: i32) -> (i32, i32) {
    %c0_i32 = arith.constant 0 : i32
    %c0_i32_0 = arith.constant 0 : i32
    %c0_i32_1 = arith.constant 0 : i32
    return %c0_i32, %c0_i32_0 : i32, i32
  }
  func.func @transform_10(%arg0: i32) -> (i32, i32) {
    %c0_i32 = arith.constant 0 : i32
    %c0_i32_0 = arith.constant 0 : i32
    %c0_i32_1 = arith.constant 0 : i32
    return %c0_i32, %c0_i32_0 : i32, i32
  }
  func.func @transform_11(%arg0: i32) -> (i32, i32) {
    %c0_i32 = arith.constant 0 : i32
    %c0_i32_0 = arith.constant 0 : i32
    %c0_i32_1 = arith.constant 0 : i32
    return %c0_i32, %c0_i32_0 : i32, i32
  }
  func.func @transform_12(%arg0: i32) -> (i32, i32) {
    %c0_i32 = arith.constant 0 : i32
    %c0_i32_0 = arith.constant 0 : i32
    %c0_i32_1 = arith.constant 0 : i32
    return %c0_i32, %c0_i32_0 : i32, i32
  }
  func.func @transform_13(%arg0: i32) -> (i32, i32) {
    %c0_i32 = arith.constant 0 : i32
    %c0_i32_0 = arith.constant 0 : i32
    %c0_i32_1 = arith.constant 0 : i32
    return %c0_i32, %c0_i32_0 : i32, i32
  }
  func.func @transform_14(%arg0: i32) -> (i32, i32) {
    %c0_i32 = arith.constant 0 : i32
    %c0_i32_0 = arith.constant 0 : i32
    %c0_i32_1 = arith.constant 0 : i32
    return %c0_i32, %c0_i32_0 : i32, i32
  }
  func.func @transform_15(%arg0: i32) -> (i32, i32) {
    %c0_i32 = arith.constant 0 : i32
    %c0_i32_0 = arith.constant 0 : i32
    %c0_i32_1 = arith.constant 0 : i32
    return %c0_i32, %c0_i32_0 : i32, i32
  }
  func.func @transform_16(%arg0: i32) -> (i32, i32) {
    %c0_i32 = arith.constant 0 : i32
    %c0_i32_0 = arith.constant 0 : i32
    %c0_i32_1 = arith.constant 0 : i32
    return %c0_i32, %c0_i32_0 : i32, i32
  }
  func.func @transform_17(%arg0: i32) -> (i32, i32) {
    %c0_i32 = arith.constant 0 : i32
    %c0_i32_0 = arith.constant 0 : i32
    %c0_i32_1 = arith.constant 0 : i32
    return %c0_i32, %c0_i32_0 : i32, i32
  }
  func.func @transform_18(%arg0: i32) -> (i32, i32) {
    %c0_i32 = arith.constant 0 : i32
    %c0_i32_0 = arith.constant 0 : i32
    %c0_i32_1 = arith.constant 0 : i32
    return %c0_i32, %c0_i32_0 : i32, i32
  }
  func.func @transform_19(%arg0: i32) -> (i32, i32) {
    %c0_i32 = arith.constant 0 : i32
    %c0_i32_0 = arith.constant 0 : i32
    %c0_i32_1 = arith.constant 0 : i32
    return %c0_i32, %c0_i32_0 : i32, i32
  }
  func.func @transform_20(%arg0: i32) -> (i32, i32) {
    %c0_i32 = arith.constant 0 : i32
    %c0_i32_0 = arith.constant 0 : i32
    %c0_i32_1 = arith.constant 0 : i32
    return %c0_i32, %c0_i32_0 : i32, i32
  }
  func.func @transform_21(%arg0: i32) -> (i32, i32) {
    %c0_i32 = arith.constant 0 : i32
    %c0_i32_0 = arith.constant 0 : i32
    %c0_i32_1 = arith.constant 0 : i32
    return %c0_i32, %c0_i32_0 : i32, i32
  }
  func.func @transform_22(%arg0: i32) -> (i32, i32) {
    %c0_i32 = arith.constant 0 : i32
    %c0_i32_0 = arith.constant 0 : i32
    %c0_i32_1 = arith.constant 0 : i32
    return %c0_i32, %c0_i32_0 : i32, i32
  }
  func.func @transform_23(%arg0: i32) -> (i32, i32) {
    %c0_i32 = arith.constant 0 : i32
    %c0_i32_0 = arith.constant 0 : i32
    %c0_i32_1 = arith.constant 0 : i32
    return %c0_i32, %c0_i32_0 : i32, i32
  }
  func.func @transform_24(%arg0: i32) -> (i32, i32) {
    %c0_i32 = arith.constant 0 : i32
    %c0_i32_0 = arith.constant 0 : i32
    %c0_i32_1 = arith.constant 0 : i32
    return %c0_i32, %c0_i32_0 : i32, i32
  }
  func.func @transform_25(%arg0: i32) -> (i32, i32) {
    %c0_i32 = arith.constant 0 : i32
    %c0_i32_0 = arith.constant 0 : i32
    %c0_i32_1 = arith.constant 0 : i32
    return %c0_i32, %c0_i32_0 : i32, i32
  }
  func.func @transform_26(%arg0: i32) -> (i32, i32) {
    %c0_i32 = arith.constant 0 : i32
    %c0_i32_0 = arith.constant 0 : i32
    %c0_i32_1 = arith.constant 0 : i32
    return %c0_i32, %c0_i32_0 : i32, i32
  }
  func.func @transform_27(%arg0: i32) -> (i32, i32) {
    %c0_i32 = arith.constant 0 : i32
    %c0_i32_0 = arith.constant 0 : i32
    %c0_i32_1 = arith.constant 0 : i32
    return %c0_i32, %c0_i32_0 : i32, i32
  }
  func.func @transform_28(%arg0: i32) -> (i32, i32) {
    %c0_i32 = arith.constant 0 : i32
    %c0_i32_0 = arith.constant 0 : i32
    %c0_i32_1 = arith.constant 0 : i32
    return %c0_i32, %c0_i32_0 : i32, i32
  }
  func.func @transform_29(%arg0: i32) -> (i32, i32) {
    %c0_i32 = arith.constant 0 : i32
    %c0_i32_0 = arith.constant 0 : i32
    %c0_i32_1 = arith.constant 0 : i32
    return %c0_i32, %c0_i32_0 : i32, i32
  }
  func.func @transform_30(%arg0: i32) -> (i32, i32) {
    %c0_i32 = arith.constant 0 : i32
    %c0_i32_0 = arith.constant 0 : i32
    %c0_i32_1 = arith.constant 0 : i32
    return %c0_i32, %c0_i32_0 : i32, i32
  }
  func.func @transform_31(%arg0: i32) -> (i32, i32) {
    %c0_i32 = arith.constant 0 : i32
    %c0_i32_0 = arith.constant 0 : i32
    return %arg0, %c0_i32 : i32, i32
  }
  func.func @transform_32(%arg0: i32) -> (i32, i32) {
    %c0_i32 = arith.constant 0 : i32
    %c0_i32_0 = arith.constant 0 : i32
    return %arg0, %c0_i32 : i32, i32
  }
}

</mosaic_0001>

<llo_original>
// kernel: tpu_custom_call.1
$region0: #{tpu_custom_call.1}
  #allocation0 [shape = 'u32[]', space=smem, size = 0x4, offset = 0x4, fixed_abs, tag = 'smem constant byte address 0x4 - core index']
  #allocation1 [shape = 'u32[72,128]{1,0:T(1,128)}', space=vmem, size = 0x9000, scoped, tag = 'internal scratch']
  %s0 = inlined_call_operand.smem [shape: u32[33], index: -1, kind: input, shape index: {}]
  %s1 = sld [smem:[%s0]]
  %s2 = scalar_lea.smem %s0, 1
  %s3 = sld [smem:[%s2]]
  %s4 = scalar_lea.smem %s0, 2
  %s5 = sld [smem:[%s4]]
  %s6 = scalar_lea.smem %s0, 3
  %s7 = sld [smem:[%s6]]
  %s8 = scalar_lea.smem %s0, 4
  %s9 = sld [smem:[%s8]]
  %s10 = scalar_lea.smem %s0, 5
  %s11 = sld [smem:[%s10]]
  %s12 = scalar_lea.smem %s0, 6
  %s13 = sld [smem:[%s12]]
  %s14 = scalar_lea.smem %s0, 7
  %s15 = sld [smem:[%s14]]
  %s16 = scalar_lea.smem %s0, 8
  %s17 = sld [smem:[%s16]]
  %s18 = scalar_lea.smem %s0, 9
  %s19 = sld [smem:[%s18]]
  %s20 = scalar_lea.smem %s0, 10
  %s21 = sld [smem:[%s20]]
  %s22 = scalar_lea.smem %s0, 11
  %s23 = sld [smem:[%s22]]
  %s24 = scalar_lea.smem %s0, 12
  %s25 = sld [smem:[%s24]]
  %s26 = scalar_lea.smem %s0, 13
  %s27 = sld [smem:[%s26]]
  %s28 = scalar_lea.smem %s0, 14
  %s29 = sld [smem:[%s28]]
  %s30 = scalar_lea.smem %s0, 15
  %s31 = sld [smem:[%s30]]
  %s32 = scalar_lea.smem %s0, 16
  %s33 = sld [smem:[%s32]]
  %s34 = scalar_lea.smem %s0, 17
  %s35 = sld [smem:[%s34]]
  %s36 = scalar_lea.smem %s0, 18
  %s37 = sld [smem:[%s36]]
  %s38 = scalar_lea.smem %s0, 19
  %s39 = sld [smem:[%s38]]
  %s40 = scalar_lea.smem %s0, 20
  %s41 = sld [smem:[%s40]]
  %s42 = scalar_lea.smem %s0, 21
  %s43 = sld [smem:[%s42]]
  %s44 = scalar_lea.smem %s0, 22
  %s45 = sld [smem:[%s44]]
  %s46 = scalar_lea.smem %s0, 23
  %s47 = sld [smem:[%s46]]
  %s48 = scalar_lea.smem %s0, 24
  %s49 = sld [smem:[%s48]]
  %s50 = scalar_lea.smem %s0, 25
  %s51 = sld [smem:[%s50]]
  %s52 = scalar_lea.smem %s0, 26
  %s53 = sld [smem:[%s52]]
  %s54 = scalar_lea.smem %s0, 27
  %s55 = sld [smem:[%s54]]
  %s56 = scalar_lea.smem %s0, 28
  %s57 = sld [smem:[%s56]]
  %s58 = scalar_lea.smem %s0, 29
  %s59 = sld [smem:[%s58]]
  %s60 = scalar_lea.smem %s0, 30
  %s61 = sld [smem:[%s60]]
  %s62 = scalar_lea.smem %s0, 31
  %s63 = sld [smem:[%s62]]
  %s64 = scalar_lea.smem %s0, 32
  %s65 = sld [smem:[%s64]]
  %66 = xla_tuple %s63, %s65
  %s67 = sld [smem:[#allocation0]]
  $region185: #{tpu_custom_call.1} parent=0
    _
  %s69 = ssub.s32 1, %s67
  %s70 = scalar_select 0, %s69, %s67
  $region1: #{tpu_custom_call.1} parent=0
    #allocation2 [shape = 'u8[196608]{0}', space=vmem, size = 0x30000, scoped, tag = 'input window, operand 1, single buffered']
    #allocation3 [shape = 's32[2]{0}', space=sflag, size = 0x8, scoped, tag = 'scoped memory for tpu_custom_call.1']
    #allocation4 [shape = 's32[2]{0}', space=sflag, size = 0x8, scoped, tag = 'scoped memory for tpu_custom_call.1']
    #allocation5 [shape = 'u8[196608]{0}', space=vmem, size = 0x30000, scoped, tag = 'input window, operand 4, single buffered']
    #allocation6 [shape = 's32[1]{0}', space=sflag, size = 0x4, scoped, tag = 'scoped memory for tpu_custom_call.1']
    #allocation7 [shape = 'u8[65536]{0}', space=vmem, size = 0x10000, scoped, tag = 'input window, operand 7, single buffered']
    #allocation8 [shape = 'u8[65536]{0}', space=vmem, size = 0x10000, scoped, tag = 'input window, operand 14, single buffered']
    #allocation9 [shape = 's32[1]{0}', space=sflag, size = 0x4, scoped, tag = 'scoped memory for tpu_custom_call.1']
    #allocation10 [shape = 'u8[65536]{0}', space=vmem, size = 0x10000, scoped, tag = 'input window, operand 21, single buffered']
    #allocation11 [shape = 'u8[8192]{0}', space=vmem, size = 0x2000, scoped, tag = 'output window, operand 0']
    #allocation12 [shape = 'u8[8192]{0}', space=vmem, size = 0x2000, scoped, tag = 'output window, operand 1']
    #allocation13 [shape = 's32[2]{0}', space=sflag, size = 0x8, scoped, tag = 'scoped memory for tpu_custom_call.1']
    %71 = vsyncpa [#allocation3], 0
    %72 = vsyncpa [#allocation6], 0
    %73 = vsyncpa [#allocation9], 0
    %74 = vsyncpa [#allocation4], 0
    %s75 = scalar_lea.sflag [#allocation4], 1
    %76 = vsyncpa %s75, 0
    %77 = vsyncpa [#allocation13], 0
    %s78 = scalar_lea.sflag [#allocation13], 1
    %79 = vsyncpa %s78, 0
    loop: start=0, step=1, limit=4
    $region2: #{tpu_custom_call.1} parent=1 // loop_pre_header
      _
    $region3: #{tpu_custom_call.1} parent=1 // loop_header
      %s81 = sphi 0, %s85
      %p82 = scmp.ge.s32.totalorder %s81, 4
      %s89 = sphi 0, %s89
      %s91 = sphi 0, %s89
      %s92 = sphi 0, %s91
      %s106 = sphi 0, %s92
      %s110 = sphi 0, %s110
      %s112 = sphi 0, %s110
      %s113 = sphi 0, %s112
      %s127 = sphi 0, %s113
      %s131 = sphi 0, %s131
      %s133 = sphi 0, %s131
      %s134 = sphi 0, %s133
      %s148 = sphi 0, %s134
      %s152 = sphi 0, %s152
      %s154 = sphi 0, %s152
      %s155 = sphi 0, %s154
      %s169 = sphi 0, %s155
      %s173 = sphi 0, %s173
      %s175 = sphi 0, %s173
      %s176 = sphi 0, %s175
      %s190 = sphi 0, %s176
      %s194 = sphi 0, %s194
      %s196 = sphi 0, %s194
      %s197 = sphi 0, %s196
      %s211 = sphi 0, %s197
      %s215 = sphi 0, %s215
      %s217 = sphi 0, %s215
      %s218 = sphi 0, %s217
      %s232 = sphi 0, %s218
      %s236 = sphi 0, %s236
      %s238 = sphi 0, %s236
      %s239 = sphi 0, %s238
      %s253 = sphi 0, %s239
      %s257 = sphi 0, %s257
      %s259 = sphi 0, %s257
      %s260 = sphi 0, %s259
      %s274 = sphi 0, %s260
      %s278 = sphi 0, %s278
      %s280 = sphi 0, %s278
      %s281 = sphi 0, %s280
      %s295 = sphi 0, %s281
      %s299 = sphi 0, %s299
      %s301 = sphi 0, %s299
      %s302 = sphi 0, %s301
      %s316 = sphi 0, %s302
      %s320 = sphi 0, %s320
      %s322 = sphi 0, %s320
      %s323 = sphi 0, %s322
      %s337 = sphi 0, %s323
      %s341 = sphi 0, %s341
      %s343 = sphi 0, %s341
      %s344 = sphi 0, %s343
      %s358 = sphi 0, %s344
      %s362 = sphi 0, %s362
      %s364 = sphi 0, %s362
      %s365 = sphi 0, %s364
      %s379 = sphi 0, %s365
      %s383 = sphi 0, %s383
      %s385 = sphi 0, %s383
      %s386 = sphi 0, %s385
      %s400 = sphi 0, %s386
      %s404 = sphi 0, %s404
      %s406 = sphi 0, %s404
      %s407 = sphi 0, %s406
      %s421 = sphi 0, %s407
      %s425 = sphi 0, %s425
      %s427 = sphi 0, %s425
      %s428 = sphi 0, %s427
      %s442 = sphi 0, %s428
      %s446 = sphi 0, %s446
      %s448 = sphi 0, %s446
      %s449 = sphi 0, %s448
      %s463 = sphi 0, %s449
      %s467 = sphi 0, %s467
      %s469 = sphi 0, %s467
      %s470 = sphi 0, %s469
      %s484 = sphi 0, %s470
      %s488 = sphi 0, %s488
      %s490 = sphi 0, %s488
      %s491 = sphi 0, %s490
      %s505 = sphi 0, %s491
      %s509 = sphi 0, %s509
      %s511 = sphi 0, %s509
      %s512 = sphi 0, %s511
      %s526 = sphi 0, %s512
      %s530 = sphi 0, %s530
      %s532 = sphi 0, %s530
      %s533 = sphi 0, %s532
      %s547 = sphi 0, %s533
      %s551 = sphi 0, %s551
      %s553 = sphi 0, %s551
      %s554 = sphi 0, %s553
      %s568 = sphi 0, %s554
      %s572 = sphi 0, %s572
      %s574 = sphi 0, %s572
      %s575 = sphi 0, %s574
      %s589 = sphi 0, %s575
      %s593 = sphi 0, %s593
      %s595 = sphi 0, %s593
      %s596 = sphi 0, %s595
      %s610 = sphi 0, %s596
      %s614 = sphi 0, %s614
      %s616 = sphi 0, %s614
      %s617 = sphi 0, %s616
      %s631 = sphi 0, %s617
      %s635 = sphi 0, %s635
      %s637 = sphi 0, %s635
      %s638 = sphi 0, %s637
      %s652 = sphi 0, %s638
      %s656 = sphi 0, %s656
      %s658 = sphi 0, %s656
      %s659 = sphi 0, %s658
      %s673 = sphi 0, %s659
      %s677 = sphi 0, %s677
      %s679 = sphi 0, %s677
      %s680 = sphi 0, %s679
      %s694 = sphi 0, %s680
      %s698 = sphi 0, %s698
      %s700 = sphi 0, %s698
      %s701 = sphi 0, %s700
      %s715 = sphi 0, %s701
      %s719 = sphi 0, %s719
      %s721 = sphi 0, %s719
      %s722 = sphi 0, %s721
      %s736 = sphi 0, %s722
      %s742 = sphi 0, %s744
      %s745 = sphi 0, %s742
      %s746 = sphi 0, %s745
      %s762 = sphi 0, %s746
      %s768 = sphi 0, %s770
      %s771 = sphi 0, %s768
      %s772 = sphi 0, %s771
      %s788 = sphi 0, %s772
    $region4: #{tpu_custom_call.1} parent=1 // loop_header_branch
      %84 = sbr.rel (%p82) target = $region8
    $region5: #{tpu_custom_call.1} parent=1 // loop_body
      %s86 = ssub.s32 %s81, 1
      %s87 = ssub.s32 %s81, 2
      %s88 = sadd.s32 %s81, 1
      %s90 = sadd.s32 %s89, 1
      %p93 = scmp.eq.s32.totalorder %s81, 1
      %p94 = scmp.ne.s32.totalorder %s89, %s91
      %p95 = scmp.eq.s32.totalorder %s81, 0
      %p96 = por %p94, %p95
      %p97 = scmp.ne.s32.totalorder %s89, %s91
      %p98 = scmp.eq.s32.totalorder %s86, 1
      %p99 = por %p97, %p98
      %p100 = scmp.ne.s32.totalorder %s91, %s92
      %p101 = scmp.eq.s32.totalorder %s86, 0
      %p102 = por %p100, %p101
      %p103 = scmp.ne.s32.totalorder %s91, %s92
      %p104 = scmp.eq.s32.totalorder %s87, 1
      %p105 = por %p103, %p104
      %p107 = scmp.ne.s32.totalorder %s92, %s106
      %p108 = scmp.eq.s32.totalorder %s87, 0
      %p109 = por %p107, %p108
      %s111 = sadd.s32 %s110, 1
      %p114 = scmp.eq.s32.totalorder %s81, 1
      %p115 = scmp.ne.s32.totalorder %s110, %s112
      %p116 = scmp.eq.s32.totalorder %s81, 0
      %p117 = por %p115, %p116
      %p118 = scmp.ne.s32.totalorder %s110, %s112
      %p119 = scmp.eq.s32.totalorder %s86, 1
      %p120 = por %p118, %p119
      %p121 = scmp.ne.s32.totalorder %s112, %s113
      %p122 = scmp.eq.s32.totalorder %s86, 0
      %p123 = por %p121, %p122
      %p124 = scmp.ne.s32.totalorder %s112, %s113
      %p125 = scmp.eq.s32.totalorder %s87, 1
      %p126 = por %p124, %p125
      %p128 = scmp.ne.s32.totalorder %s113, %s127
      %p129 = scmp.eq.s32.totalorder %s87, 0
      %p130 = por %p128, %p129
      %s132 = sadd.s32 %s131, 1
      %p135 = scmp.eq.s32.totalorder %s81, 1
      %p136 = scmp.ne.s32.totalorder %s131, %s133
      %p137 = scmp.eq.s32.totalorder %s81, 0
      %p138 = por %p136, %p137
      %p139 = scmp.ne.s32.totalorder %s131, %s133
      %p140 = scmp.eq.s32.totalorder %s86, 1
      %p141 = por %p139, %p140
      %p142 = scmp.ne.s32.totalorder %s133, %s134
      %p143 = scmp.eq.s32.totalorder %s86, 0
      %p144 = por %p142, %p143
      %p145 = scmp.ne.s32.totalorder %s133, %s134
      %p146 = scmp.eq.s32.totalorder %s87, 1
      %p147 = por %p145, %p146
      %p149 = scmp.ne.s32.totalorder %s134, %s148
      %p150 = scmp.eq.s32.totalorder %s87, 0
      %p151 = por %p149, %p150
      %s153 = sadd.s32 %s152, 1
      %p156 = scmp.eq.s32.totalorder %s81, 1
      %p157 = scmp.ne.s32.totalorder %s152, %s154
      %p158 = scmp.eq.s32.totalorder %s81, 0
      %p159 = por %p157, %p158
      %p160 = scmp.ne.s32.totalorder %s152, %s154
      %p161 = scmp.eq.s32.totalorder %s86, 1
      %p162 = por %p160, %p161
      %p163 = scmp.ne.s32.totalorder %s154, %s155
      %p164 = scmp.eq.s32.totalorder %s86, 0
      %p165 = por %p163, %p164
      %p166 = scmp.ne.s32.totalorder %s154, %s155
      %p167 = scmp.eq.s32.totalorder %s87, 1
      %p168 = por %p166, %p167
      %p170 = scmp.ne.s32.totalorder %s155, %s169
      %p171 = scmp.eq.s32.totalorder %s87, 0
      %p172 = por %p170, %p171
      %s174 = sadd.s32 %s173, 1
      %p177 = scmp.eq.s32.totalorder %s81, 1
      %p178 = scmp.ne.s32.totalorder %s173, %s175
      %p179 = scmp.eq.s32.totalorder %s81, 0
      %p180 = por %p178, %p179
      %p181 = scmp.ne.s32.totalorder %s173, %s175
      %p182 = scmp.eq.s32.totalorder %s86, 1
      %p183 = por %p181, %p182
      %p184 = scmp.ne.s32.totalorder %s175, %s176
      %p185 = scmp.eq.s32.totalorder %s86, 0
      %p186 = por %p184, %p185
      %p187 = scmp.ne.s32.totalorder %s175, %s176
      %p188 = scmp.eq.s32.totalorder %s87, 1
      %p189 = por %p187, %p188
      %p191 = scmp.ne.s32.totalorder %s176, %s190
      %p192 = scmp.eq.s32.totalorder %s87, 0
      %p193 = por %p191, %p192
      %s195 = sadd.s32 %s194, 1
      %p198 = scmp.eq.s32.totalorder %s81, 1
      %p199 = scmp.ne.s32.totalorder %s194, %s196
      %p200 = scmp.eq.s32.totalorder %s81, 0
      %p201 = por %p199, %p200
      %p202 = scmp.ne.s32.totalorder %s194, %s196
      %p203 = scmp.eq.s32.totalorder %s86, 1
      %p204 = por %p202, %p203
      %p205 = scmp.ne.s32.totalorder %s196, %s197
      %p206 = scmp.eq.s32.totalorder %s86, 0
      %p207 = por %p205, %p206
      %p208 = scmp.ne.s32.totalorder %s196, %s197
      %p209 = scmp.eq.s32.totalorder %s87, 1
      %p210 = por %p208, %p209
      %p212 = scmp.ne.s32.totalorder %s197, %s211
      %p213 = scmp.eq.s32.totalorder %s87, 0
      %p214 = por %p212, %p213
      %s216 = sadd.s32 %s215, 1
      %p219 = scmp.eq.s32.totalorder %s81, 1
      %p220 = scmp.ne.s32.totalorder %s215, %s217
      %p221 = scmp.eq.s32.totalorder %s81, 0
      %p222 = por %p220, %p221
      %p223 = scmp.ne.s32.totalorder %s215, %s217
      %p224 = scmp.eq.s32.totalorder %s86, 1
      %p225 = por %p223, %p224
      %p226 = scmp.ne.s32.totalorder %s217, %s218
      %p227 = scmp.eq.s32.totalorder %s86, 0
      %p228 = por %p226, %p227
      %p229 = scmp.ne.s32.totalorder %s217, %s218
      %p230 = scmp.eq.s32.totalorder %s87, 1
      %p231 = por %p229, %p230
      %p233 = scmp.ne.s32.totalorder %s218, %s232
      %p234 = scmp.eq.s32.totalorder %s87, 0
      %p235 = por %p233, %p234
      %s237 = sadd.s32 %s236, 1
      %p240 = scmp.eq.s32.totalorder %s81, 1
      %p241 = scmp.ne.s32.totalorder %s236, %s238
      %p242 = scmp.eq.s32.totalorder %s81, 0
      %p243 = por %p241, %p242
      %p244 = scmp.ne.s32.totalorder %s236, %s238
      %p245 = scmp.eq.s32.totalorder %s86, 1
      %p246 = por %p244, %p245
      %p247 = scmp.ne.s32.totalorder %s238, %s239
      %p248 = scmp.eq.s32.totalorder %s86, 0
      %p249 = por %p247, %p248
      %p250 = scmp.ne.s32.totalorder %s238, %s239
      %p251 = scmp.eq.s32.totalorder %s87, 1
      %p252 = por %p250, %p251
      %p254 = scmp.ne.s32.totalorder %s239, %s253
      %p255 = scmp.eq.s32.totalorder %s87, 0
      %p256 = por %p254, %p255
      %s258 = sadd.s32 %s257, 1
      %p261 = scmp.eq.s32.totalorder %s81, 1
      %p262 = scmp.ne.s32.totalorder %s257, %s259
      %p263 = scmp.eq.s32.totalorder %s81, 0
      %p264 = por %p262, %p263
      %p265 = scmp.ne.s32.totalorder %s257, %s259
      %p266 = scmp.eq.s32.totalorder %s86, 1
      %p267 = por %p265, %p266
      %p268 = scmp.ne.s32.totalorder %s259, %s260
      %p269 = scmp.eq.s32.totalorder %s86, 0
      %p270 = por %p268, %p269
      %p271 = scmp.ne.s32.totalorder %s259, %s260
      %p272 = scmp.eq.s32.totalorder %s87, 1
      %p273 = por %p271, %p272
      %p275 = scmp.ne.s32.totalorder %s260, %s274
      %p276 = scmp.eq.s32.totalorder %s87, 0
      %p277 = por %p275, %p276
      %s279 = sadd.s32 %s278, 1
      %p282 = scmp.eq.s32.totalorder %s81, 1
      %p283 = scmp.ne.s32.totalorder %s278, %s280
      %p284 = scmp.eq.s32.totalorder %s81, 0
      %p285 = por %p283, %p284
      %p286 = scmp.ne.s32.totalorder %s278, %s280
      %p287 = scmp.eq.s32.totalorder %s86, 1
      %p288 = por %p286, %p287
      %p289 = scmp.ne.s32.totalorder %s280, %s281
      %p290 = scmp.eq.s32.totalorder %s86, 0
      %p291 = por %p289, %p290
      %p292 = scmp.ne.s32.totalorder %s280, %s281
      %p293 = scmp.eq.s32.totalorder %s87, 1
      %p294 = por %p292, %p293
      %p296 = scmp.ne.s32.totalorder %s281, %s295
      %p297 = scmp.eq.s32.totalorder %s87, 0
      %p298 = por %p296, %p297
      %s300 = sadd.s32 %s299, 1
      %p303 = scmp.eq.s32.totalorder %s81, 1
      %p304 = scmp.ne.s32.totalorder %s299, %s301
      %p305 = scmp.eq.s32.totalorder %s81, 0
      %p306 = por %p304, %p305
      %p307 = scmp.ne.s32.totalorder %s299, %s301
      %p308 = scmp.eq.s32.totalorder %s86, 1
      %p309 = por %p307, %p308
      %p310 = scmp.ne.s32.totalorder %s301, %s302
      %p311 = scmp.eq.s32.totalorder %s86, 0
      %p312 = por %p310, %p311
      %p313 = scmp.ne.s32.totalorder %s301, %s302
      %p314 = scmp.eq.s32.totalorder %s87, 1
      %p315 = por %p313, %p314
      %p317 = scmp.ne.s32.totalorder %s302, %s316
      %p318 = scmp.eq.s32.totalorder %s87, 0
      %p319 = por %p317, %p318
      %s321 = sadd.s32 %s320, 1
      %p324 = scmp.eq.s32.totalorder %s81, 1
      %p325 = scmp.ne.s32.totalorder %s320, %s322
      %p326 = scmp.eq.s32.totalorder %s81, 0
      %p327 = por %p325, %p326
      %p328 = scmp.ne.s32.totalorder %s320, %s322
      %p329 = scmp.eq.s32.totalorder %s86, 1
      %p330 = por %p328, %p329
      %p331 = scmp.ne.s32.totalorder %s322, %s323
      %p332 = scmp.eq.s32.totalorder %s86, 0
      %p333 = por %p331, %p332
      %p334 = scmp.ne.s32.totalorder %s322, %s323
      %p335 = scmp.eq.s32.totalorder %s87, 1
      %p336 = por %p334, %p335
      %p338 = scmp.ne.s32.totalorder %s323, %s337
      %p339 = scmp.eq.s32.totalorder %s87, 0
      %p340 = por %p338, %p339
      %s342 = sadd.s32 %s341, 1
      %p345 = scmp.eq.s32.totalorder %s81, 1
      %p346 = scmp.ne.s32.totalorder %s341, %s343
      %p347 = scmp.eq.s32.totalorder %s81, 0
      %p348 = por %p346, %p347
      %p349 = scmp.ne.s32.totalorder %s341, %s343
      %p350 = scmp.eq.s32.totalorder %s86, 1
      %p351 = por %p349, %p350
      %p352 = scmp.ne.s32.totalorder %s343, %s344
      %p353 = scmp.eq.s32.totalorder %s86, 0
      %p354 = por %p352, %p353
      %p355 = scmp.ne.s32.totalorder %s343, %s344
      %p356 = scmp.eq.s32.totalorder %s87, 1
      %p357 = por %p355, %p356
      %p359 = scmp.ne.s32.totalorder %s344, %s358
      %p360 = scmp.eq.s32.totalorder %s87, 0
      %p361 = por %p359, %p360
      %s363 = sadd.s32 %s362, 1
      %p366 = scmp.eq.s32.totalorder %s81, 1
      %p367 = scmp.ne.s32.totalorder %s362, %s364
      %p368 = scmp.eq.s32.totalorder %s81, 0
      %p369 = por %p367, %p368
      %p370 = scmp.ne.s32.totalorder %s362, %s364
      %p371 = scmp.eq.s32.totalorder %s86, 1
      %p372 = por %p370, %p371
      %p373 = scmp.ne.s32.totalorder %s364, %s365
      %p374 = scmp.eq.s32.totalorder %s86, 0
      %p375 = por %p373, %p374
      %p376 = scmp.ne.s32.totalorder %s364, %s365
      %p377 = scmp.eq.s32.totalorder %s87, 1
      %p378 = por %p376, %p377
      %p380 = scmp.ne.s32.totalorder %s365, %s379
      %p381 = scmp.eq.s32.totalorder %s87, 0
      %p382 = por %p380, %p381
      %s384 = sadd.s32 %s383, 1
      %p387 = scmp.eq.s32.totalorder %s81, 1
      %p388 = scmp.ne.s32.totalorder %s383, %s385
      %p389 = scmp.eq.s32.totalorder %s81, 0
      %p390 = por %p388, %p389
      %p391 = scmp.ne.s32.totalorder %s383, %s385
      %p392 = scmp.eq.s32.totalorder %s86, 1
      %p393 = por %p391, %p392
      %p394 = scmp.ne.s32.totalorder %s385, %s386
      %p395 = scmp.eq.s32.totalorder %s86, 0
      %p396 = por %p394, %p395
      %p397 = scmp.ne.s32.totalorder %s385, %s386
      %p398 = scmp.eq.s32.totalorder %s87, 1
      %p399 = por %p397, %p398
      %p401 = scmp.ne.s32.totalorder %s386, %s400
      %p402 = scmp.eq.s32.totalorder %s87, 0
      %p403 = por %p401, %p402
      %s405 = sadd.s32 %s404, 1
      %p408 = scmp.eq.s32.totalorder %s81, 1
      %p409 = scmp.ne.s32.totalorder %s404, %s406
      %p410 = scmp.eq.s32.totalorder %s81, 0
      %p411 = por %p409, %p410
      %p412 = scmp.ne.s32.totalorder %s404, %s406
      %p413 = scmp.eq.s32.totalorder %s86, 1
      %p414 = por %p412, %p413
      %p415 = scmp.ne.s32.totalorder %s406, %s407
      %p416 = scmp.eq.s32.totalorder %s86, 0
      %p417 = por %p415, %p416
      %p418 = scmp.ne.s32.totalorder %s406, %s407
      %p419 = scmp.eq.s32.totalorder %s87, 1
      %p420 = por %p418, %p419
      %p422 = scmp.ne.s32.totalorder %s407, %s421
      %p423 = scmp.eq.s32.totalorder %s87, 0
      %p424 = por %p422, %p423
      %s426 = sadd.s32 %s425, 1
      %p429 = scmp.eq.s32.totalorder %s81, 1
      %p430 = scmp.ne.s32.totalorder %s425, %s427
      %p431 = scmp.eq.s32.totalorder %s81, 0
      %p432 = por %p430, %p431
      %p433 = scmp.ne.s32.totalorder %s425, %s427
      %p434 = scmp.eq.s32.totalorder %s86, 1
      %p435 = por %p433, %p434
      %p436 = scmp.ne.s32.totalorder %s427, %s428
      %p437 = scmp.eq.s32.totalorder %s86, 0
      %p438 = por %p436, %p437
      %p439 = scmp.ne.s32.totalorder %s427, %s428
      %p440 = scmp.eq.s32.totalorder %s87, 1
      %p441 = por %p439, %p440
      %p443 = scmp.ne.s32.totalorder %s428, %s442
      %p444 = scmp.eq.s32.totalorder %s87, 0
      %p445 = por %p443, %p444
      %s447 = sadd.s32 %s446, 1
      %p450 = scmp.eq.s32.totalorder %s81, 1
      %p451 = scmp.ne.s32.totalorder %s446, %s448
      %p452 = scmp.eq.s32.totalorder %s81, 0
      %p453 = por %p451, %p452
      %p454 = scmp.ne.s32.totalorder %s446, %s448
      %p455 = scmp.eq.s32.totalorder %s86, 1
      %p456 = por %p454, %p455
      %p457 = scmp.ne.s32.totalorder %s448, %s449
      %p458 = scmp.eq.s32.totalorder %s86, 0
      %p459 = por %p457, %p458
      %p460 = scmp.ne.s32.totalorder %s448, %s449
      %p461 = scmp.eq.s32.totalorder %s87, 1
      %p462 = por %p460, %p461
      %p464 = scmp.ne.s32.totalorder %s449, %s463
      %p465 = scmp.eq.s32.totalorder %s87, 0
      %p466 = por %p464, %p465
      %s468 = sadd.s32 %s467, 1
      %p471 = scmp.eq.s32.totalorder %s81, 1
      %p472 = scmp.ne.s32.totalorder %s467, %s469
      %p473 = scmp.eq.s32.totalorder %s81, 0
      %p474 = por %p472, %p473
      %p475 = scmp.ne.s32.totalorder %s467, %s469
      %p476 = scmp.eq.s32.totalorder %s86, 1
      %p477 = por %p475, %p476
      %p478 = scmp.ne.s32.totalorder %s469, %s470
      %p479 = scmp.eq.s32.totalorder %s86, 0
      %p480 = por %p478, %p479
      %p481 = scmp.ne.s32.totalorder %s469, %s470
      %p482 = scmp.eq.s32.totalorder %s87, 1
      %p483 = por %p481, %p482
      %p485 = scmp.ne.s32.totalorder %s470, %s484
      %p486 = scmp.eq.s32.totalorder %s87, 0
      %p487 = por %p485, %p486
      %s489 = sadd.s32 %s488, 1
      %p492 = scmp.eq.s32.totalorder %s81, 1
      %p493 = scmp.ne.s32.totalorder %s488, %s490
      %p494 = scmp.eq.s32.totalorder %s81, 0
      %p495 = por %p493, %p494
      %p496 = scmp.ne.s32.totalorder %s488, %s490
      %p497 = scmp.eq.s32.totalorder %s86, 1
      %p498 = por %p496, %p497
      %p499 = scmp.ne.s32.totalorder %s490, %s491
      %p500 = scmp.eq.s32.totalorder %s86, 0
      %p501 = por %p499, %p500
      %p502 = scmp.ne.s32.totalorder %s490, %s491
      %p503 = scmp.eq.s32.totalorder %s87, 1
      %p504 = por %p502, %p503
      %p506 = scmp.ne.s32.totalorder %s491, %s505
      %p507 = scmp.eq.s32.totalorder %s87, 0
      %p508 = por %p506, %p507
      %s510 = sadd.s32 %s509, 1
      %p513 = scmp.eq.s32.totalorder %s81, 1
      %p514 = scmp.ne.s32.totalorder %s509, %s511
      %p515 = scmp.eq.s32.totalorder %s81, 0
      %p516 = por %p514, %p515
      %p517 = scmp.ne.s32.totalorder %s509, %s511
      %p518 = scmp.eq.s32.totalorder %s86, 1
      %p519 = por %p517, %p518
      %p520 = scmp.ne.s32.totalorder %s511, %s512
      %p521 = scmp.eq.s32.totalorder %s86, 0
      %p522 = por %p520, %p521
      %p523 = scmp.ne.s32.totalorder %s511, %s512
      %p524 = scmp.eq.s32.totalorder %s87, 1
      %p525 = por %p523, %p524
      %p527 = scmp.ne.s32.totalorder %s512, %s526
      %p528 = scmp.eq.s32.totalorder %s87, 0
      %p529 = por %p527, %p528
      %s531 = sadd.s32 %s530, 1
      %p534 = scmp.eq.s32.totalorder %s81, 1
      %p535 = scmp.ne.s32.totalorder %s530, %s532
      %p536 = scmp.eq.s32.totalorder %s81, 0
      %p537 = por %p535, %p536
      %p538 = scmp.ne.s32.totalorder %s530, %s532
      %p539 = scmp.eq.s32.totalorder %s86, 1
      %p540 = por %p538, %p539
      %p541 = scmp.ne.s32.totalorder %s532, %s533
      %p542 = scmp.eq.s32.totalorder %s86, 0
      %p543 = por %p541, %p542
      %p544 = scmp.ne.s32.totalorder %s532, %s533
      %p545 = scmp.eq.s32.totalorder %s87, 1
      %p546 = por %p544, %p545
      %p548 = scmp.ne.s32.totalorder %s533, %s547
      %p549 = scmp.eq.s32.totalorder %s87, 0
      %p550 = por %p548, %p549
      %s552 = sadd.s32 %s551, 1
      %p555 = scmp.eq.s32.totalorder %s81, 1
      %p556 = scmp.ne.s32.totalorder %s551, %s553
      %p557 = scmp.eq.s32.totalorder %s81, 0
      %p558 = por %p556, %p557
      %p559 = scmp.ne.s32.totalorder %s551, %s553
      %p560 = scmp.eq.s32.totalorder %s86, 1
      %p561 = por %p559, %p560
      %p562 = scmp.ne.s32.totalorder %s553, %s554
      %p563 = scmp.eq.s32.totalorder %s86, 0
      %p564 = por %p562, %p563
      %p565 = scmp.ne.s32.totalorder %s553, %s554
      %p566 = scmp.eq.s32.totalorder %s87, 1
      %p567 = por %p565, %p566
      %p569 = scmp.ne.s32.totalorder %s554, %s568
      %p570 = scmp.eq.s32.totalorder %s87, 0
      %p571 = por %p569, %p570
      %s573 = sadd.s32 %s572, 1
      %p576 = scmp.eq.s32.totalorder %s81, 1
      %p577 = scmp.ne.s32.totalorder %s572, %s574
      %p578 = scmp.eq.s32.totalorder %s81, 0
      %p579 = por %p577, %p578
      %p580 = scmp.ne.s32.totalorder %s572, %s574
      %p581 = scmp.eq.s32.totalorder %s86, 1
      %p582 = por %p580, %p581
      %p583 = scmp.ne.s32.totalorder %s574, %s575
      %p584 = scmp.eq.s32.totalorder %s86, 0
      %p585 = por %p583, %p584
      %p586 = scmp.ne.s32.totalorder %s574, %s575
      %p587 = scmp.eq.s32.totalorder %s87, 1
      %p588 = por %p586, %p587
      %p590 = scmp.ne.s32.totalorder %s575, %s589
      %p591 = scmp.eq.s32.totalorder %s87, 0
      %p592 = por %p590, %p591
      %s594 = sadd.s32 %s593, 1
      %p597 = scmp.eq.s32.totalorder %s81, 1
      %p598 = scmp.ne.s32.totalorder %s593, %s595
      %p599 = scmp.eq.s32.totalorder %s81, 0
      %p600 = por %p598, %p599
      %p601 = scmp.ne.s32.totalorder %s593, %s595
      %p602 = scmp.eq.s32.totalorder %s86, 1
      %p603 = por %p601, %p602
      %p604 = scmp.ne.s32.totalorder %s595, %s596
      %p605 = scmp.eq.s32.totalorder %s86, 0
      %p606 = por %p604, %p605
      %p607 = scmp.ne.s32.totalorder %s595, %s596
      %p608 = scmp.eq.s32.totalorder %s87, 1
      %p609 = por %p607, %p608
      %p611 = scmp.ne.s32.totalorder %s596, %s610
      %p612 = scmp.eq.s32.totalorder %s87, 0
      %p613 = por %p611, %p612
      %s615 = sadd.s32 %s614, 1
      %p618 = scmp.eq.s32.totalorder %s81, 1
      %p619 = scmp.ne.s32.totalorder %s614, %s616
      %p620 = scmp.eq.s32.totalorder %s81, 0
      %p621 = por %p619, %p620
      %p622 = scmp.ne.s32.totalorder %s614, %s616
      %p623 = scmp.eq.s32.totalorder %s86, 1
      %p624 = por %p622, %p623
      %p625 = scmp.ne.s32.totalorder %s616, %s617
      %p626 = scmp.eq.s32.totalorder %s86, 0
      %p627 = por %p625, %p626
      %p628 = scmp.ne.s32.totalorder %s616, %s617
      %p629 = scmp.eq.s32.totalorder %s87, 1
      %p630 = por %p628, %p629
      %p632 = scmp.ne.s32.totalorder %s617, %s631
      %p633 = scmp.eq.s32.totalorder %s87, 0
      %p634 = por %p632, %p633
      %s636 = sadd.s32 %s635, 1
      %p639 = scmp.eq.s32.totalorder %s81, 1
      %p640 = scmp.ne.s32.totalorder %s635, %s637
      %p641 = scmp.eq.s32.totalorder %s81, 0
      %p642 = por %p640, %p641
      %p643 = scmp.ne.s32.totalorder %s635, %s637
      %p644 = scmp.eq.s32.totalorder %s86, 1
      %p645 = por %p643, %p644
      %p646 = scmp.ne.s32.totalorder %s637, %s638
      %p647 = scmp.eq.s32.totalorder %s86, 0
      %p648 = por %p646, %p647
      %p649 = scmp.ne.s32.totalorder %s637, %s638
      %p650 = scmp.eq.s32.totalorder %s87, 1
      %p651 = por %p649, %p650
      %p653 = scmp.ne.s32.totalorder %s638, %s652
      %p654 = scmp.eq.s32.totalorder %s87, 0
      %p655 = por %p653, %p654
      %s657 = sadd.s32 %s656, 1
      %p660 = scmp.eq.s32.totalorder %s81, 1
      %p661 = scmp.ne.s32.totalorder %s656, %s658
      %p662 = scmp.eq.s32.totalorder %s81, 0
      %p663 = por %p661, %p662
      %p664 = scmp.ne.s32.totalorder %s656, %s658
      %p665 = scmp.eq.s32.totalorder %s86, 1
      %p666 = por %p664, %p665
      %p667 = scmp.ne.s32.totalorder %s658, %s659
      %p668 = scmp.eq.s32.totalorder %s86, 0
      %p669 = por %p667, %p668
      %p670 = scmp.ne.s32.totalorder %s658, %s659
      %p671 = scmp.eq.s32.totalorder %s87, 1
      %p672 = por %p670, %p671
      %p674 = scmp.ne.s32.totalorder %s659, %s673
      %p675 = scmp.eq.s32.totalorder %s87, 0
      %p676 = por %p674, %p675
      %s678 = sadd.s32 %s677, 1
      %p681 = scmp.eq.s32.totalorder %s81, 1
      %p682 = scmp.ne.s32.totalorder %s677, %s679
      %p683 = scmp.eq.s32.totalorder %s81, 0
      %p684 = por %p682, %p683
      %p685 = scmp.ne.s32.totalorder %s677, %s679
      %p686 = scmp.eq.s32.totalorder %s86, 1
      %p687 = por %p685, %p686
      %p688 = scmp.ne.s32.totalorder %s679, %s680
      %p689 = scmp.eq.s32.totalorder %s86, 0
      %p690 = por %p688, %p689
      %p691 = scmp.ne.s32.totalorder %s679, %s680
      %p692 = scmp.eq.s32.totalorder %s87, 1
      %p693 = por %p691, %p692
      %p695 = scmp.ne.s32.totalorder %s680, %s694
      %p696 = scmp.eq.s32.totalorder %s87, 0
      %p697 = por %p695, %p696
      %s699 = sadd.s32 %s698, 1
      %p702 = scmp.eq.s32.totalorder %s81, 1
      %p703 = scmp.ne.s32.totalorder %s698, %s700
      %p704 = scmp.eq.s32.totalorder %s81, 0
      %p705 = por %p703, %p704
      %p706 = scmp.ne.s32.totalorder %s698, %s700
      %p707 = scmp.eq.s32.totalorder %s86, 1
      %p708 = por %p706, %p707
      %p709 = scmp.ne.s32.totalorder %s700, %s701
      %p710 = scmp.eq.s32.totalorder %s86, 0
      %p711 = por %p709, %p710
      %p712 = scmp.ne.s32.totalorder %s700, %s701
      %p713 = scmp.eq.s32.totalorder %s87, 1
      %p714 = por %p712, %p713
      %p716 = scmp.ne.s32.totalorder %s701, %s715
      %p717 = scmp.eq.s32.totalorder %s87, 0
      %p718 = por %p716, %p717
      %s720 = sadd.s32 %s719, 1
      %p723 = scmp.eq.s32.totalorder %s81, 1
      %p724 = scmp.ne.s32.totalorder %s719, %s721
      %p725 = scmp.eq.s32.totalorder %s81, 0
      %p726 = por %p724, %p725
      %p727 = scmp.ne.s32.totalorder %s719, %s721
      %p728 = scmp.eq.s32.totalorder %s86, 1
      %p729 = por %p727, %p728
      %p730 = scmp.ne.s32.totalorder %s721, %s722
      %p731 = scmp.eq.s32.totalorder %s86, 0
      %p732 = por %p730, %p731
      %p733 = scmp.ne.s32.totalorder %s721, %s722
      %p734 = scmp.eq.s32.totalorder %s87, 1
      %p735 = por %p733, %p734
      %p737 = scmp.ne.s32.totalorder %s722, %s736
      %p738 = scmp.eq.s32.totalorder %s87, 0
      %p739 = por %p737, %p738
      %s740 = ssub.s32 %s81, %s88
      %p741 = scmp.eq.s32.totalorder %s740, 0
      %s743 = sadd.s32 %s742, 1
      %s744 = scalar_select %p741, %s742, %s743
      %p747 = pneg %p741
      %p748 = scmp.eq.s32.totalorder %s81, 1
      %p749 = por %p747, %p748
      %p750 = scmp.ne.s32.totalorder %s742, %s745
      %p751 = scmp.eq.s32.totalorder %s81, 0
      %p752 = por %p750, %p751
      %p753 = scmp.ne.s32.totalorder %s742, %s745
      %p754 = scmp.eq.s32.totalorder %s86, 1
      %p755 = por %p753, %p754
      %p756 = scmp.ne.s32.totalorder %s745, %s746
      %p757 = scmp.eq.s32.totalorder %s86, 0
      %p758 = por %p756, %p757
      %p759 = scmp.ne.s32.totalorder %s745, %s746
      %p760 = scmp.eq.s32.totalorder %s87, 1
      %p761 = por %p759, %p760
      %p763 = scmp.ne.s32.totalorder %s746, %s762
      %p764 = scmp.eq.s32.totalorder %s87, 0
      %p765 = por %p763, %p764
      %s766 = ssub.s32 %s81, %s88
      %p767 = scmp.eq.s32.totalorder %s766, 0
      %s769 = sadd.s32 %s768, 1
      %s770 = scalar_select %p767, %s768, %s769
      %p773 = pneg %p767
      %p774 = scmp.eq.s32.totalorder %s81, 1
      %p775 = por %p773, %p774
      %p776 = scmp.ne.s32.totalorder %s768, %s771
      %p777 = scmp.eq.s32.totalorder %s81, 0
      %p778 = por %p776, %p777
      %p779 = scmp.ne.s32.totalorder %s768, %s771
      %p780 = scmp.eq.s32.totalorder %s86, 1
      %p781 = por %p779, %p780
      %p782 = scmp.ne.s32.totalorder %s771, %s772
      %p783 = scmp.eq.s32.totalorder %s86, 0
      %p784 = por %p782, %p783
      %p785 = scmp.ne.s32.totalorder %s771, %s772
      %p786 = scmp.eq.s32.totalorder %s87, 1
      %p787 = por %p785, %p786
      %p789 = scmp.ne.s32.totalorder %s772, %s788
      %p790 = scmp.eq.s32.totalorder %s87, 0
      %p791 = por %p789, %p790
      %p792 = scmp.le.s32.totalorder 1, %s81
      %p793 = scmp.lt.s32.totalorder %s81, 3
      %p794 = pnand %p792, %p793
      %p795 = pneg %p794
      // Predicated region
      $region9: #{tpu_custom_call.1} parent=5 // pred_check
        _
      $region10: #{tpu_custom_call.1} parent=5 // pred_check_branch
        %797 = sbr.rel (%p794) target = $region12
      $region11: #{tpu_custom_call.1} parent=5 // pred_region
        %s798 = ssub.s32 %s81, 1
        // Predicated region
        $region13: #{tpu_custom_call.1} parent=11 // pred_check
          %p799 = pneg %p102
        $region14: #{tpu_custom_call.1} parent=11 // pred_check_branch
          %801 = sbr.rel (%p799) target = $region16
        $region15: #{tpu_custom_call.1} parent=11 // pred_region
          _
        $region16: #{tpu_custom_call.1} parent=11 // pred_fallthru
          _
        // Predicated region
        $region17: #{tpu_custom_call.1} parent=11 // pred_check
          %p802 = pneg %p123
        $region18: #{tpu_custom_call.1} parent=11 // pred_check_branch
          %804 = sbr.rel (%p802) target = $region20
        $region19: #{tpu_custom_call.1} parent=11 // pred_region
          %806 = vsyncadd [#allocation3], 0
          %s807 = sshll.u32 %s3, 4
          %s808 = int_to_ptr.hbm [resolvable:$true] %s807
          %s809 = sshll.u32 [#allocation2], 4
          %s810 = int_to_ptr.vmem [resolvable:$true] %s809
          %815 = dma.hbm_to_vmem [thread:$0]  %s808, 6144, %s810, [#allocation3], 384, 384, 24
        $region20: #{tpu_custom_call.1} parent=11 // pred_fallthru
          _
        // Predicated region
        $region21: #{tpu_custom_call.1} parent=11 // pred_check
          %p816 = pneg %p144
        $region22: #{tpu_custom_call.1} parent=11 // pred_check_branch
          %818 = sbr.rel (%p816) target = $region24
        $region23: #{tpu_custom_call.1} parent=11 // pred_region
          _
        $region24: #{tpu_custom_call.1} parent=11 // pred_fallthru
          _
        // Predicated region
        $region25: #{tpu_custom_call.1} parent=11 // pred_check
          %p819 = pneg %p165
        $region26: #{tpu_custom_call.1} parent=11 // pred_check_branch
          %821 = sbr.rel (%p819) target = $region28
        $region27: #{tpu_custom_call.1} parent=11 // pred_region
          _
        $region28: #{tpu_custom_call.1} parent=11 // pred_fallthru
          _
        // Predicated region
        $region29: #{tpu_custom_call.1} parent=11 // pred_check
          %p822 = pneg %p186
        $region30: #{tpu_custom_call.1} parent=11 // pred_check_branch
          %824 = sbr.rel (%p822) target = $region32
        $region31: #{tpu_custom_call.1} parent=11 // pred_region
          %826 = vsyncadd [#allocation6], 0
          %s827 = sshll.u32 %s9, 4
          %s828 = int_to_ptr.hbm [resolvable:$true] %s827
          %s829 = sshll.u32 [#allocation5], 4
          %s830 = int_to_ptr.vmem [resolvable:$true] %s829
          %835 = dma.hbm_to_vmem [thread:$0]  %s828, 6144, %s830, [#allocation6], 384, 384, 24
        $region32: #{tpu_custom_call.1} parent=11 // pred_fallthru
          _
        // Predicated region
        $region33: #{tpu_custom_call.1} parent=11 // pred_check
          %p836 = pneg %p207
        $region34: #{tpu_custom_call.1} parent=11 // pred_check_branch
          %838 = sbr.rel (%p836) target = $region36
        $region35: #{tpu_custom_call.1} parent=11 // pred_region
          _
        $region36: #{tpu_custom_call.1} parent=11 // pred_fallthru
          _
        // Predicated region
        $region37: #{tpu_custom_call.1} parent=11 // pred_check
          %p839 = pneg %p228
        $region38: #{tpu_custom_call.1} parent=11 // pred_check_branch
          %841 = sbr.rel (%p839) target = $region40
        $region39: #{tpu_custom_call.1} parent=11 // pred_region
          _
        $region40: #{tpu_custom_call.1} parent=11 // pred_fallthru
          _
        // Predicated region
        $region41: #{tpu_custom_call.1} parent=11 // pred_check
          %p842 = pneg %p249
        $region42: #{tpu_custom_call.1} parent=11 // pred_check_branch
          %844 = sbr.rel (%p842) target = $region44
        $region43: #{tpu_custom_call.1} parent=11 // pred_region
          %846 = vsyncadd [#allocation6], 0
          %s847 = sshll.u32 %s15, 4
          %s848 = int_to_ptr.hbm [resolvable:$true] %s847
          %s849 = sshll.u32 [#allocation7], 4
          %s850 = int_to_ptr.vmem [resolvable:$true] %s849
          %855 = dma.hbm_to_vmem [thread:$0]  %s848, 2048, %s850, [#allocation6], 128, 128, 8
        $region44: #{tpu_custom_call.1} parent=11 // pred_fallthru
          _
        // Predicated region
        $region45: #{tpu_custom_call.1} parent=11 // pred_check
          %p856 = pneg %p270
        $region46: #{tpu_custom_call.1} parent=11 // pred_check_branch
          %858 = sbr.rel (%p856) target = $region48
        $region47: #{tpu_custom_call.1} parent=11 // pred_region
          _
        $region48: #{tpu_custom_call.1} parent=11 // pred_fallthru
          _
        // Predicated region
        $region49: #{tpu_custom_call.1} parent=11 // pred_check
          %p859 = pneg %p291
        $region50: #{tpu_custom_call.1} parent=11 // pred_check_branch
          %861 = sbr.rel (%p859) target = $region52
        $region51: #{tpu_custom_call.1} parent=11 // pred_region
          _
        $region52: #{tpu_custom_call.1} parent=11 // pred_fallthru
          _
        // Predicated region
        $region53: #{tpu_custom_call.1} parent=11 // pred_check
          %p862 = pneg %p312
        $region54: #{tpu_custom_call.1} parent=11 // pred_check_branch
          %864 = sbr.rel (%p862) target = $region56
        $region55: #{tpu_custom_call.1} parent=11 // pred_region
          _
        $region56: #{tpu_custom_call.1} parent=11 // pred_fallthru
          _
        // Predicated region
        $region57: #{tpu_custom_call.1} parent=11 // pred_check
          %p865 = pneg %p333
        $region58: #{tpu_custom_call.1} parent=11 // pred_check_branch
          %867 = sbr.rel (%p865) target = $region60
        $region59: #{tpu_custom_call.1} parent=11 // pred_region
          _
        $region60: #{tpu_custom_call.1} parent=11 // pred_fallthru
          _
        // Predicated region
        $region61: #{tpu_custom_call.1} parent=11 // pred_check
          %p868 = pneg %p354
        $region62: #{tpu_custom_call.1} parent=11 // pred_check_branch
          %870 = sbr.rel (%p868) target = $region64
        $region63: #{tpu_custom_call.1} parent=11 // pred_region
          _
        $region64: #{tpu_custom_call.1} parent=11 // pred_fallthru
          _
        // Predicated region
        $region65: #{tpu_custom_call.1} parent=11 // pred_check
          %p871 = pneg %p375
        $region66: #{tpu_custom_call.1} parent=11 // pred_check_branch
          %873 = sbr.rel (%p871) target = $region68
        $region67: #{tpu_custom_call.1} parent=11 // pred_region
          _
        $region68: #{tpu_custom_call.1} parent=11 // pred_fallthru
          _
        // Predicated region
        $region69: #{tpu_custom_call.1} parent=11 // pred_check
          %p874 = pneg %p396
        $region70: #{tpu_custom_call.1} parent=11 // pred_check_branch
          %876 = sbr.rel (%p874) target = $region72
        $region71: #{tpu_custom_call.1} parent=11 // pred_region
          %878 = vsyncadd [#allocation9], 0
          %s879 = sshll.u32 %s29, 4
          %s880 = int_to_ptr.hbm [resolvable:$true] %s879
          %s881 = sshll.u32 [#allocation8], 4
          %s882 = int_to_ptr.vmem [resolvable:$true] %s881
          %887 = dma.hbm_to_vmem [thread:$0]  %s880, 2048, %s882, [#allocation9], 128, 128, 8
        $region72: #{tpu_custom_call.1} parent=11 // pred_fallthru
          _
        // Predicated region
        $region73: #{tpu_custom_call.1} parent=11 // pred_check
          %p888 = pneg %p417
        $region74: #{tpu_custom_call.1} parent=11 // pred_check_branch
          %890 = sbr.rel (%p888) target = $region76
        $region75: #{tpu_custom_call.1} parent=11 // pred_region
          _
        $region76: #{tpu_custom_call.1} parent=11 // pred_fallthru
          _
        // Predicated region
        $region77: #{tpu_custom_call.1} parent=11 // pred_check
          %p891 = pneg %p438
        $region78: #{tpu_custom_call.1} parent=11 // pred_check_branch
          %893 = sbr.rel (%p891) target = $region80
        $region79: #{tpu_custom_call.1} parent=11 // pred_region
          _
        $region80: #{tpu_custom_call.1} parent=11 // pred_fallthru
          _
        // Predicated region
        $region81: #{tpu_custom_call.1} parent=11 // pred_check
          %p894 = pneg %p459
        $region82: #{tpu_custom_call.1} parent=11 // pred_check_branch
          %896 = sbr.rel (%p894) target = $region84
        $region83: #{tpu_custom_call.1} parent=11 // pred_region
          _
        $region84: #{tpu_custom_call.1} parent=11 // pred_fallthru
          _
        // Predicated region
        $region85: #{tpu_custom_call.1} parent=11 // pred_check
          %p897 = pneg %p480
        $region86: #{tpu_custom_call.1} parent=11 // pred_check_branch
          %899 = sbr.rel (%p897) target = $region88
        $region87: #{tpu_custom_call.1} parent=11 // pred_region
          _
        $region88: #{tpu_custom_call.1} parent=11 // pred_fallthru
          _
        // Predicated region
        $region89: #{tpu_custom_call.1} parent=11 // pred_check
          %p900 = pneg %p501
        $region90: #{tpu_custom_call.1} parent=11 // pred_check_branch
          %902 = sbr.rel (%p900) target = $region92
        $region91: #{tpu_custom_call.1} parent=11 // pred_region
          _
        $region92: #{tpu_custom_call.1} parent=11 // pred_fallthru
          _
        // Predicated region
        $region93: #{tpu_custom_call.1} parent=11 // pred_check
          %p903 = pneg %p522
        $region94: #{tpu_custom_call.1} parent=11 // pred_check_branch
          %905 = sbr.rel (%p903) target = $region96
        $region95: #{tpu_custom_call.1} parent=11 // pred_region
          _
        $region96: #{tpu_custom_call.1} parent=11 // pred_fallthru
          _
        // Predicated region
        $region97: #{tpu_custom_call.1} parent=11 // pred_check
          %p906 = pneg %p543
        $region98: #{tpu_custom_call.1} parent=11 // pred_check_branch
          %908 = sbr.rel (%p906) target = $region100
        $region99: #{tpu_custom_call.1} parent=11 // pred_region
          %910 = vsyncadd [#allocation9], 0
          %s911 = sshll.u32 %s43, 4
          %s912 = int_to_ptr.hbm [resolvable:$true] %s911
          %s913 = sshll.u32 [#allocation10], 4
          %s914 = int_to_ptr.vmem [resolvable:$true] %s913
          %919 = dma.hbm_to_vmem [thread:$0]  %s912, 2048, %s914, [#allocation9], 128, 128, 8
        $region100: #{tpu_custom_call.1} parent=11 // pred_fallthru
          _
        // Predicated region
        $region101: #{tpu_custom_call.1} parent=11 // pred_check
          %p920 = pneg %p564
        $region102: #{tpu_custom_call.1} parent=11 // pred_check_branch
          %922 = sbr.rel (%p920) target = $region104
        $region103: #{tpu_custom_call.1} parent=11 // pred_region
          _
        $region104: #{tpu_custom_call.1} parent=11 // pred_fallthru
          _
        // Predicated region
        $region105: #{tpu_custom_call.1} parent=11 // pred_check
          %p923 = pneg %p585
        $region106: #{tpu_custom_call.1} parent=11 // pred_check_branch
          %925 = sbr.rel (%p923) target = $region108
        $region107: #{tpu_custom_call.1} parent=11 // pred_region
          _
        $region108: #{tpu_custom_call.1} parent=11 // pred_fallthru
          _
        // Predicated region
        $region109: #{tpu_custom_call.1} parent=11 // pred_check
          %p926 = pneg %p606
        $region110: #{tpu_custom_call.1} parent=11 // pred_check_branch
          %928 = sbr.rel (%p926) target = $region112
        $region111: #{tpu_custom_call.1} parent=11 // pred_region
          _
        $region112: #{tpu_custom_call.1} parent=11 // pred_fallthru
          _
        // Predicated region
        $region113: #{tpu_custom_call.1} parent=11 // pred_check
          %p929 = pneg %p627
        $region114: #{tpu_custom_call.1} parent=11 // pred_check_branch
          %931 = sbr.rel (%p929) target = $region116
        $region115: #{tpu_custom_call.1} parent=11 // pred_region
          _
        $region116: #{tpu_custom_call.1} parent=11 // pred_fallthru
          _
        // Predicated region
        $region117: #{tpu_custom_call.1} parent=11 // pred_check
          %p932 = pneg %p648
        $region118: #{tpu_custom_call.1} parent=11 // pred_check_branch
          %934 = sbr.rel (%p932) target = $region120
        $region119: #{tpu_custom_call.1} parent=11 // pred_region
          _
        $region120: #{tpu_custom_call.1} parent=11 // pred_fallthru
          _
        // Predicated region
        $region121: #{tpu_custom_call.1} parent=11 // pred_check
          %p935 = pneg %p669
        $region122: #{tpu_custom_call.1} parent=11 // pred_check_branch
          %937 = sbr.rel (%p935) target = $region124
        $region123: #{tpu_custom_call.1} parent=11 // pred_region
          _
        $region124: #{tpu_custom_call.1} parent=11 // pred_fallthru
          _
        // Predicated region
        $region125: #{tpu_custom_call.1} parent=11 // pred_check
          %p938 = pneg %p690
        $region126: #{tpu_custom_call.1} parent=11 // pred_check_branch
          %940 = sbr.rel (%p938) target = $region128
        $region127: #{tpu_custom_call.1} parent=11 // pred_region
          _
        $region128: #{tpu_custom_call.1} parent=11 // pred_fallthru
          _
        // Predicated region
        $region129: #{tpu_custom_call.1} parent=11 // pred_check
          %p941 = pneg %p711
        $region130: #{tpu_custom_call.1} parent=11 // pred_check_branch
          %943 = sbr.rel (%p941) target = $region132
        $region131: #{tpu_custom_call.1} parent=11 // pred_region
          _
        $region132: #{tpu_custom_call.1} parent=11 // pred_fallthru
          _
        // Predicated region
        $region133: #{tpu_custom_call.1} parent=11 // pred_check
          %p944 = pneg %p732
        $region134: #{tpu_custom_call.1} parent=11 // pred_check_branch
          %946 = sbr.rel (%p944) target = $region136
        $region135: #{tpu_custom_call.1} parent=11 // pred_region
          _
        $region136: #{tpu_custom_call.1} parent=11 // pred_fallthru
          _
      $region12: #{tpu_custom_call.1} parent=5 // pred_fallthru
        _
      %p947 = scmp.lt.s32.totalorder %s81, 2
      // Predicated region
      $region137: #{tpu_custom_call.1} parent=5 // pred_check
        %p948 = pneg %p947
      $region138: #{tpu_custom_call.1} parent=5 // pred_check_branch
        %950 = sbr.rel (%p948) target = $region140
      $region139: #{tpu_custom_call.1} parent=5 // pred_region
        _
      $region140: #{tpu_custom_call.1} parent=5 // pred_fallthru
        _
      %p951 = scmp.le.s32.totalorder 1, %s81
      %p952 = scmp.lt.s32.totalorder %s81, 3
      %p953 = pnand %p951, %p952
      %p954 = pneg %p953
      // Predicated region
      $region141: #{tpu_custom_call.1} parent=5 // pred_check
        _
      $region142: #{tpu_custom_call.1} parent=5 // pred_check_branch
        %956 = sbr.rel (%p953) target = $region144
      $region143: #{tpu_custom_call.1} parent=5 // pred_region
        %s957 = ssub.s32 %s81, 1
        // Predicated region
        $region145: #{tpu_custom_call.1} parent=143 // pred_check
          %p958 = pneg %p123
        $region146: #{tpu_custom_call.1} parent=143 // pred_check_branch
          %960 = sbr.rel (%p958) target = $region148
        $region147: #{tpu_custom_call.1} parent=143 // pred_region
          %962 = dma.done [#allocation3], 6144
        $region148: #{tpu_custom_call.1} parent=143 // pred_fallthru
          _
        // Predicated region
        $region149: #{tpu_custom_call.1} parent=143 // pred_check
          %p963 = pneg %p186
        $region150: #{tpu_custom_call.1} parent=143 // pred_check_branch
          %965 = sbr.rel (%p963) target = $region152
        $region151: #{tpu_custom_call.1} parent=143 // pred_region
          %967 = dma.done [#allocation6], 6144
        $region152: #{tpu_custom_call.1} parent=143 // pred_fallthru
          _
        // Predicated region
        $region153: #{tpu_custom_call.1} parent=143 // pred_check
          %p968 = pneg %p249
        $region154: #{tpu_custom_call.1} parent=143 // pred_check_branch
          %970 = sbr.rel (%p968) target = $region156
        $region155: #{tpu_custom_call.1} parent=143 // pred_region
          %972 = dma.done [#allocation6], 2048
        $region156: #{tpu_custom_call.1} parent=143 // pred_fallthru
          _
        // Predicated region
        $region157: #{tpu_custom_call.1} parent=143 // pred_check
          %p973 = pneg %p396
        $region158: #{tpu_custom_call.1} parent=143 // pred_check_branch
          %975 = sbr.rel (%p973) target = $region160
        $region159: #{tpu_custom_call.1} parent=143 // pred_region
          %977 = dma.done [#allocation9], 2048
        $region160: #{tpu_custom_call.1} parent=143 // pred_fallthru
          _
        // Predicated region
        $region161: #{tpu_custom_call.1} parent=143 // pred_check
          %p978 = pneg %p543
        $region162: #{tpu_custom_call.1} parent=143 // pred_check_branch
          %980 = sbr.rel (%p978) target = $region164
        $region163: #{tpu_custom_call.1} parent=143 // pred_region
          %982 = dma.done [#allocation9], 2048
        $region164: #{tpu_custom_call.1} parent=143 // pred_fallthru
          _
        %p983 = pneg %p102
        %p984 = pneg %p99
        %p985 = pneg %p123
        %p986 = pneg %p120
        %p987 = pneg %p144
        %p988 = pneg %p141
        %p989 = pneg %p165
        %p990 = pneg %p162
        %p991 = pneg %p186
        %p992 = pneg %p183
        %p993 = pneg %p207
        %p994 = pneg %p204
        %p995 = pneg %p228
        %p996 = pneg %p225
        %p997 = pneg %p249
        %p998 = pneg %p246
        %p999 = pneg %p270
        %p1000 = pneg %p267
        %p1001 = pneg %p291
        %p1002 = pneg %p288
        %p1003 = pneg %p312
        %p1004 = pneg %p309
        %p1005 = pneg %p333
        %p1006 = pneg %p330
        %p1007 = pneg %p354
        %p1008 = pneg %p351
        %p1009 = pneg %p375
        %p1010 = pneg %p372
        %p1011 = pneg %p396
        %p1012 = pneg %p393
        %p1013 = pneg %p417
        %p1014 = pneg %p414
        %p1015 = pneg %p438
        %p1016 = pneg %p435
        %p1017 = pneg %p459
        %p1018 = pneg %p456
        %p1019 = pneg %p480
        %p1020 = pneg %p477
        %p1021 = pneg %p501
        %p1022 = pneg %p498
        %p1023 = pneg %p522
        %p1024 = pneg %p519
        %p1025 = pneg %p543
        %p1026 = pneg %p540
        %p1027 = pneg %p564
        %p1028 = pneg %p561
        %p1029 = pneg %p585
        %p1030 = pneg %p582
        %p1031 = pneg %p606
        %p1032 = pneg %p603
        %p1033 = pneg %p627
        %p1034 = pneg %p624
        %p1035 = pneg %p648
        %p1036 = pneg %p645
        %p1037 = pneg %p669
        %p1038 = pneg %p666
        %p1039 = pneg %p690
        %p1040 = pneg %p687
        %p1041 = pneg %p711
        %p1042 = pneg %p708
        %p1043 = pneg %p732
        %p1044 = pneg %p729
        %p1045 = pneg %p758
        %p1046 = pneg %p755
        %s1047 = sand.u32 %s745, 1
        %s1048 = scalar_lea.sflag [#allocation4], %s1047
        %s1049 = sand.u32 %s745, 1
        %s1050 = smul.addr %s1049, 8
        %s1051 = scalar_lea.vmem [#allocation11], %s1050
        %p1052 = pneg %p784
        %p1053 = pneg %p781
        %s1054 = sand.u32 %s771, 1
        %s1055 = scalar_lea.sflag [#allocation13], %s1054
        %s1056 = sand.u32 %s771, 1
        %s1057 = smul.addr %s1056, 8
        %s1058 = scalar_lea.vmem [#allocation12], %s1057
        %s1059 = smul.u32 %s86, 8
        %v1060 = vld [vmem:[%s1] sm:$0xff]
        %v1061 = vld [vmem:[%s1 + $0x8] sm:$0xff]
        %v1062 = vld [vmem:[#allocation2] sm:$0xff]
        %v1063 = vld [vmem:[#allocation2 + $0x8] sm:$0xff]
        %v1064 = vld [vmem:[#allocation2 + $0x10] sm:$0xff]
        %v1065 = vld [vmem:[#allocation2 + $0x18] sm:$0xff]
        %v1066 = vld [vmem:[#allocation2 + $0x20] sm:$0xff]
        %v1067 = vld [vmem:[#allocation2 + $0x28] sm:$0xff]
        %v1068 = vld [vmem:[#allocation2 + $0x30] sm:$0xff]
        %v1069 = vld [vmem:[#allocation2 + $0x38] sm:$0xff]
        %v1070 = vld [vmem:[#allocation2 + $0x40] sm:$0xff]
        %v1071 = vld [vmem:[#allocation2 + $0x48] sm:$0xff]
        %v1072 = vld [vmem:[#allocation2 + $0x50] sm:$0xff]
        %v1073 = vld [vmem:[#allocation2 + $0x58] sm:$0xff]
        %v1074 = vld [vmem:[#allocation2 + $0x60] sm:$0xff]
        %v1075 = vld [vmem:[#allocation2 + $0x68] sm:$0xff]
        %v1076 = vld [vmem:[#allocation2 + $0x70] sm:$0xff]
        %v1077 = vld [vmem:[#allocation2 + $0x78] sm:$0xff]
        %v1078 = vld [vmem:[#allocation2 + $0x80] sm:$0xff]
        %v1079 = vld [vmem:[#allocation2 + $0x88] sm:$0xff]
        %v1080 = vld [vmem:[#allocation2 + $0x90] sm:$0xff]
        %v1081 = vld [vmem:[#allocation2 + $0x98] sm:$0xff]
        %v1082 = vld [vmem:[#allocation2 + $0xa0] sm:$0xff]
        %v1083 = vld [vmem:[#allocation2 + $0xa8] sm:$0xff]
        %v1084 = vld [vmem:[#allocation2 + $0xb0] sm:$0xff]
        %v1085 = vld [vmem:[#allocation2 + $0xb8] sm:$0xff]
        %v1086 = vld [vmem:[#allocation2 + $0xc0] sm:$0xff]
        %v1087 = vld [vmem:[#allocation2 + $0xc8] sm:$0xff]
        %v1088 = vld [vmem:[#allocation2 + $0xd0] sm:$0xff]
        %v1089 = vld [vmem:[#allocation2 + $0xd8] sm:$0xff]
        %v1090 = vld [vmem:[#allocation2 + $0xe0] sm:$0xff]
        %v1091 = vld [vmem:[#allocation2 + $0xe8] sm:$0xff]
        %v1092 = vld [vmem:[#allocation2 + $0xf0] sm:$0xff]
        %v1093 = vld [vmem:[#allocation2 + $0xf8] sm:$0xff]
        %v1094 = vld [vmem:[#allocation2 + $0x100] sm:$0xff]
        %v1095 = vld [vmem:[#allocation2 + $0x108] sm:$0xff]
        %v1096 = vld [vmem:[#allocation2 + $0x110] sm:$0xff]
        %v1097 = vld [vmem:[#allocation2 + $0x118] sm:$0xff]
        %v1098 = vld [vmem:[#allocation2 + $0x120] sm:$0xff]
        %v1099 = vld [vmem:[#allocation2 + $0x128] sm:$0xff]
        %v1100 = vld [vmem:[#allocation2 + $0x130] sm:$0xff]
        %v1101 = vld [vmem:[#allocation2 + $0x138] sm:$0xff]
        %v1102 = vld [vmem:[#allocation2 + $0x140] sm:$0xff]
        %v1103 = vld [vmem:[#allocation2 + $0x148] sm:$0xff]
        %v1104 = vld [vmem:[#allocation2 + $0x150] sm:$0xff]
        %v1105 = vld [vmem:[#allocation2 + $0x158] sm:$0xff]
        %v1106 = vld [vmem:[#allocation2 + $0x160] sm:$0xff]
        %v1107 = vld [vmem:[#allocation2 + $0x168] sm:$0xff]
        %v1108 = vld [vmem:[#allocation2 + $0x170] sm:$0xff]
        %v1109 = vld [vmem:[#allocation2 + $0x178] sm:$0xff]
        %v1110 = vld [vmem:[%s5] sm:$0x7]
        %v1112 = vperm.slane %v1110, 0
        %v1113 = vperm.slane %v1110, 1
        %v1114 = vperm.slane %v1110, 2
        %1118 = vmatpush.msra.mxu0 %v1107
        %1119 = vmatpush.msra.mxu0 %v1104
        %1120 = vmatpush.msra.mxu0 %v1101
        %1121 = vmatpush.msra.mxu0 %v1098
        %1122 = vmatpush.msra.mxu0 %v1095
        %1123 = vmatpush.msra.mxu0 %v1092
        %1124 = vmatpush.msra.mxu0 %v1089
        %1125 = vmatpush.msra.mxu0 %v1086
        %1126 = vmatpush.msra.mxu0 %v1083
        %1127 = vmatpush.msra.mxu0 %v1080
        %1128 = vmatpush.msra.mxu0 %v1077
        %1129 = vmatpush.msra.mxu0 %v1074
        %1130 = vmatpush.msra.mxu0 %v1071
        %1131 = vmatpush.msra.mxu0 %v1068
        %1132 = vmatpush.msra.mxu0 %v1065
        %1133 = vmatpush.msra.mxu0 %v1062
        %1134 = vmatmul.f32.gmra.mxu0 %v1060
        %v1135 = vpop.f32.mrf.mxu0
        %v1136 = vadd.f32 %v1112, %v1135
        %1137 = vmatmul.f32.gmra.mxu0 %v1061
        %v1138 = vpop.f32.mrf.mxu0
        %v1139 = vadd.f32 %v1112, %v1138
        %1140 = vdwg.mxu0
        %1141 = vmatpush.msra.mxu0 %v1108
        %1142 = vmatpush.msra.mxu0 %v1105
        %1143 = vmatpush.msra.mxu0 %v1102
        %1144 = vmatpush.msra.mxu0 %v1099
        %1145 = vmatpush.msra.mxu0 %v1096
        %1146 = vmatpush.msra.mxu0 %v1093
        %1147 = vmatpush.msra.mxu0 %v1090
        %1148 = vmatpush.msra.mxu0 %v1087
        %1149 = vmatpush.msra.mxu0 %v1084
        %1150 = vmatpush.msra.mxu0 %v1081
        %1151 = vmatpush.msra.mxu0 %v1078
        %1152 = vmatpush.msra.mxu0 %v1075
        %1153 = vmatpush.msra.mxu0 %v1072
        %1154 = vmatpush.msra.mxu0 %v1069
        %1155 = vmatpush.msra.mxu0 %v1066
        %1156 = vmatpush.msra.mxu0 %v1063
        %1157 = vmatmul.f32.gmra.mxu0 %v1060
        %v1158 = vpop.f32.mrf.mxu0
        %v1159 = vadd.f32 %v1113, %v1158
        %1160 = vmatmul.f32.gmra.mxu0 %v1061
        %v1161 = vpop.f32.mrf.mxu0
        %v1162 = vadd.f32 %v1113, %v1161
        %1163 = vdwg.mxu0
        %1164 = vmatpush.msra.mxu0 %v1109
        %1165 = vmatpush.msra.mxu0 %v1106
        %1166 = vmatpush.msra.mxu0 %v1103
        %1167 = vmatpush.msra.mxu0 %v1100
        %1168 = vmatpush.msra.mxu0 %v1097
        %1169 = vmatpush.msra.mxu0 %v1094
        %1170 = vmatpush.msra.mxu0 %v1091
        %1171 = vmatpush.msra.mxu0 %v1088
        %1172 = vmatpush.msra.mxu0 %v1085
        %1173 = vmatpush.msra.mxu0 %v1082
        %1174 = vmatpush.msra.mxu0 %v1079
        %1175 = vmatpush.msra.mxu0 %v1076
        %1176 = vmatpush.msra.mxu0 %v1073
        %1177 = vmatpush.msra.mxu0 %v1070
        %1178 = vmatpush.msra.mxu0 %v1067
        %1179 = vmatpush.msra.mxu0 %v1064
        %1180 = vmatmul.f32.gmra.mxu0 %v1060
        %v1181 = vpop.f32.mrf.mxu0
        %v1182 = vadd.f32 %v1114, %v1181
        %1183 = vmatmul.f32.gmra.mxu0 %v1061
        %v1184 = vpop.f32.mrf.mxu0
        %v1185 = vadd.f32 %v1114, %v1184
        %1186 = vdwg.mxu0
        %v1187 = vld [vmem:[%s7] sm:$0xff]
        %v1188 = vld [vmem:[%s7 + $0x8] sm:$0xff]
        %v1189 = vld [vmem:[#allocation5] sm:$0xff]
        %v1190 = vld [vmem:[#allocation5 + $0x8] sm:$0xff]
        %v1191 = vld [vmem:[#allocation5 + $0x10] sm:$0xff]
        %v1192 = vld [vmem:[#allocation5 + $0x18] sm:$0xff]
        %v1193 = vld [vmem:[#allocation5 + $0x20] sm:$0xff]
        %v1194 = vld [vmem:[#allocation5 + $0x28] sm:$0xff]
        %v1195 = vld [vmem:[#allocation5 + $0x30] sm:$0xff]
        %v1196 = vld [vmem:[#allocation5 + $0x38] sm:$0xff]
        %v1197 = vld [vmem:[#allocation5 + $0x40] sm:$0xff]
        %v1198 = vld [vmem:[#allocation5 + $0x48] sm:$0xff]
        %v1199 = vld [vmem:[#allocation5 + $0x50] sm:$0xff]
        %v1200 = vld [vmem:[#allocation5 + $0x58] sm:$0xff]
        %v1201 = vld [vmem:[#allocation5 + $0x60] sm:$0xff]
        %v1202 = vld [vmem:[#allocation5 + $0x68] sm:$0xff]
        %v1203 = vld [vmem:[#allocation5 + $0x70] sm:$0xff]
        %v1204 = vld [vmem:[#allocation5 + $0x78] sm:$0xff]
        %v1205 = vld [vmem:[#allocation5 + $0x80] sm:$0xff]
        %v1206 = vld [vmem:[#allocation5 + $0x88] sm:$0xff]
        %v1207 = vld [vmem:[#allocation5 + $0x90] sm:$0xff]
        %v1208 = vld [vmem:[#allocation5 + $0x98] sm:$0xff]
        %v1209 = vld [vmem:[#allocation5 + $0xa0] sm:$0xff]
        %v1210 = vld [vmem:[#allocation5 + $0xa8] sm:$0xff]
        %v1211 = vld [vmem:[#allocation5 + $0xb0] sm:$0xff]
        %v1212 = vld [vmem:[#allocation5 + $0xb8] sm:$0xff]
        %v1213 = vld [vmem:[#allocation5 + $0xc0] sm:$0xff]
        %v1214 = vld [vmem:[#allocation5 + $0xc8] sm:$0xff]
        %v1215 = vld [vmem:[#allocation5 + $0xd0] sm:$0xff]
        %v1216 = vld [vmem:[#allocation5 + $0xd8] sm:$0xff]
        %v1217 = vld [vmem:[#allocation5 + $0xe0] sm:$0xff]
        %v1218 = vld [vmem:[#allocation5 + $0xe8] sm:$0xff]
        %v1219 = vld [vmem:[#allocation5 + $0xf0] sm:$0xff]
        %v1220 = vld [vmem:[#allocation5 + $0xf8] sm:$0xff]
        %v1221 = vld [vmem:[#allocation5 + $0x100] sm:$0xff]
        %v1222 = vld [vmem:[#allocation5 + $0x108] sm:$0xff]
        %v1223 = vld [vmem:[#allocation5 + $0x110] sm:$0xff]
        %v1224 = vld [vmem:[#allocation5 + $0x118] sm:$0xff]
        %v1225 = vld [vmem:[#allocation5 + $0x120] sm:$0xff]
        %v1226 = vld [vmem:[#allocation5 + $0x128] sm:$0xff]
        %v1227 = vld [vmem:[#allocation5 + $0x130] sm:$0xff]
        %v1228 = vld [vmem:[#allocation5 + $0x138] sm:$0xff]
        %v1229 = vld [vmem:[#allocation5 + $0x140] sm:$0xff]
        %v1230 = vld [vmem:[#allocation5 + $0x148] sm:$0xff]
        %v1231 = vld [vmem:[#allocation5 + $0x150] sm:$0xff]
        %v1232 = vld [vmem:[#allocation5 + $0x158] sm:$0xff]
        %v1233 = vld [vmem:[#allocation5 + $0x160] sm:$0xff]
        %v1234 = vld [vmem:[#allocation5 + $0x168] sm:$0xff]
        %v1235 = vld [vmem:[#allocation5 + $0x170] sm:$0xff]
        %v1236 = vld [vmem:[#allocation5 + $0x178] sm:$0xff]
        %v1237 = vld [vmem:[%s11] sm:$0x7]
        %v1239 = vperm.slane %v1237, 0
        %v1240 = vperm.slane %v1237, 1
        %v1241 = vperm.slane %v1237, 2
        %1245 = vmatpush.msra.mxu0 %v1234
        %1246 = vmatpush.msra.mxu0 %v1231
        %1247 = vmatpush.msra.mxu0 %v1228
        %1248 = vmatpush.msra.mxu0 %v1225
        %1249 = vmatpush.msra.mxu0 %v1222
        %1250 = vmatpush.msra.mxu0 %v1219
        %1251 = vmatpush.msra.mxu0 %v1216
        %1252 = vmatpush.msra.mxu0 %v1213
        %1253 = vmatpush.msra.mxu0 %v1210
        %1254 = vmatpush.msra.mxu0 %v1207
        %1255 = vmatpush.msra.mxu0 %v1204
        %1256 = vmatpush.msra.mxu0 %v1201
        %1257 = vmatpush.msra.mxu0 %v1198
        %1258 = vmatpush.msra.mxu0 %v1195
        %1259 = vmatpush.msra.mxu0 %v1192
        %1260 = vmatpush.msra.mxu0 %v1189
        %1261 = vmatmul.f32.gmra.mxu0 %v1187
        %v1262 = vpop.f32.mrf.mxu0
        %v1263 = vadd.f32 %v1239, %v1262
        %1264 = vmatmul.f32.gmra.mxu0 %v1188
        %v1265 = vpop.f32.mrf.mxu0
        %v1266 = vadd.f32 %v1239, %v1265
        %1267 = vdwg.mxu0
        %1268 = vmatpush.msra.mxu0 %v1235
        %1269 = vmatpush.msra.mxu0 %v1232
        %1270 = vmatpush.msra.mxu0 %v1229
        %1271 = vmatpush.msra.mxu0 %v1226
        %1272 = vmatpush.msra.mxu0 %v1223
        %1273 = vmatpush.msra.mxu0 %v1220
        %1274 = vmatpush.msra.mxu0 %v1217
        %1275 = vmatpush.msra.mxu0 %v1214
        %1276 = vmatpush.msra.mxu0 %v1211
        %1277 = vmatpush.msra.mxu0 %v1208
        %1278 = vmatpush.msra.mxu0 %v1205
        %1279 = vmatpush.msra.mxu0 %v1202
        %1280 = vmatpush.msra.mxu0 %v1199
        %1281 = vmatpush.msra.mxu0 %v1196
        %1282 = vmatpush.msra.mxu0 %v1193
        %1283 = vmatpush.msra.mxu0 %v1190
        %1284 = vmatmul.f32.gmra.mxu0 %v1187
        %v1285 = vpop.f32.mrf.mxu0
        %v1286 = vadd.f32 %v1240, %v1285
        %1287 = vmatmul.f32.gmra.mxu0 %v1188
        %v1288 = vpop.f32.mrf.mxu0
        %v1289 = vadd.f32 %v1240, %v1288
        %1290 = vdwg.mxu0
        %1291 = vmatpush.msra.mxu0 %v1236
        %1292 = vmatpush.msra.mxu0 %v1233
        %1293 = vmatpush.msra.mxu0 %v1230
        %1294 = vmatpush.msra.mxu0 %v1227
        %1295 = vmatpush.msra.mxu0 %v1224
        %1296 = vmatpush.msra.mxu0 %v1221
        %1297 = vmatpush.msra.mxu0 %v1218
        %1298 = vmatpush.msra.mxu0 %v1215
        %1299 = vmatpush.msra.mxu0 %v1212
        %1300 = vmatpush.msra.mxu0 %v1209
        %1301 = vmatpush.msra.mxu0 %v1206
        %1302 = vmatpush.msra.mxu0 %v1203
        %1303 = vmatpush.msra.mxu0 %v1200
        %1304 = vmatpush.msra.mxu0 %v1197
        %1305 = vmatpush.msra.mxu0 %v1194
        %1306 = vmatpush.msra.mxu0 %v1191
        %1307 = vmatmul.f32.gmra.mxu0 %v1187
        %v1308 = vpop.f32.mrf.mxu0
        %v1309 = vadd.f32 %v1241, %v1308
        %1310 = vmatmul.f32.gmra.mxu0 %v1188
        %v1311 = vpop.f32.mrf.mxu0
        %v1312 = vadd.f32 %v1241, %v1311
        %1313 = vdwg.mxu0
        %v1314 = vld [vmem:[%s13] sm:$0xff]
        %v1315 = vld [vmem:[%s13 + $0x8] sm:$0xff]
        %v1316 = vld [vmem:[%s13 + $0x10] sm:$0xff]
        %v1317 = vld [vmem:[%s13 + $0x18] sm:$0xff]
        %v1318 = vld [vmem:[#allocation7] sm:$0xff]
        %v1319 = vld [vmem:[#allocation7 + $0x8] sm:$0xff]
        %v1320 = vld [vmem:[#allocation7 + $0x10] sm:$0xff]
        %v1321 = vld [vmem:[#allocation7 + $0x18] sm:$0xff]
        %v1322 = vld [vmem:[#allocation7 + $0x20] sm:$0xff]
        %v1323 = vld [vmem:[#allocation7 + $0x28] sm:$0xff]
        %v1324 = vld [vmem:[#allocation7 + $0x30] sm:$0xff]
        %v1325 = vld [vmem:[#allocation7 + $0x38] sm:$0xff]
        %v1326 = vld [vmem:[#allocation7 + $0x40] sm:$0xff]
        %v1327 = vld [vmem:[#allocation7 + $0x48] sm:$0xff]
        %v1328 = vld [vmem:[#allocation7 + $0x50] sm:$0xff]
        %v1329 = vld [vmem:[#allocation7 + $0x58] sm:$0xff]
        %v1330 = vld [vmem:[#allocation7 + $0x60] sm:$0xff]
        %v1331 = vld [vmem:[#allocation7 + $0x68] sm:$0xff]
        %v1332 = vld [vmem:[#allocation7 + $0x70] sm:$0xff]
        %v1333 = vld [vmem:[#allocation7 + $0x78] sm:$0xff]
        %1334 = vmatpush.msra.mxu0 %v1333
        %1335 = vmatpush.msra.mxu0 %v1332
        %1336 = vmatpush.msra.mxu0 %v1331
        %1337 = vmatpush.msra.mxu0 %v1330
        %1338 = vmatpush.msra.mxu0 %v1329
        %1339 = vmatpush.msra.mxu0 %v1328
        %1340 = vmatpush.msra.mxu0 %v1327
        %1341 = vmatpush.msra.mxu0 %v1326
        %1342 = vmatpush.msra.mxu0 %v1325
        %1343 = vmatpush.msra.mxu0 %v1324
        %1344 = vmatpush.msra.mxu0 %v1323
        %1345 = vmatpush.msra.mxu0 %v1322
        %1346 = vmatpush.msra.mxu0 %v1321
        %1347 = vmatpush.msra.mxu0 %v1320
        %1348 = vmatpush.msra.mxu0 %v1319
        %1349 = vmatpush.msra.mxu0 %v1318
        %1350 = vmatmul.f32.gmra.mxu0 %v1314
        %v1351 = vpop.f32.mrf.mxu0
        %v1352 = vadd.f32 0.0, %v1351
        %1353 = vmatmul.f32.gmra.mxu0 %v1315
        %v1354 = vpop.f32.mrf.mxu0
        %v1355 = vadd.f32 0.0, %v1354
        %1356 = vmatmul.f32.gmra.mxu0 %v1316
        %v1357 = vpop.f32.mrf.mxu0
        %v1358 = vadd.f32 0.0, %v1357
        %1359 = vmatmul.f32.gmra.mxu0 %v1317
        %v1360 = vpop.f32.mrf.mxu0
        %v1361 = vadd.f32 0.0, %v1360
        %1362 = vdwg.mxu0
        %v1363 = vld [vmem:[%s21] sm:$0xff]
        %v1364 = vld [vmem:[%s21 + $0x8] sm:$0xff]
        %v1365 = vld [vmem:[%s21 + $0x10] sm:$0xff]
        %v1366 = vld [vmem:[%s21 + $0x18] sm:$0xff]
        %v1367 = vld [vmem:[%s23] sm:$0xff]
        %v1368 = vld [vmem:[%s23 + $0x8] sm:$0xff]
        %v1369 = vld [vmem:[%s23 + $0x10] sm:$0xff]
        %v1370 = vld [vmem:[%s23 + $0x18] sm:$0xff]
        %v1371 = vld [vmem:[%s25] sm:$0x1]
        %v1372 = vlaneseq
        %v1373 = vand.u32 %v1372, 127
        %1374 = vset.pattern.permute.xlu0 0
        %1375 = vperm.xlu0 %1374, %v1363
        %v1376 = vpop.permute.xlu0 %1375
        %1377 = vset.pattern.permute.xlu0 0
        %1378 = vperm.xlu0 %1377, %v1364
        %v1379 = vpop.permute.xlu0 %1378
        %1380 = vset.pattern.permute.xlu0 0
        %1381 = vperm.xlu0 %1380, %v1365
        %v1382 = vpop.permute.xlu0 %1381
        %1383 = vset.pattern.permute.xlu0 0
        %1384 = vperm.xlu0 %1383, %v1366
        %v1385 = vpop.permute.xlu0 %1384
        %vm1386 = vcmp.eq.s32.totalorder %v1373, %v1376
        %vm1387 = vcmp.eq.s32.totalorder %v1373, %v1379
        %vm1388 = vcmp.eq.s32.totalorder %v1373, %v1382
        %vm1389 = vcmp.eq.s32.totalorder %v1373, %v1385
        %v1390 = vsel %vm1386, 1, 0
        %v1391 = vsel %vm1387, 1, 0
        %v1392 = vsel %vm1388, 1, 0
        %v1393 = vsel %vm1389, 1, 0
        %v1394 = vcvt.s32.f32 %v1390
        %v1395 = vcvt.s32.f32 %v1391
        %v1396 = vcvt.s32.f32 %v1392
        %v1397 = vcvt.s32.f32 %v1393
        %1398 = vset.pattern.permute.xlu0 0
        %1399 = vperm.xlu0 %1398, %v1367
        %v1400 = vpop.permute.xlu0 %1399
        %1401 = vset.pattern.permute.xlu0 0
        %1402 = vperm.xlu0 %1401, %v1368
        %v1403 = vpop.permute.xlu0 %1402
        %1404 = vset.pattern.permute.xlu0 0
        %1405 = vperm.xlu0 %1404, %v1369
        %v1406 = vpop.permute.xlu0 %1405
        %1407 = vset.pattern.permute.xlu0 0
        %1408 = vperm.xlu0 %1407, %v1370
        %v1409 = vpop.permute.xlu0 %1408
        %vm1410 = vcmp.eq.s32.totalorder %v1373, %v1400
        %vm1411 = vcmp.eq.s32.totalorder %v1373, %v1403
        %vm1412 = vcmp.eq.s32.totalorder %v1373, %v1406
        %vm1413 = vcmp.eq.s32.totalorder %v1373, %v1409
        %v1414 = vsel %vm1410, 1, 0
        %v1415 = vsel %vm1411, 1, 0
        %v1416 = vsel %vm1412, 1, 0
        %v1417 = vsel %vm1413, 1, 0
        %v1418 = vcvt.s32.f32 %v1414
        %v1419 = vcvt.s32.f32 %v1415
        %v1420 = vcvt.s32.f32 %v1416
        %v1421 = vcvt.s32.f32 %v1417
        %v1422 = vlaneseq
        %v1423 = vshrl.u32 %v1422, 7
        %v1424 = vstv %s1059
        %v1425 = vadd.s32 %v1423, %v1424
        %v1426 = vperm.slane %v1371, 0
        %vm1427 = vcmp.eq.s32.totalorder %v1425, %v1426
        %v1428 = vsel %vm1427, 1, 0
        %v1429 = vcvt.s32.f32 %v1428
        %vm1430 = vcmask 130048
        %v1432 = vsel %vm1430, %v1418, 0
        %v1435 = vsel %vm1430, %v1419, 0
        %v1438 = vsel %vm1430, %v1420, 0
        %v1441 = vsel %vm1430, %v1421, 0
        %1443 = vmatpush.msra.mxu0 0.0
        %1444 = vmatpush.msra.mxu0 0.0
        %1445 = vmatpush.msra.mxu0 0.0
        %1446 = vmatpush.msra.mxu0 0.0
        %1447 = vmatpush.msra.mxu0 0.0
        %1448 = vmatpush.msra.mxu0 0.0
        %1449 = vmatpush.msra.mxu0 0.0
        %1450 = vmatpush.msra.mxu0 0.0
        %1451 = vmatpush.msra.mxu0 0.0
        %1452 = vmatpush.msra.mxu0 0.0
        %1453 = vmatpush.msra.mxu0 0.0
        %1454 = vmatpush.msra.mxu0 0.0
        %1455 = vmatpush.msra.mxu0 0.0
        %1456 = vmatpush.msra.mxu0 0.0
        %1457 = vmatpush.msra.mxu0 %v1266
        %1458 = vmatpush.msra.mxu0 %v1263
        %1459 = vmatmul.f32.gmra.mxu0 %v1432
        %v1460 = vpop.f32.mrf.mxu0
        %v1461 = vadd.f32 0.0, %v1460
        %1462 = vmatmul.f32.gmra.mxu0 %v1435
        %v1463 = vpop.f32.mrf.mxu0
        %v1464 = vadd.f32 0.0, %v1463
        %1465 = vmatmul.f32.gmra.mxu0 %v1438
        %v1466 = vpop.f32.mrf.mxu0
        %v1467 = vadd.f32 0.0, %v1466
        %1468 = vmatmul.f32.gmra.mxu0 %v1441
        %v1469 = vpop.f32.mrf.mxu0
        %v1470 = vadd.f32 0.0, %v1469
        %1471 = vdwg.mxu0
        %v1473 = vsel %vm1430, %v1394, 0
        %v1476 = vsel %vm1430, %v1395, 0
        %v1479 = vsel %vm1430, %v1396, 0
        %v1482 = vsel %vm1430, %v1397, 0
        %1484 = vmatpush.msra.mxu0 0.0
        %1485 = vmatpush.msra.mxu0 0.0
        %1486 = vmatpush.msra.mxu0 0.0
        %1487 = vmatpush.msra.mxu0 0.0
        %1488 = vmatpush.msra.mxu0 0.0
        %1489 = vmatpush.msra.mxu0 0.0
        %1490 = vmatpush.msra.mxu0 0.0
        %1491 = vmatpush.msra.mxu0 0.0
        %1492 = vmatpush.msra.mxu0 0.0
        %1493 = vmatpush.msra.mxu0 0.0
        %1494 = vmatpush.msra.mxu0 0.0
        %1495 = vmatpush.msra.mxu0 0.0
        %1496 = vmatpush.msra.mxu0 0.0
        %1497 = vmatpush.msra.mxu0 0.0
        %1498 = vmatpush.msra.mxu0 %v1139
        %1499 = vmatpush.msra.mxu0 %v1136
        %1500 = vmatmul.f32.gmra.mxu0 %v1473
        %v1501 = vpop.f32.mrf.mxu0
        %v1502 = vadd.f32 %v1461, %v1501
        %1503 = vmatmul.f32.gmra.mxu0 %v1476
        %v1504 = vpop.f32.mrf.mxu0
        %v1505 = vadd.f32 %v1464, %v1504
        %1506 = vmatmul.f32.gmra.mxu0 %v1479
        %v1507 = vpop.f32.mrf.mxu0
        %v1508 = vadd.f32 %v1467, %v1507
        %1509 = vmatmul.f32.gmra.mxu0 %v1482
        %v1510 = vpop.f32.mrf.mxu0
        %v1511 = vadd.f32 %v1470, %v1510
        %1512 = vdwg.mxu0
        %v1513 = vadd.f32 %v1502, %v1352
        %v1514 = vadd.f32 %v1505, %v1355
        %v1515 = vadd.f32 %v1508, %v1358
        %v1516 = vadd.f32 %v1511, %v1361
        %vm1517 = vcmp.gt.f32.partialorder %v1513, 0.0
        %vm1518 = vcmp.gt.f32.partialorder %v1514, 0.0
        %vm1519 = vcmp.gt.f32.partialorder %v1515, 0.0
        %vm1520 = vcmp.gt.f32.partialorder %v1516, 0.0
        %v1521 = vmul.f32 %v1513, 0.2
        %v1522 = vmul.f32 %v1514, 0.2
        %v1523 = vmul.f32 %v1515, 0.2
        %v1524 = vmul.f32 %v1516, 0.2
        %v1525 = vsel %vm1517, %v1513, %v1521
        %v1526 = vsel %vm1518, %v1514, %v1522
        %v1527 = vsel %vm1519, %v1515, %v1523
        %v1528 = vsel %vm1520, %v1516, %v1524
        %v1529 = vld [vmem:[%s17] sm:$0x1]
        %v1531 = vperm.slane %v1529, 0
        %v1533 = vmul.f32 %v1525, %v1531
        %v1534 = vmul.f32 %v1526, %v1531
        %v1535 = vmul.f32 %v1527, %v1531
        %v1536 = vmul.f32 %v1528, %v1531
        %1537 = vadd.xlane.f32.xlu0 %v1533
        %v1538 = vpop.xlane.xlu0 %1537
        %1539 = vadd.xlane.f32.xlu0 %v1534
        %v1540 = vpop.xlane.xlu0 %1539
        %1541 = vadd.xlane.f32.xlu0 %v1535
        %v1542 = vpop.xlane.xlu0 %1541
        %1543 = vadd.xlane.f32.xlu0 %v1536
        %v1544 = vpop.xlane.xlu0 %1543
        %v1545 = vmul.f32 %v1538, %v1394
        %v1546 = vmul.f32 %v1540, %v1395
        %v1547 = vmul.f32 %v1542, %v1396
        %v1548 = vmul.f32 %v1544, %v1397
        %vm1549 = vcmask 261120
        %v1551 = vsel %vm1549, %v1429, 0
        %1553 = vmatpush.msra.mxu0 0.0
        %1554 = vmatpush.msra.mxu0 0.0
        %1555 = vmatpush.msra.mxu0 0.0
        %1556 = vmatpush.msra.mxu0 0.0
        %1557 = vmatpush.msra.mxu0 0.0
        %1558 = vmatpush.msra.mxu0 0.0
        %1559 = vmatpush.msra.mxu0 0.0
        %1560 = vmatpush.msra.mxu0 0.0
        %1561 = vmatpush.msra.mxu0 0.0
        %1562 = vmatpush.msra.mxu0 0.0
        %1563 = vmatpush.msra.mxu0 0.0
        %1564 = vmatpush.msra.mxu0 0.0
        %1565 = vmatpush.msra.mxu0 %v1548
        %1566 = vmatpush.msra.mxu0 %v1547
        %1567 = vmatpush.msra.mxu0 %v1546
        %1568 = vmatpush.msra.mxu0 %v1545
        %1569 = vmatmul.f32.gmra.mxu0 %v1551
        %v1570 = vpop.f32.mrf.mxu0
        %v1571 = vadd.f32 0.0, %v1570
        %1572 = vdwg.mxu0
        %1573 = vmatpush.msra.mxu0 0.0
        %1574 = vmatpush.msra.mxu0 0.0
        %1575 = vmatpush.msra.mxu0 0.0
        %1576 = vmatpush.msra.mxu0 0.0
        %1577 = vmatpush.msra.mxu0 0.0
        %1578 = vmatpush.msra.mxu0 0.0
        %1579 = vmatpush.msra.mxu0 0.0
        %1580 = vmatpush.msra.mxu0 0.0
        %1581 = vmatpush.msra.mxu0 0.0
        %1582 = vmatpush.msra.mxu0 0.0
        %1583 = vmatpush.msra.mxu0 0.0
        %1584 = vmatpush.msra.mxu0 0.0
        %1585 = vmatpush.msra.mxu0 %v1397
        %1586 = vmatpush.msra.mxu0 %v1396
        %1587 = vmatpush.msra.mxu0 %v1395
        %1588 = vmatpush.msra.mxu0 %v1394
        %1589 = vmatmul.f32.gmra.mxu0 %v1551
        %v1590 = vpop.f32.mrf.mxu0
        %v1591 = vadd.f32 0.0, %v1590
        %1592 = vdwg.mxu0
        %vm1593 = vcmp.gt.f32.partialorder %v1591, 0.5
        %v1594 = vsel %vm1593, %v1571, -1e+30
        %v1595 = vsel %vm1430, %v1594, -inf
        %1596 = vmax.xlane.f32.xlu0 %v1595
        %v1597 = vpop.xlane.xlu0 %1596
        %v1598 = vsub.f32 %v1594, %v1597
        %v1599 = vmul.f32 %v1598, 1.442695
        %v1600 = vpow.pop %v1599
        %v1601 = vmul.f32 %v1600, %v1591
        %v1602 = vsel %vm1430, %v1601, 0.0
        %1603 = vadd.xlane.f32.xlu0 %v1602
        %v1604 = vpop.xlane.xlu0 %1603
        %vm1605 = vcmp.gt.f32.partialorder %v1604, 0.0
        %v1606 = vsel %vm1605, %v1604, 1.0
        %v1607 = vrcp.pop %v1606
        %v1608 = vmul.f32 %v1601, %v1607
        %v1609 = vld [vmem:[%s19] sm:$0x1]
        %v1611 = vperm.slane %v1609, 0
        %v1614 = vsel %vm1430, %v1608, 0
        %1616 = vmatpush.msra.mxu0 0.0
        %1617 = vmatpush.msra.mxu0 0.0
        %1618 = vmatpush.msra.mxu0 0.0
        %1619 = vmatpush.msra.mxu0 0.0
        %1620 = vmatpush.msra.mxu0 0.0
        %1621 = vmatpush.msra.mxu0 0.0
        %1622 = vmatpush.msra.mxu0 0.0
        %1623 = vmatpush.msra.mxu0 0.0
        %1624 = vmatpush.msra.mxu0 0.0
        %1625 = vmatpush.msra.mxu0 0.0
        %1626 = vmatpush.msra.mxu0 0.0
        %1627 = vmatpush.msra.mxu0 0.0
        %1628 = vmatpush.msra.mxu0 0.0
        %1629 = vmatpush.msra.mxu0 0.0
        %1630 = vmatpush.msra.mxu0 %v1139
        %1631 = vmatpush.msra.mxu0 %v1136
        %1632 = vmatmul.f32.gmra.mxu0 %v1614
        %v1633 = vpop.f32.mrf.mxu0
        %v1634 = vadd.f32 %v1611, %v1633
        %1635 = vdwg.mxu0
        %v1636 = vld [vmem:[%s27] sm:$0xff]
        %v1637 = vld [vmem:[%s27 + $0x8] sm:$0xff]
        %v1638 = vld [vmem:[%s27 + $0x10] sm:$0xff]
        %v1639 = vld [vmem:[%s27 + $0x18] sm:$0xff]
        %v1640 = vld [vmem:[#allocation8] sm:$0xff]
        %v1641 = vld [vmem:[#allocation8 + $0x8] sm:$0xff]
        %v1642 = vld [vmem:[#allocation8 + $0x10] sm:$0xff]
        %v1643 = vld [vmem:[#allocation8 + $0x18] sm:$0xff]
        %v1644 = vld [vmem:[#allocation8 + $0x20] sm:$0xff]
        %v1645 = vld [vmem:[#allocation8 + $0x28] sm:$0xff]
        %v1646 = vld [vmem:[#allocation8 + $0x30] sm:$0xff]
        %v1647 = vld [vmem:[#allocation8 + $0x38] sm:$0xff]
        %v1648 = vld [vmem:[#allocation8 + $0x40] sm:$0xff]
        %v1649 = vld [vmem:[#allocation8 + $0x48] sm:$0xff]
        %v1650 = vld [vmem:[#allocation8 + $0x50] sm:$0xff]
        %v1651 = vld [vmem:[#allocation8 + $0x58] sm:$0xff]
        %v1652 = vld [vmem:[#allocation8 + $0x60] sm:$0xff]
        %v1653 = vld [vmem:[#allocation8 + $0x68] sm:$0xff]
        %v1654 = vld [vmem:[#allocation8 + $0x70] sm:$0xff]
        %v1655 = vld [vmem:[#allocation8 + $0x78] sm:$0xff]
        %1656 = vmatpush.msra.mxu0 %v1655
        %1657 = vmatpush.msra.mxu0 %v1654
        %1658 = vmatpush.msra.mxu0 %v1653
        %1659 = vmatpush.msra.mxu0 %v1652
        %1660 = vmatpush.msra.mxu0 %v1651
        %1661 = vmatpush.msra.mxu0 %v1650
        %1662 = vmatpush.msra.mxu0 %v1649
        %1663 = vmatpush.msra.mxu0 %v1648
        %1664 = vmatpush.msra.mxu0 %v1647
        %1665 = vmatpush.msra.mxu0 %v1646
        %1666 = vmatpush.msra.mxu0 %v1645
        %1667 = vmatpush.msra.mxu0 %v1644
        %1668 = vmatpush.msra.mxu0 %v1643
        %1669 = vmatpush.msra.mxu0 %v1642
        %1670 = vmatpush.msra.mxu0 %v1641
        %1671 = vmatpush.msra.mxu0 %v1640
        %1672 = vmatmul.f32.gmra.mxu0 %v1636
        %v1673 = vpop.f32.mrf.mxu0
        %v1674 = vadd.f32 0.0, %v1673
        %1675 = vmatmul.f32.gmra.mxu0 %v1637
        %v1676 = vpop.f32.mrf.mxu0
        %v1677 = vadd.f32 0.0, %v1676
        %1678 = vmatmul.f32.gmra.mxu0 %v1638
        %v1679 = vpop.f32.mrf.mxu0
        %v1680 = vadd.f32 0.0, %v1679
        %1681 = vmatmul.f32.gmra.mxu0 %v1639
        %v1682 = vpop.f32.mrf.mxu0
        %v1683 = vadd.f32 0.0, %v1682
        %1684 = vdwg.mxu0
        %v1685 = vld [vmem:[%s35] sm:$0xff]
        %v1686 = vld [vmem:[%s35 + $0x8] sm:$0xff]
        %v1687 = vld [vmem:[%s35 + $0x10] sm:$0xff]
        %v1688 = vld [vmem:[%s35 + $0x18] sm:$0xff]
        %v1689 = vld [vmem:[%s37] sm:$0xff]
        %v1690 = vld [vmem:[%s37 + $0x8] sm:$0xff]
        %v1691 = vld [vmem:[%s37 + $0x10] sm:$0xff]
        %v1692 = vld [vmem:[%s37 + $0x18] sm:$0xff]
        %v1693 = vld [vmem:[%s39] sm:$0x1]
        %1694 = vset.pattern.permute.xlu0 0
        %1695 = vperm.xlu0 %1694, %v1685
        %v1696 = vpop.permute.xlu0 %1695
        %1697 = vset.pattern.permute.xlu0 0
        %1698 = vperm.xlu0 %1697, %v1686
        %v1699 = vpop.permute.xlu0 %1698
        %1700 = vset.pattern.permute.xlu0 0
        %1701 = vperm.xlu0 %1700, %v1687
        %v1702 = vpop.permute.xlu0 %1701
        %1703 = vset.pattern.permute.xlu0 0
        %1704 = vperm.xlu0 %1703, %v1688
        %v1705 = vpop.permute.xlu0 %1704
        %vm1706 = vcmp.eq.s32.totalorder %v1373, %v1696
        %vm1707 = vcmp.eq.s32.totalorder %v1373, %v1699
        %vm1708 = vcmp.eq.s32.totalorder %v1373, %v1702
        %vm1709 = vcmp.eq.s32.totalorder %v1373, %v1705
        %v1710 = vsel %vm1706, 1, 0
        %v1711 = vsel %vm1707, 1, 0
        %v1712 = vsel %vm1708, 1, 0
        %v1713 = vsel %vm1709, 1, 0
        %v1714 = vcvt.s32.f32 %v1710
        %v1715 = vcvt.s32.f32 %v1711
        %v1716 = vcvt.s32.f32 %v1712
        %v1717 = vcvt.s32.f32 %v1713
        %1718 = vset.pattern.permute.xlu0 0
        %1719 = vperm.xlu0 %1718, %v1689
        %v1720 = vpop.permute.xlu0 %1719
        %1721 = vset.pattern.permute.xlu0 0
        %1722 = vperm.xlu0 %1721, %v1690
        %v1723 = vpop.permute.xlu0 %1722
        %1724 = vset.pattern.permute.xlu0 0
        %1725 = vperm.xlu0 %1724, %v1691
        %v1726 = vpop.permute.xlu0 %1725
        %1727 = vset.pattern.permute.xlu0 0
        %1728 = vperm.xlu0 %1727, %v1692
        %v1729 = vpop.permute.xlu0 %1728
        %vm1730 = vcmp.eq.s32.totalorder %v1373, %v1720
        %vm1731 = vcmp.eq.s32.totalorder %v1373, %v1723
        %vm1732 = vcmp.eq.s32.totalorder %v1373, %v1726
        %vm1733 = vcmp.eq.s32.totalorder %v1373, %v1729
        %v1734 = vsel %vm1730, 1, 0
        %v1735 = vsel %vm1731, 1, 0
        %v1736 = vsel %vm1732, 1, 0
        %v1737 = vsel %vm1733, 1, 0
        %v1738 = vcvt.s32.f32 %v1734
        %v1739 = vcvt.s32.f32 %v1735
        %v1740 = vcvt.s32.f32 %v1736
        %v1741 = vcvt.s32.f32 %v1737
        %v1742 = vperm.slane %v1693, 0
        %vm1743 = vcmp.eq.s32.totalorder %v1425, %v1742
        %v1744 = vsel %vm1743, 1, 0
        %v1745 = vcvt.s32.f32 %v1744
        %v1747 = vsel %vm1430, %v1738, 0
        %v1750 = vsel %vm1430, %v1739, 0
        %v1753 = vsel %vm1430, %v1740, 0
        %v1756 = vsel %vm1430, %v1741, 0
        %1758 = vmatpush.msra.mxu0 0.0
        %1759 = vmatpush.msra.mxu0 0.0
        %1760 = vmatpush.msra.mxu0 0.0
        %1761 = vmatpush.msra.mxu0 0.0
        %1762 = vmatpush.msra.mxu0 0.0
        %1763 = vmatpush.msra.mxu0 0.0
        %1764 = vmatpush.msra.mxu0 0.0
        %1765 = vmatpush.msra.mxu0 0.0
        %1766 = vmatpush.msra.mxu0 0.0
        %1767 = vmatpush.msra.mxu0 0.0
        %1768 = vmatpush.msra.mxu0 0.0
        %1769 = vmatpush.msra.mxu0 0.0
        %1770 = vmatpush.msra.mxu0 0.0
        %1771 = vmatpush.msra.mxu0 0.0
        %1772 = vmatpush.msra.mxu0 %v1289
        %1773 = vmatpush.msra.mxu0 %v1286
        %1774 = vmatmul.f32.gmra.mxu0 %v1747
        %v1775 = vpop.f32.mrf.mxu0
        %v1776 = vadd.f32 0.0, %v1775
        %1777 = vmatmul.f32.gmra.mxu0 %v1750
        %v1778 = vpop.f32.mrf.mxu0
        %v1779 = vadd.f32 0.0, %v1778
        %1780 = vmatmul.f32.gmra.mxu0 %v1753
        %v1781 = vpop.f32.mrf.mxu0
        %v1782 = vadd.f32 0.0, %v1781
        %1783 = vmatmul.f32.gmra.mxu0 %v1756
        %v1784 = vpop.f32.mrf.mxu0
        %v1785 = vadd.f32 0.0, %v1784
        %1786 = vdwg.mxu0
        %v1788 = vsel %vm1430, %v1714, 0
        %v1791 = vsel %vm1430, %v1715, 0
        %v1794 = vsel %vm1430, %v1716, 0
        %v1797 = vsel %vm1430, %v1717, 0
        %1799 = vmatpush.msra.mxu0 0.0
        %1800 = vmatpush.msra.mxu0 0.0
        %1801 = vmatpush.msra.mxu0 0.0
        %1802 = vmatpush.msra.mxu0 0.0
        %1803 = vmatpush.msra.mxu0 0.0
        %1804 = vmatpush.msra.mxu0 0.0
        %1805 = vmatpush.msra.mxu0 0.0
        %1806 = vmatpush.msra.mxu0 0.0
        %1807 = vmatpush.msra.mxu0 0.0
        %1808 = vmatpush.msra.mxu0 0.0
        %1809 = vmatpush.msra.mxu0 0.0
        %1810 = vmatpush.msra.mxu0 0.0
        %1811 = vmatpush.msra.mxu0 0.0
        %1812 = vmatpush.msra.mxu0 0.0
        %1813 = vmatpush.msra.mxu0 %v1162
        %1814 = vmatpush.msra.mxu0 %v1159
        %1815 = vmatmul.f32.gmra.mxu0 %v1788
        %v1816 = vpop.f32.mrf.mxu0
        %v1817 = vadd.f32 %v1776, %v1816
        %1818 = vmatmul.f32.gmra.mxu0 %v1791
        %v1819 = vpop.f32.mrf.mxu0
        %v1820 = vadd.f32 %v1779, %v1819
        %1821 = vmatmul.f32.gmra.mxu0 %v1794
        %v1822 = vpop.f32.mrf.mxu0
        %v1823 = vadd.f32 %v1782, %v1822
        %1824 = vmatmul.f32.gmra.mxu0 %v1797
        %v1825 = vpop.f32.mrf.mxu0
        %v1826 = vadd.f32 %v1785, %v1825
        %1827 = vdwg.mxu0
        %v1828 = vadd.f32 %v1817, %v1674
        %v1829 = vadd.f32 %v1820, %v1677
        %v1830 = vadd.f32 %v1823, %v1680
        %v1831 = vadd.f32 %v1826, %v1683
        %vm1832 = vcmp.gt.f32.partialorder %v1828, 0.0
        %vm1833 = vcmp.gt.f32.partialorder %v1829, 0.0
        %vm1834 = vcmp.gt.f32.partialorder %v1830, 0.0
        %vm1835 = vcmp.gt.f32.partialorder %v1831, 0.0
        %v1836 = vmul.f32 %v1828, 0.2
        %v1837 = vmul.f32 %v1829, 0.2
        %v1838 = vmul.f32 %v1830, 0.2
        %v1839 = vmul.f32 %v1831, 0.2
        %v1840 = vsel %vm1832, %v1828, %v1836
        %v1841 = vsel %vm1833, %v1829, %v1837
        %v1842 = vsel %vm1834, %v1830, %v1838
        %v1843 = vsel %vm1835, %v1831, %v1839
        %v1844 = vld [vmem:[%s31] sm:$0x1]
        %v1846 = vperm.slane %v1844, 0
        %v1848 = vmul.f32 %v1840, %v1846
        %v1849 = vmul.f32 %v1841, %v1846
        %v1850 = vmul.f32 %v1842, %v1846
        %v1851 = vmul.f32 %v1843, %v1846
        %1852 = vadd.xlane.f32.xlu0 %v1848
        %v1853 = vpop.xlane.xlu0 %1852
        %1854 = vadd.xlane.f32.xlu0 %v1849
        %v1855 = vpop.xlane.xlu0 %1854
        %1856 = vadd.xlane.f32.xlu0 %v1850
        %v1857 = vpop.xlane.xlu0 %1856
        %1858 = vadd.xlane.f32.xlu0 %v1851
        %v1859 = vpop.xlane.xlu0 %1858
        %v1860 = vmul.f32 %v1853, %v1714
        %v1861 = vmul.f32 %v1855, %v1715
        %v1862 = vmul.f32 %v1857, %v1716
        %v1863 = vmul.f32 %v1859, %v1717
        %v1865 = vsel %vm1549, %v1745, 0
        %1867 = vmatpush.msra.mxu0 0.0
        %1868 = vmatpush.msra.mxu0 0.0
        %1869 = vmatpush.msra.mxu0 0.0
        %1870 = vmatpush.msra.mxu0 0.0
        %1871 = vmatpush.msra.mxu0 0.0
        %1872 = vmatpush.msra.mxu0 0.0
        %1873 = vmatpush.msra.mxu0 0.0
        %1874 = vmatpush.msra.mxu0 0.0
        %1875 = vmatpush.msra.mxu0 0.0
        %1876 = vmatpush.msra.mxu0 0.0
        %1877 = vmatpush.msra.mxu0 0.0
        %1878 = vmatpush.msra.mxu0 0.0
        %1879 = vmatpush.msra.mxu0 %v1863
        %1880 = vmatpush.msra.mxu0 %v1862
        %1881 = vmatpush.msra.mxu0 %v1861
        %1882 = vmatpush.msra.mxu0 %v1860
        %1883 = vmatmul.f32.gmra.mxu0 %v1865
        %v1884 = vpop.f32.mrf.mxu0
        %v1885 = vadd.f32 0.0, %v1884
        %1886 = vdwg.mxu0
        %1887 = vmatpush.msra.mxu0 0.0
        %1888 = vmatpush.msra.mxu0 0.0
        %1889 = vmatpush.msra.mxu0 0.0
        %1890 = vmatpush.msra.mxu0 0.0
        %1891 = vmatpush.msra.mxu0 0.0
        %1892 = vmatpush.msra.mxu0 0.0
        %1893 = vmatpush.msra.mxu0 0.0
        %1894 = vmatpush.msra.mxu0 0.0
        %1895 = vmatpush.msra.mxu0 0.0
        %1896 = vmatpush.msra.mxu0 0.0
        %1897 = vmatpush.msra.mxu0 0.0
        %1898 = vmatpush.msra.mxu0 0.0
        %1899 = vmatpush.msra.mxu0 %v1717
        %1900 = vmatpush.msra.mxu0 %v1716
        %1901 = vmatpush.msra.mxu0 %v1715
        %1902 = vmatpush.msra.mxu0 %v1714
        %1903 = vmatmul.f32.gmra.mxu0 %v1865
        %v1904 = vpop.f32.mrf.mxu0
        %v1905 = vadd.f32 0.0, %v1904
        %1906 = vdwg.mxu0
        %vm1907 = vcmp.gt.f32.partialorder %v1905, 0.5
        %v1908 = vsel %vm1907, %v1885, -1e+30
        %v1909 = vsel %vm1430, %v1908, -inf
        %1910 = vmax.xlane.f32.xlu0 %v1909
        %v1911 = vpop.xlane.xlu0 %1910
        %v1912 = vsub.f32 %v1908, %v1911
        %v1913 = vmul.f32 %v1912, 1.442695
        %v1914 = vpow.pop %v1913
        %v1915 = vmul.f32 %v1914, %v1905
        %v1916 = vsel %vm1430, %v1915, 0.0
        %1917 = vadd.xlane.f32.xlu0 %v1916
        %v1918 = vpop.xlane.xlu0 %1917
        %vm1919 = vcmp.gt.f32.partialorder %v1918, 0.0
        %v1920 = vsel %vm1919, %v1918, 1.0
        %v1921 = vrcp.pop %v1920
        %v1922 = vmul.f32 %v1915, %v1921
        %v1923 = vld [vmem:[%s33] sm:$0x1]
        %v1925 = vperm.slane %v1923, 0
        %v1928 = vsel %vm1430, %v1922, 0
        %1930 = vmatpush.msra.mxu0 0.0
        %1931 = vmatpush.msra.mxu0 0.0
        %1932 = vmatpush.msra.mxu0 0.0
        %1933 = vmatpush.msra.mxu0 0.0
        %1934 = vmatpush.msra.mxu0 0.0
        %1935 = vmatpush.msra.mxu0 0.0
        %1936 = vmatpush.msra.mxu0 0.0
        %1937 = vmatpush.msra.mxu0 0.0
        %1938 = vmatpush.msra.mxu0 0.0
        %1939 = vmatpush.msra.mxu0 0.0
        %1940 = vmatpush.msra.mxu0 0.0
        %1941 = vmatpush.msra.mxu0 0.0
        %1942 = vmatpush.msra.mxu0 0.0
        %1943 = vmatpush.msra.mxu0 0.0
        %1944 = vmatpush.msra.mxu0 %v1162
        %1945 = vmatpush.msra.mxu0 %v1159
        %1946 = vmatmul.f32.gmra.mxu0 %v1928
        %v1947 = vpop.f32.mrf.mxu0
        %v1948 = vadd.f32 %v1925, %v1947
        %1949 = vdwg.mxu0
        %v1950 = vld [vmem:[%s41] sm:$0xff]
        %v1951 = vld [vmem:[%s41 + $0x8] sm:$0xff]
        %v1952 = vld [vmem:[%s41 + $0x10] sm:$0xff]
        %v1953 = vld [vmem:[%s41 + $0x18] sm:$0xff]
        %v1954 = vld [vmem:[#allocation10] sm:$0xff]
        %v1955 = vld [vmem:[#allocation10 + $0x8] sm:$0xff]
        %v1956 = vld [vmem:[#allocation10 + $0x10] sm:$0xff]
        %v1957 = vld [vmem:[#allocation10 + $0x18] sm:$0xff]
        %v1958 = vld [vmem:[#allocation10 + $0x20] sm:$0xff]
        %v1959 = vld [vmem:[#allocation10 + $0x28] sm:$0xff]
        %v1960 = vld [vmem:[#allocation10 + $0x30] sm:$0xff]
        %v1961 = vld [vmem:[#allocation10 + $0x38] sm:$0xff]
        %v1962 = vld [vmem:[#allocation10 + $0x40] sm:$0xff]
        %v1963 = vld [vmem:[#allocation10 + $0x48] sm:$0xff]
        %v1964 = vld [vmem:[#allocation10 + $0x50] sm:$0xff]
        %v1965 = vld [vmem:[#allocation10 + $0x58] sm:$0xff]
        %v1966 = vld [vmem:[#allocation10 + $0x60] sm:$0xff]
        %v1967 = vld [vmem:[#allocation10 + $0x68] sm:$0xff]
        %v1968 = vld [vmem:[#allocation10 + $0x70] sm:$0xff]
        %v1969 = vld [vmem:[#allocation10 + $0x78] sm:$0xff]
        %1970 = vmatpush.msra.mxu0 %v1969
        %1971 = vmatpush.msra.mxu0 %v1968
        %1972 = vmatpush.msra.mxu0 %v1967
        %1973 = vmatpush.msra.mxu0 %v1966
        %1974 = vmatpush.msra.mxu0 %v1965
        %1975 = vmatpush.msra.mxu0 %v1964
        %1976 = vmatpush.msra.mxu0 %v1963
        %1977 = vmatpush.msra.mxu0 %v1962
        %1978 = vmatpush.msra.mxu0 %v1961
        %1979 = vmatpush.msra.mxu0 %v1960
        %1980 = vmatpush.msra.mxu0 %v1959
        %1981 = vmatpush.msra.mxu0 %v1958
        %1982 = vmatpush.msra.mxu0 %v1957
        %1983 = vmatpush.msra.mxu0 %v1956
        %1984 = vmatpush.msra.mxu0 %v1955
        %1985 = vmatpush.msra.mxu0 %v1954
        %1986 = vmatmul.f32.gmra.mxu0 %v1950
        %v1987 = vpop.f32.mrf.mxu0
        %v1988 = vadd.f32 0.0, %v1987
        %1989 = vmatmul.f32.gmra.mxu0 %v1951
        %v1990 = vpop.f32.mrf.mxu0
        %v1991 = vadd.f32 0.0, %v1990
        %1992 = vmatmul.f32.gmra.mxu0 %v1952
        %v1993 = vpop.f32.mrf.mxu0
        %v1994 = vadd.f32 0.0, %v1993
        %1995 = vmatmul.f32.gmra.mxu0 %v1953
        %v1996 = vpop.f32.mrf.mxu0
        %v1997 = vadd.f32 0.0, %v1996
        %1998 = vdwg.mxu0
        %v1999 = vld [vmem:[%s49] sm:$0xff]
        %v2000 = vld [vmem:[%s49 + $0x8] sm:$0xff]
        %v2001 = vld [vmem:[%s49 + $0x10] sm:$0xff]
        %v2002 = vld [vmem:[%s49 + $0x18] sm:$0xff]
        %v2003 = vld [vmem:[%s51] sm:$0xff]
        %v2004 = vld [vmem:[%s51 + $0x8] sm:$0xff]
        %v2005 = vld [vmem:[%s51 + $0x10] sm:$0xff]
        %v2006 = vld [vmem:[%s51 + $0x18] sm:$0xff]
        %v2007 = vld [vmem:[%s53] sm:$0x1]
        %2008 = vset.pattern.permute.xlu0 0
        %2009 = vperm.xlu0 %2008, %v1999
        %v2010 = vpop.permute.xlu0 %2009
        %2011 = vset.pattern.permute.xlu0 0
        %2012 = vperm.xlu0 %2011, %v2000
        %v2013 = vpop.permute.xlu0 %2012
        %2014 = vset.pattern.permute.xlu0 0
        %2015 = vperm.xlu0 %2014, %v2001
        %v2016 = vpop.permute.xlu0 %2015
        %2017 = vset.pattern.permute.xlu0 0
        %2018 = vperm.xlu0 %2017, %v2002
        %v2019 = vpop.permute.xlu0 %2018
        %vm2020 = vcmp.eq.s32.totalorder %v1373, %v2010
        %vm2021 = vcmp.eq.s32.totalorder %v1373, %v2013
        %vm2022 = vcmp.eq.s32.totalorder %v1373, %v2016
        %vm2023 = vcmp.eq.s32.totalorder %v1373, %v2019
        %v2024 = vsel %vm2020, 1, 0
        %v2025 = vsel %vm2021, 1, 0
        %v2026 = vsel %vm2022, 1, 0
        %v2027 = vsel %vm2023, 1, 0
        %v2028 = vcvt.s32.f32 %v2024
        %v2029 = vcvt.s32.f32 %v2025
        %v2030 = vcvt.s32.f32 %v2026
        %v2031 = vcvt.s32.f32 %v2027
        %2032 = vset.pattern.permute.xlu0 0
        %2033 = vperm.xlu0 %2032, %v2003
        %v2034 = vpop.permute.xlu0 %2033
        %2035 = vset.pattern.permute.xlu0 0
        %2036 = vperm.xlu0 %2035, %v2004
        %v2037 = vpop.permute.xlu0 %2036
        %2038 = vset.pattern.permute.xlu0 0
        %2039 = vperm.xlu0 %2038, %v2005
        %v2040 = vpop.permute.xlu0 %2039
        %2041 = vset.pattern.permute.xlu0 0
        %2042 = vperm.xlu0 %2041, %v2006
        %v2043 = vpop.permute.xlu0 %2042
        %vm2044 = vcmp.eq.s32.totalorder %v1373, %v2034
        %vm2045 = vcmp.eq.s32.totalorder %v1373, %v2037
        %vm2046 = vcmp.eq.s32.totalorder %v1373, %v2040
        %vm2047 = vcmp.eq.s32.totalorder %v1373, %v2043
        %v2048 = vsel %vm2044, 1, 0
        %v2049 = vsel %vm2045, 1, 0
        %v2050 = vsel %vm2046, 1, 0
        %v2051 = vsel %vm2047, 1, 0
        %v2052 = vcvt.s32.f32 %v2048
        %v2053 = vcvt.s32.f32 %v2049
        %v2054 = vcvt.s32.f32 %v2050
        %v2055 = vcvt.s32.f32 %v2051
        %v2056 = vperm.slane %v2007, 0
        %vm2057 = vcmp.eq.s32.totalorder %v1425, %v2056
        %v2058 = vsel %vm2057, 1, 0
        %v2059 = vcvt.s32.f32 %v2058
        %v2061 = vsel %vm1430, %v2052, 0
        %v2064 = vsel %vm1430, %v2053, 0
        %v2067 = vsel %vm1430, %v2054, 0
        %v2070 = vsel %vm1430, %v2055, 0
        %2072 = vmatpush.msra.mxu0 0.0
        %2073 = vmatpush.msra.mxu0 0.0
        %2074 = vmatpush.msra.mxu0 0.0
        %2075 = vmatpush.msra.mxu0 0.0
        %2076 = vmatpush.msra.mxu0 0.0
        %2077 = vmatpush.msra.mxu0 0.0
        %2078 = vmatpush.msra.mxu0 0.0
        %2079 = vmatpush.msra.mxu0 0.0
        %2080 = vmatpush.msra.mxu0 0.0
        %2081 = vmatpush.msra.mxu0 0.0
        %2082 = vmatpush.msra.mxu0 0.0
        %2083 = vmatpush.msra.mxu0 0.0
        %2084 = vmatpush.msra.mxu0 0.0
        %2085 = vmatpush.msra.mxu0 0.0
        %2086 = vmatpush.msra.mxu0 %v1185
        %2087 = vmatpush.msra.mxu0 %v1182
        %2088 = vmatmul.f32.gmra.mxu0 %v2061
        %v2089 = vpop.f32.mrf.mxu0
        %v2090 = vadd.f32 0.0, %v2089
        %2091 = vmatmul.f32.gmra.mxu0 %v2064
        %v2092 = vpop.f32.mrf.mxu0
        %v2093 = vadd.f32 0.0, %v2092
        %2094 = vmatmul.f32.gmra.mxu0 %v2067
        %v2095 = vpop.f32.mrf.mxu0
        %v2096 = vadd.f32 0.0, %v2095
        %2097 = vmatmul.f32.gmra.mxu0 %v2070
        %v2098 = vpop.f32.mrf.mxu0
        %v2099 = vadd.f32 0.0, %v2098
        %2100 = vdwg.mxu0
        %v2102 = vsel %vm1430, %v2028, 0
        %v2105 = vsel %vm1430, %v2029, 0
        %v2108 = vsel %vm1430, %v2030, 0
        %v2111 = vsel %vm1430, %v2031, 0
        %2113 = vmatpush.msra.mxu0 0.0
        %2114 = vmatpush.msra.mxu0 0.0
        %2115 = vmatpush.msra.mxu0 0.0
        %2116 = vmatpush.msra.mxu0 0.0
        %2117 = vmatpush.msra.mxu0 0.0
        %2118 = vmatpush.msra.mxu0 0.0
        %2119 = vmatpush.msra.mxu0 0.0
        %2120 = vmatpush.msra.mxu0 0.0
        %2121 = vmatpush.msra.mxu0 0.0
        %2122 = vmatpush.msra.mxu0 0.0
        %2123 = vmatpush.msra.mxu0 0.0
        %2124 = vmatpush.msra.mxu0 0.0
        %2125 = vmatpush.msra.mxu0 0.0
        %2126 = vmatpush.msra.mxu0 0.0
        %2127 = vmatpush.msra.mxu0 %v1312
        %2128 = vmatpush.msra.mxu0 %v1309
        %2129 = vmatmul.f32.gmra.mxu0 %v2102
        %v2130 = vpop.f32.mrf.mxu0
        %v2131 = vadd.f32 %v2090, %v2130
        %2132 = vmatmul.f32.gmra.mxu0 %v2105
        %v2133 = vpop.f32.mrf.mxu0
        %v2134 = vadd.f32 %v2093, %v2133
        %2135 = vmatmul.f32.gmra.mxu0 %v2108
        %v2136 = vpop.f32.mrf.mxu0
        %v2137 = vadd.f32 %v2096, %v2136
        %2138 = vmatmul.f32.gmra.mxu0 %v2111
        %v2139 = vpop.f32.mrf.mxu0
        %v2140 = vadd.f32 %v2099, %v2139
        %2141 = vdwg.mxu0
        %v2142 = vadd.f32 %v2131, %v1988
        %v2143 = vadd.f32 %v2134, %v1991
        %v2144 = vadd.f32 %v2137, %v1994
        %v2145 = vadd.f32 %v2140, %v1997
        %vm2146 = vcmp.gt.f32.partialorder %v2142, 0.0
        %vm2147 = vcmp.gt.f32.partialorder %v2143, 0.0
        %vm2148 = vcmp.gt.f32.partialorder %v2144, 0.0
        %vm2149 = vcmp.gt.f32.partialorder %v2145, 0.0
        %v2150 = vmul.f32 %v2142, 0.2
        %v2151 = vmul.f32 %v2143, 0.2
        %v2152 = vmul.f32 %v2144, 0.2
        %v2153 = vmul.f32 %v2145, 0.2
        %v2154 = vsel %vm2146, %v2142, %v2150
        %v2155 = vsel %vm2147, %v2143, %v2151
        %v2156 = vsel %vm2148, %v2144, %v2152
        %v2157 = vsel %vm2149, %v2145, %v2153
        %v2158 = vld [vmem:[%s45] sm:$0x1]
        %v2160 = vperm.slane %v2158, 0
        %v2162 = vmul.f32 %v2154, %v2160
        %v2163 = vmul.f32 %v2155, %v2160
        %v2164 = vmul.f32 %v2156, %v2160
        %v2165 = vmul.f32 %v2157, %v2160
        %2166 = vadd.xlane.f32.xlu0 %v2162
        %v2167 = vpop.xlane.xlu0 %2166
        %2168 = vadd.xlane.f32.xlu0 %v2163
        %v2169 = vpop.xlane.xlu0 %2168
        %2170 = vadd.xlane.f32.xlu0 %v2164
        %v2171 = vpop.xlane.xlu0 %2170
        %2172 = vadd.xlane.f32.xlu0 %v2165
        %v2173 = vpop.xlane.xlu0 %2172
        %v2174 = vmul.f32 %v2167, %v2028
        %v2175 = vmul.f32 %v2169, %v2029
        %v2176 = vmul.f32 %v2171, %v2030
        %v2177 = vmul.f32 %v2173, %v2031
        %v2179 = vsel %vm1549, %v2059, 0
        %2181 = vmatpush.msra.mxu0 0.0
        %2182 = vmatpush.msra.mxu0 0.0
        %2183 = vmatpush.msra.mxu0 0.0
        %2184 = vmatpush.msra.mxu0 0.0
        %2185 = vmatpush.msra.mxu0 0.0
        %2186 = vmatpush.msra.mxu0 0.0
        %2187 = vmatpush.msra.mxu0 0.0
        %2188 = vmatpush.msra.mxu0 0.0
        %2189 = vmatpush.msra.mxu0 0.0
        %2190 = vmatpush.msra.mxu0 0.0
        %2191 = vmatpush.msra.mxu0 0.0
        %2192 = vmatpush.msra.mxu0 0.0
        %2193 = vmatpush.msra.mxu0 %v2177
        %2194 = vmatpush.msra.mxu0 %v2176
        %2195 = vmatpush.msra.mxu0 %v2175
        %2196 = vmatpush.msra.mxu0 %v2174
        %2197 = vmatmul.f32.gmra.mxu0 %v2179
        %v2198 = vpop.f32.mrf.mxu0
        %v2199 = vadd.f32 0.0, %v2198
        %2200 = vdwg.mxu0
        %2201 = vmatpush.msra.mxu0 0.0
        %2202 = vmatpush.msra.mxu0 0.0
        %2203 = vmatpush.msra.mxu0 0.0
        %2204 = vmatpush.msra.mxu0 0.0
        %2205 = vmatpush.msra.mxu0 0.0
        %2206 = vmatpush.msra.mxu0 0.0
        %2207 = vmatpush.msra.mxu0 0.0
        %2208 = vmatpush.msra.mxu0 0.0
        %2209 = vmatpush.msra.mxu0 0.0
        %2210 = vmatpush.msra.mxu0 0.0
        %2211 = vmatpush.msra.mxu0 0.0
        %2212 = vmatpush.msra.mxu0 0.0
        %2213 = vmatpush.msra.mxu0 %v2031
        %2214 = vmatpush.msra.mxu0 %v2030
        %2215 = vmatpush.msra.mxu0 %v2029
        %2216 = vmatpush.msra.mxu0 %v2028
        %2217 = vmatmul.f32.gmra.mxu0 %v2179
        %v2218 = vpop.f32.mrf.mxu0
        %v2219 = vadd.f32 0.0, %v2218
        %2220 = vdwg.mxu0
        %vm2221 = vcmp.gt.f32.partialorder %v2219, 0.5
        %v2222 = vsel %vm2221, %v2199, -1e+30
        %v2223 = vsel %vm1430, %v2222, -inf
        %2224 = vmax.xlane.f32.xlu0 %v2223
        %v2225 = vpop.xlane.xlu0 %2224
        %v2226 = vsub.f32 %v2222, %v2225
        %v2227 = vmul.f32 %v2226, 1.442695
        %v2228 = vpow.pop %v2227
        %v2229 = vmul.f32 %v2228, %v2219
        %v2230 = vsel %vm1430, %v2229, 0.0
        %2231 = vadd.xlane.f32.xlu0 %v2230
        %v2232 = vpop.xlane.xlu0 %2231
        %vm2233 = vcmp.gt.f32.partialorder %v2232, 0.0
        %v2234 = vsel %vm2233, %v2232, 1.0
        %v2235 = vrcp.pop %v2234
        %v2236 = vmul.f32 %v2229, %v2235
        %v2237 = vld [vmem:[%s47] sm:$0x1]
        %v2239 = vperm.slane %v2237, 0
        %v2242 = vsel %vm1430, %v2236, 0
        %2244 = vmatpush.msra.mxu0 0.0
        %2245 = vmatpush.msra.mxu0 0.0
        %2246 = vmatpush.msra.mxu0 0.0
        %2247 = vmatpush.msra.mxu0 0.0
        %2248 = vmatpush.msra.mxu0 0.0
        %2249 = vmatpush.msra.mxu0 0.0
        %2250 = vmatpush.msra.mxu0 0.0
        %2251 = vmatpush.msra.mxu0 0.0
        %2252 = vmatpush.msra.mxu0 0.0
        %2253 = vmatpush.msra.mxu0 0.0
        %2254 = vmatpush.msra.mxu0 0.0
        %2255 = vmatpush.msra.mxu0 0.0
        %2256 = vmatpush.msra.mxu0 0.0
        %2257 = vmatpush.msra.mxu0 0.0
        %2258 = vmatpush.msra.mxu0 %v1312
        %2259 = vmatpush.msra.mxu0 %v1309
        %2260 = vmatmul.f32.gmra.mxu0 %v2242
        %v2261 = vpop.f32.mrf.mxu0
        %v2262 = vadd.f32 %v2239, %v2261
        %2263 = vdwg.mxu0
        %v2264 = vmax.f32 %v2262, 0.0
        %v2265 = vld [vmem:[%s55] sm:$0x1]
        %v2267 = vperm.slane %v2265, 0
        %v2269 = vmul.f32 %v2264, %v2267
        %v2270 = vld [vmem:[%s57] sm:$0x1]
        %v2272 = vperm.slane %v2270, 0
        %v2274 = vadd.f32 %v2269, %v2272
        %2275 = vst [vmem:[%s1051] sm:$0xff] %v2274
        %v2276 = vadd.f32 %v1634, %v1948
        %v2277 = vmul.f32 %v2276, 0.5
        %v2278 = vmax.f32 %v2277, 0.0
        %v2279 = vld [vmem:[%s59] sm:$0x1]
        %v2281 = vperm.slane %v2279, 0
        %v2283 = vmul.f32 %v2278, %v2281
        %v2284 = vld [vmem:[%s61] sm:$0x1]
        %v2286 = vperm.slane %v2284, 0
        %v2288 = vadd.f32 %v2283, %v2286
        %2289 = vst [vmem:[%s1058] sm:$0xff] %v2288
        %s2290 = sand.u32 %s745, 1
        %s2291 = scalar_lea.sflag [#allocation4], %s2290
        %s2292 = sand.u32 %s745, 1
        %s2293 = smul.addr %s2292, 8
        %s2294 = scalar_lea.vmem [#allocation11], %s2293
        %s2295 = sand.u32 %s771, 1
        %s2296 = scalar_lea.sflag [#allocation13], %s2295
        %s2297 = sand.u32 %s771, 1
        %s2298 = smul.addr %s2297, 8
        %s2299 = scalar_lea.vmem [#allocation12], %s2298
        // Predicated region
        $region165: #{tpu_custom_call.1} parent=143 // pred_check
          %p2300 = pneg %p755
        $region166: #{tpu_custom_call.1} parent=143 // pred_check_branch
          %2302 = sbr.rel (%p2300) target = $region168
        $region167: #{tpu_custom_call.1} parent=143 // pred_region
          %2304 = vsyncadd %s2291, 0
          %s2305 = smul.addr %s86, 8
          %s2306 = scalar_lea.hbm %s63, %s2305
          %s2308 = sshll.u32 %s2294, 4
          %s2309 = int_to_ptr.vmem [resolvable:$true] %s2308
          %s2310 = sshll.u32 %s2306, 4
          %s2311 = int_to_ptr.hbm [resolvable:$true] %s2310
          %2313 = dma.vmem_to_hbm [thread:$0]  %s2309, 128, %s2311, %s2291
        $region168: #{tpu_custom_call.1} parent=143 // pred_fallthru
          _
        // Predicated region
        $region169: #{tpu_custom_call.1} parent=143 // pred_check
          %p2314 = pneg %p781
        $region170: #{tpu_custom_call.1} parent=143 // pred_check_branch
          %2316 = sbr.rel (%p2314) target = $region172
        $region171: #{tpu_custom_call.1} parent=143 // pred_region
          %2318 = vsyncadd %s2296, 0
          %s2319 = smul.addr %s86, 8
          %s2320 = scalar_lea.hbm %s65, %s2319
          %s2322 = sshll.u32 %s2299, 4
          %s2323 = int_to_ptr.vmem [resolvable:$true] %s2322
          %s2324 = sshll.u32 %s2320, 4
          %s2325 = int_to_ptr.hbm [resolvable:$true] %s2324
          %2327 = dma.vmem_to_hbm [thread:$0]  %s2323, 128, %s2325, %s2296
        $region172: #{tpu_custom_call.1} parent=143 // pred_fallthru
          _
      $region144: #{tpu_custom_call.1} parent=5 // pred_fallthru
        _
      %p2328 = scmp.le.s32.totalorder 2, %s81
      // Predicated region
      $region173: #{tpu_custom_call.1} parent=5 // pred_check
        %p2329 = pneg %p2328
      $region174: #{tpu_custom_call.1} parent=5 // pred_check_branch
        %2331 = sbr.rel (%p2329) target = $region176
      $region175: #{tpu_custom_call.1} parent=5 // pred_region
        %s2332 = ssub.s32 %s81, 2
        // Predicated region
        $region177: #{tpu_custom_call.1} parent=175 // pred_check
          %p2333 = pneg %p761
        $region178: #{tpu_custom_call.1} parent=175 // pred_check_branch
          %2335 = sbr.rel (%p2333) target = $region180
        $region179: #{tpu_custom_call.1} parent=175 // pred_region
          %s2336 = sand.u32 %s746, 1
          %s2337 = scalar_lea.sflag [#allocation4], %s2336
          %s2338 = sand.u32 %s746, 1
          %s2339 = smul.addr %s2338, 8
          %s2340 = scalar_lea.vmem [#allocation11], %s2339
          %2342 = dma.done %s2337, 128
        $region180: #{tpu_custom_call.1} parent=175 // pred_fallthru
          _
        // Predicated region
        $region181: #{tpu_custom_call.1} parent=175 // pred_check
          %p2343 = pneg %p787
        $region182: #{tpu_custom_call.1} parent=175 // pred_check_branch
          %2345 = sbr.rel (%p2343) target = $region184
        $region183: #{tpu_custom_call.1} parent=175 // pred_region
          %s2346 = sand.u32 %s772, 1
          %s2347 = scalar_lea.sflag [#allocation13], %s2346
          %s2348 = sand.u32 %s772, 1
          %s2349 = smul.addr %s2348, 8
          %s2350 = scalar_lea.vmem [#allocation12], %s2349
          %2352 = dma.done %s2347, 128
        $region184: #{tpu_custom_call.1} parent=175 // pred_fallthru
          _
      $region176: #{tpu_custom_call.1} parent=5 // pred_fallthru
        _
    $region6: #{tpu_custom_call.1} parent=1 // loop_footer
      %s85 = sadd.s32 1, %s81
    $region7: #{tpu_custom_call.1} parent=1 // loop_footer_branch
      %80 = sbr.rel target = $region3
    $region8: #{tpu_custom_call.1} parent=1 // loop_exit
      _
    %2353 = vsyncpa [#allocation3], 1
    %s2354 = scalar_lea.sflag [#allocation3], 1
    %2355 = vsyncpa %s2354, 1
    %2356 = vsyncpa [#allocation6], 1
    %2357 = vsyncpa [#allocation9], 1
    %2358 = vsyncpa [#allocation4], 1
    %s2359 = scalar_lea.sflag [#allocation4], 1
    %2360 = vsyncpa %s2359, 1
    %2361 = vsyncpa [#allocation13], 1
    %s2362 = scalar_lea.sflag [#allocation13], 1
    %2363 = vsyncpa %s2362, 1

</llo_original>
